<compile_context>
chip_gen: v6e
topology: v6e:2x2x1
jax: 0.10.0
libtpu: 0.0.40
codegen_flags: <defaults>
</compile_context>

<pallas_src>
import functools

import jax
import jax.numpy as jnp
from jax.experimental import pallas as pl
from jax.experimental.pallas import tpu as pltpu


def bert_rnn_kernel(ids_ref,                   # (1, S*B, 1) int32  time-major token ids (this shard)
                    emb_ref,                   # (V, E) f32        embedding table ("BERT")
                    h0_ref, c0_ref,            # (L, B, H) f32     initial hidden / cell (this shard)
                    w_ih0_ref, w_hh0_ref, b0_ref,   # (E,4H) bf16, (H,4H) bf16, (1,4H) f32
                    w_ih1_ref, w_hh1_ref, b1_ref,   # (H,4H) bf16, (H,4H) bf16, (1,4H) f32
                    w_ih2_ref, w_hh2_ref, b2_ref,   # (H,4H) bf16, (H,4H) bf16, (1,4H) f32
                    w_fc_ref, b_fc_ref,        # (H, O) bf16, (1, O) f32
                    out_ref,                   # (B, O) f32        softmax(fc(h_last))
                    hn_ref, cn_ref,            # (L, B, H) f32     final hidden / cell
                    gx0_ref):                  # (S*B, 4H) f32     VMEM scratch (hoisted layer-0 x-proj)
    SB = ids_ref.shape[1]
    V, E = emb_ref.shape
    L, B, H = h0_ref.shape
    S = SB // B
    G = 4 * H

    # ---------------- prologue (off the serial chain) ----------------
    # In-kernel "BERT": deterministic embedding lookup fused as a one-hot MXU
    # matmul, chained into the hoisted layer-0 input projection (one batched
    # big-M matmul; merged layer-0 bias folded in).
    ids = ids_ref[0]                                            # (S*B, 1) int32
    vocab_iota = jax.lax.broadcasted_iota(jnp.int32, (SB, V), 1)
    onehot = jnp.where(ids == vocab_iota, 1.0, 0.0).astype(jnp.bfloat16)   # (S*B, V)
    x2d = jnp.dot(onehot, emb_ref[...].astype(jnp.bfloat16),
                  preferred_element_type=jnp.float32)           # (S*B, E) embeddings
    gx0_ref[...] = (jnp.dot(x2d.astype(jnp.bfloat16), w_ih0_ref[...],
                            preferred_element_type=jnp.float32)
                    + b0_ref[...])                              # (S*B, 4H) f32

    # ---- hoisted loop invariants (broadcasts are not CSE'd; emit once) ----
    lane = jax.lax.broadcasted_iota(jnp.int32, (B, G), 1)
    is_sig = lane < 3 * H            # gate order (i, f, o, g): sigmoid lanes [0, 3H)
    b1 = jnp.broadcast_to(b1_ref[...], (B, G))
    b2 = jnp.broadcast_to(b2_ref[...], (B, G))
    w_hh0 = w_hh0_ref[...]
    w_ih1 = w_ih1_ref[...]
    w_hh1 = w_hh1_ref[...]
    w_ih2 = w_ih2_ref[...]
    w_hh2 = w_hh2_ref[...]

    def cell(gates, c):
        # Full-vreg nonlinearity blend (one exp + one tanh EUP push over the
        # whole [B,4H] tile).  Sigmoid is 1/(1+exp(-x)) with an approximate
        # EUP reciprocal so the divide never lands on the VALU.
        sig = pl.reciprocal(1.0 + jnp.exp(-gates), approx=True)
        act = jnp.where(is_sig, sig, jnp.tanh(gates))
        i_g = act[:, 0 * H:1 * H]
        f_g = act[:, 1 * H:2 * H]
        o_g = act[:, 2 * H:3 * H]
        g_g = act[:, 3 * H:4 * H]
        c_new = f_g * c + i_g * g_g
        h_new = o_g * jnp.tanh(c_new)
        return h_new, c_new

    def step(t, carry):
        h0s, c0s, h1s, c1s, h2s, c2s = carry
        if isinstance(t, int):               # unrolled path: static slice
            row = t * B
        else:                                # fori path: hint sublane alignment
            row = pl.multiple_of(t * B, B)
        gx = gx0_ref[pl.ds(row, B), :]

        # layer 0: x-side gates precomputed; only the h-side matmul on the chain.
        g0 = gx + jnp.dot(h0s.astype(jnp.bfloat16), w_hh0,
                          preferred_element_type=jnp.float32)
        h0s, c0s = cell(g0, c0s)

        # layers 1/2: two separate dots (keeps the XLU concat off the serial edge).
        g1 = (jnp.dot(h0s.astype(jnp.bfloat16), w_ih1,
                      preferred_element_type=jnp.float32)
              + jnp.dot(h1s.astype(jnp.bfloat16), w_hh1,
                        preferred_element_type=jnp.float32)
              + b1)
        h1s, c1s = cell(g1, c1s)

        g2 = (jnp.dot(h1s.astype(jnp.bfloat16), w_ih2,
                      preferred_element_type=jnp.float32)
              + jnp.dot(h2s.astype(jnp.bfloat16), w_hh2,
                        preferred_element_type=jnp.float32)
              + b2)
        h2s, c2s = cell(g2, c2s)
        return (h0s, c0s, h1s, c1s, h2s, c2s)

    # LSTM state lives in registers across the whole recurrence.
    carry = (h0_ref[0], c0_ref[0], h0_ref[1], c0_ref[1], h0_ref[2], c0_ref[2])
    if S <= 16:
        # Fully unrolled: one basic block, all slice starts static; the LLO
        # scheduler overlaps independent layer/timestep work automatically.
        for t in range(S):
            carry = step(t, carry)
    else:
        # Scale-up path: bounded code size / live ranges for long sequences.
        carry = jax.lax.fori_loop(0, S, step, carry, unroll=2)
    h0s, c0s, h1s, c1s, h2s, c2s = carry

    # ---------------- epilogue ----------------
    hn_ref[0] = h0s
    hn_ref[1] = h1s
    hn_ref[2] = h2s
    cn_ref[0] = c0s
    cn_ref[1] = c1s
    cn_ref[2] = c2s

    # dropout (eval) is identity; fc + softmax of the last top-layer hidden.
    logits = (jnp.dot(h2s.astype(jnp.bfloat16), w_fc_ref[...],
                      preferred_element_type=jnp.float32)
              + b_fc_ref[...])
    m = jnp.max(logits, axis=-1, keepdims=True)
    e = jnp.exp(logits - m)
    out_ref[...] = e * pl.reciprocal(jnp.sum(e, axis=-1, keepdims=True),
                                     approx=True)


def bert_plus_rnn_forward(x_ids, attention_mask, hidden, params,
                          *, hidden_dim, output_dim, num_batch_shards=None):
    """x_ids: [B, S] int32 token ids; hidden = (h0, c0) each [L, B, H]."""
    del attention_mask  # TODO(synk): unused by the simplified embedding "BERT"
    h0, c0 = hidden
    B, S = x_ids.shape
    L, _, H = h0.shape
    V, E = params["emb"].shape
    O = output_dim
    assert H == hidden_dim and L == 3

    if num_batch_shards is None:
        # One shard at small B (demo); 2 shards when the batch can be split
        # into sublane-aligned halves -> uses both TensorCores on v7x
        # (no effect on v5e/v6e, which have 1 TC).
        num_batch_shards = 2 if (B >= 16 and B % 16 == 0) else 1
    NS = num_batch_shards
    Bs = B // NS

    # Tiny int32 relayout only (256 B at demo shapes): per-shard, time-major
    # flattened token ids.  The [B,S,E] embedding intermediate never exists.
    ids_tm = jnp.transpose(x_ids)                                  # (S, B)
    ids_sh = (ids_tm.reshape(S, NS, Bs)
              .transpose(1, 0, 2)
              .reshape(NS, S * Bs, 1))                             # (NS, S*Bs, 1)

    w2 = lambda shape: pl.BlockSpec(shape, lambda g: (0, 0))       # whole-array 2D
    shard3 = lambda shape: pl.BlockSpec(shape, lambda g: (0, g, 0))

    grid_spec = pltpu.PrefetchScalarGridSpec(
        num_scalar_prefetch=0,
        grid=(NS,),                      # batch shards; time loop is in-kernel
        in_specs=[
            pl.BlockSpec((1, S * Bs, 1), lambda g: (g, 0, 0)),     # token ids
            w2((V, E)),                                            # embedding table
            shard3((L, Bs, H)),                                    # h0
            shard3((L, Bs, H)),                                    # c0
            w2((E, 4 * H)),                                        # w_ih0 (bf16)
            w2((H, 4 * H)),                                        # w_hh0 (bf16)
            w2((1, 4 * H)),                                        # b0
            w2((H, 4 * H)),                                        # w_ih1 (bf16)
            w2((H, 4 * H)),                                        # w_hh1 (bf16)
            w2((1, 4 * H)),                                        # b1
            w2((H, 4 * H)),                                        # w_ih2 (bf16)
            w2((H, 4 * H)),                                        # w_hh2 (bf16)
            w2((1, 4 * H)),                                        # b2
            w2((H, O)),                                            # w_fc (bf16)
            w2((1, O)),                                            # b_fc
        ],
        out_specs=[
            pl.BlockSpec((Bs, O), lambda g: (g, 0)),               # out
            shard3((L, Bs, H)),                                    # h_n
            shard3((L, Bs, H)),                                    # c_n
        ],
        scratch_shapes=[pltpu.VMEM((S * Bs, 4 * H), jnp.float32)], # gx0
    )

    out, h_n, c_n = pl.pallas_call(
        bert_rnn_kernel,
        grid_spec=grid_spec,
        out_shape=(
            jax.ShapeDtypeStruct((B, O), jnp.float32),
            jax.ShapeDtypeStruct((L, B, H), jnp.float32),
            jax.ShapeDtypeStruct((L, B, H), jnp.float32),
        ),
        # Footprint is ~200 KiB, far under any chip's VMEM; revisit
        # vmem_limit_bytes / pl.Buffered(1) only if E/H grow to real BERT dims.
        compiler_params=pltpu.CompilerParams(
            dimension_semantics=("parallel",)),
    )(
        ids_sh, params["emb"], h0, c0,
        params["w_ih0"], params["w_hh0"], params["b0"],
        params["w_ih1"], params["w_hh1"], params["b1"],
        params["w_ih2"], params["w_hh2"], params["b2"],
        params["w_fc"], params["b_fc"],
    )
    return out, (h_n, c_n)


def make_params(key, *, vocab, embedding_dim, hidden_dim, output_dim):
    """Deterministic synthetic parameters, pre-packed for the kernel layout:
       * LSTM weights stored transposed ([in, 4H]); b_ih + b_hh pre-merged.
       * gate columns are interpreted in (i, f, o, g) order; to load REAL
         PyTorch weights you must apply the (i,f,g,o)->(i,f,o,g) column
         permutation, the transpose, and the bias merge here (synthetic random
         weights make that a no-op).
       * matmul weights stored bf16 (MXU-native); biases + embedding kept f32."""
    E, H, O = embedding_dim, hidden_dim, output_dim
    ks = jax.random.split(key, 16)
    s = 0.1

    def w(k, shape, dtype=jnp.float32):
        return (s * jax.random.normal(k, shape)).astype(dtype)

    bf = jnp.bfloat16
    return {
        "emb":   w(ks[0], (vocab, E)),
        # layer 0 (input size E)
        "w_ih0": w(ks[1], (E, 4 * H), bf),
        "w_hh0": w(ks[2], (H, 4 * H), bf),
        "b0":    w(ks[3], (1, 4 * H)),
        # layer 1
        "w_ih1": w(ks[4], (H, 4 * H), bf),
        "w_hh1": w(ks[5], (H, 4 * H), bf),
        "b1":    w(ks[6], (1, 4 * H)),
        # layer 2
        "w_ih2": w(ks[7], (H, 4 * H), bf),
        "w_hh2": w(ks[8], (H, 4 * H), bf),
        "b2":    w(ks[9], (1, 4 * H)),
        # fc
        "w_fc":  w(ks[10], (H, O), bf),
        "b_fc":  w(ks[11], (1, O)),
    }


if __name__ == "__main__":
    # small shapes consistent with the module
    VOCAB = 100
    B, S = 8, 8                 # batch, sequence length
    E = 128                     # bert hidden_size (embedding_dim), small stand-in
    H = 32                      # hidden_dim
    O = 4                       # output_dim
    L = 3                       # no_layers

    key = jax.random.PRNGKey(0)
    k_ids, k_params = jax.random.split(key)

    x_ids = jax.random.randint(k_ids, (B, S), 0, VOCAB, dtype=jnp.int32)
    attention_mask = jnp.ones((B, S), dtype=jnp.int32)
    params = make_params(k_params, vocab=VOCAB, embedding_dim=E,
                         hidden_dim=H, output_dim=O)

    # init_hidden(batch_size): zeros
    h0 = jnp.zeros((L, B, H), jnp.float32)
    c0 = jnp.zeros((L, B, H), jnp.float32)

    fwd = jax.jit(functools.partial(bert_plus_rnn_forward,
                                    hidden_dim=H, output_dim=O))
    out, (h_n, c_n) = fwd(x_ids, attention_mask, (h0, c0), params)
    jax.block_until_ready((out, h_n, c_n))

    assert out.shape == (B, O)
    assert h_n.shape == (L, B, H) and c_n.shape == (L, B, H)
    # softmax rows must sum to ~1 (approx-EUP reciprocal in the denominator)
    assert bool(jnp.all(jnp.abs(jnp.sum(out, axis=-1) - 1.0) < 1e-2))
    # states must be finite
    assert bool(jnp.all(jnp.isfinite(h_n))) and bool(jnp.all(jnp.isfinite(c_n)))

    print("KERNEL_OK")
</pallas_src>

<mosaic_0001>
module attributes {stable_mosaic.version = 11 : i64} {
  func.func @bert_rnn_kernel(%arg0: i32, %arg1: memref<1x64x1xi32, #tpu.memory_space<vmem>>, %arg2: memref<100x128xf32, #tpu.memory_space<vmem>>, %arg3: memref<3x8x32xf32, #tpu.memory_space<vmem>>, %arg4: memref<3x8x32xf32, #tpu.memory_space<vmem>>, %arg5: memref<128x128xbf16, #tpu.memory_space<vmem>>, %arg6: memref<32x128xbf16, #tpu.memory_space<vmem>>, %arg7: memref<1x128xf32, #tpu.memory_space<vmem>>, %arg8: memref<32x128xbf16, #tpu.memory_space<vmem>>, %arg9: memref<32x128xbf16, #tpu.memory_space<vmem>>, %arg10: memref<1x128xf32, #tpu.memory_space<vmem>>, %arg11: memref<32x128xbf16, #tpu.memory_space<vmem>>, %arg12: memref<32x128xbf16, #tpu.memory_space<vmem>>, %arg13: memref<1x128xf32, #tpu.memory_space<vmem>>, %arg14: memref<32x4xbf16, #tpu.memory_space<vmem>>, %arg15: memref<1x4xf32, #tpu.memory_space<vmem>>, %arg16: memref<8x4xf32, #tpu.memory_space<vmem>>, %arg17: memref<3x8x32xf32, #tpu.memory_space<vmem>>, %arg18: memref<3x8x32xf32, #tpu.memory_space<vmem>>, %arg19: memref<64x128xf32, #tpu.memory_space<vmem>>) attributes {dimension_semantics = [#tpu.dimension_semantics<parallel>], iteration_bounds = array<i64: 1>, scalar_prefetch = 0 : i64, scratch_operands = 1 : i64, tpu.core_type = #tpu.core_type<tc>, window_params = [{transform_indices = @transform_0, window_bounds = array<i64: 1, 64, 1>}, {pipeline_mode = #tpu.pipeline_mode<synchronous>, transform_indices = @transform_1, window_bounds = array<i64: 100, 128>}, {transform_indices = @transform_2, window_bounds = array<i64: 3, 8, 32>}, {transform_indices = @transform_3, window_bounds = array<i64: 3, 8, 32>}, {pipeline_mode = #tpu.pipeline_mode<synchronous>, transform_indices = @transform_4, window_bounds = array<i64: 128, 128>}, {pipeline_mode = #tpu.pipeline_mode<synchronous>, transform_indices = @transform_5, window_bounds = array<i64: 32, 128>}, {pipeline_mode = #tpu.pipeline_mode<synchronous>, transform_indices = @transform_6, window_bounds = array<i64: 1, 128>}, {pipeline_mode = #tpu.pipeline_mode<synchronous>, transform_indices = @transform_7, window_bounds = array<i64: 32, 128>}, {pipeline_mode = #tpu.pipeline_mode<synchronous>, transform_indices = @transform_8, window_bounds = array<i64: 32, 128>}, {pipeline_mode = #tpu.pipeline_mode<synchronous>, transform_indices = @transform_9, window_bounds = array<i64: 1, 128>}, {pipeline_mode = #tpu.pipeline_mode<synchronous>, transform_indices = @transform_10, window_bounds = array<i64: 32, 128>}, {pipeline_mode = #tpu.pipeline_mode<synchronous>, transform_indices = @transform_11, window_bounds = array<i64: 32, 128>}, {pipeline_mode = #tpu.pipeline_mode<synchronous>, transform_indices = @transform_12, window_bounds = array<i64: 1, 128>}, {pipeline_mode = #tpu.pipeline_mode<synchronous>, transform_indices = @transform_13, window_bounds = array<i64: 32, 4>}, {pipeline_mode = #tpu.pipeline_mode<synchronous>, transform_indices = @transform_14, window_bounds = array<i64: 1, 4>}, {transform_indices = @transform_15, window_bounds = array<i64: 8, 4>}, {transform_indices = @transform_16, window_bounds = array<i64: 3, 8, 32>}, {transform_indices = @transform_17, window_bounds = array<i64: 3, 8, 32>}]} {
    %c0 = arith.constant 0 : index
    %c0_0 = arith.constant 0 : index
    %c0_1 = arith.constant 0 : index
    %0 = vector.load %arg1[%c0, %c0_0, %c0_1] : memref<1x64x1xi32, #tpu.memory_space<vmem>>, vector<1x64x1xi32>
    %1 = vector.shape_cast %0 : vector<1x64x1xi32> to vector<64x1xi32>
    %2 = tpu.iota {dimensions = array<i32: 1>} : vector<64x100xi32>
    %3 = vector.broadcast %1 : vector<64x1xi32> to vector<64x100xi32>
    %4 = arith.cmpi eq, %3, %2 : vector<64x100xi32>
    %cst = arith.constant 1.000000e+00 : f32
    %cst_2 = arith.constant 0.000000e+00 : f32
    %5 = vector.broadcast %cst : f32 to vector<64x100xf32>
    %6 = vector.broadcast %cst_2 : f32 to vector<64x100xf32>
    %7 = arith.select %4, %5, %6 : vector<64x100xi1>, vector<64x100xf32>
    %8 = arith.truncf %7 : vector<64x100xf32> to vector<64x100xbf16>
    %c0_3 = arith.constant 0 : index
    %c0_4 = arith.constant 0 : index
    %9 = vector.load %arg2[%c0_3, %c0_4] : memref<100x128xf32, #tpu.memory_space<vmem>>, vector<100x128xf32>
    %10 = arith.truncf %9 : vector<100x128xf32> to vector<100x128xbf16>
    %cst_5 = arith.constant dense<0.000000e+00> : vector<64x128xf32>
    %11 = tpu.matmul %8, %10, %cst_5 {dimension_numbers = #tpu.dot_dimension_numbers<[1], [0], [0], [1], [0, 0, 1, 1], [], []>} : vector<64x100xbf16>, vector<100x128xbf16>, vector<64x128xf32> -> vector<64x128xf32>
    %12 = arith.truncf %11 : vector<64x128xf32> to vector<64x128xbf16>
    %c0_6 = arith.constant 0 : index
    %c0_7 = arith.constant 0 : index
    %13 = vector.load %arg5[%c0_6, %c0_7] : memref<128x128xbf16, #tpu.memory_space<vmem>>, vector<128x128xbf16>
    %cst_8 = arith.constant dense<0.000000e+00> : vector<64x128xf32>
    %14 = tpu.matmul %12, %13, %cst_8 {dimension_numbers = #tpu.dot_dimension_numbers<[1], [0], [0], [1], [0, 0, 1, 1], [], []>} : vector<64x128xbf16>, vector<128x128xbf16>, vector<64x128xf32> -> vector<64x128xf32>
    %c0_9 = arith.constant 0 : index
    %c0_10 = arith.constant 0 : index
    %15 = vector.load %arg7[%c0_9, %c0_10] : memref<1x128xf32, #tpu.memory_space<vmem>>, vector<1x128xf32>
    %16 = vector.broadcast %15 : vector<1x128xf32> to vector<64x128xf32>
    %17 = arith.addf %14, %16 : vector<64x128xf32>
    %c0_11 = arith.constant 0 : index
    %c0_12 = arith.constant 0 : index
    %18 = vector.load %arg19[%c0_11, %c0_12] : memref<64x128xf32, #tpu.memory_space<vmem>>, vector<64x128xf32>
    tpu.vector_store %arg19[%c0_11, %c0_12], %17 {strides = array<i32>} : memref<64x128xf32, #tpu.memory_space<vmem>>, vector<64x128xf32>,
    %19 = tpu.iota {dimensions = array<i32: 1>} : vector<8x128xi32>
    %c96_i32 = arith.constant 96 : i32
    %20 = vector.broadcast %c96_i32 : i32 to vector<8x128xi32>
    %21 = arith.cmpi slt, %19, %20 : vector<8x128xi32>
    %c0_13 = arith.constant 0 : index
    %c0_14 = arith.constant 0 : index
    %22 = vector.load %arg10[%c0_13, %c0_14] : memref<1x128xf32, #tpu.memory_space<vmem>>, vector<1x128xf32>
    %23 = vector.shape_cast %22 : vector<1x128xf32> to vector<1x128xf32>
    %24 = vector.broadcast %23 : vector<1x128xf32> to vector<8x128xf32>
    %c0_15 = arith.constant 0 : index
    %c0_16 = arith.constant 0 : index
    %25 = vector.load %arg13[%c0_15, %c0_16] : memref<1x128xf32, #tpu.memory_space<vmem>>, vector<1x128xf32>
    %26 = vector.shape_cast %25 : vector<1x128xf32> to vector<1x128xf32>
    %27 = vector.broadcast %26 : vector<1x128xf32> to vector<8x128xf32>
    %c0_17 = arith.constant 0 : index
    %c0_18 = arith.constant 0 : index
    %28 = vector.load %arg6[%c0_17, %c0_18] : memref<32x128xbf16, #tpu.memory_space<vmem>>, vector<32x128xbf16>
    %c0_19 = arith.constant 0 : index
    %c0_20 = arith.constant 0 : index
    %29 = vector.load %arg8[%c0_19, %c0_20] : memref<32x128xbf16, #tpu.memory_space<vmem>>, vector<32x128xbf16>
    %c0_21 = arith.constant 0 : index
    %c0_22 = arith.constant 0 : index
    %30 = vector.load %arg9[%c0_21, %c0_22] : memref<32x128xbf16, #tpu.memory_space<vmem>>, vector<32x128xbf16>
    %c0_23 = arith.constant 0 : index
    %c0_24 = arith.constant 0 : index
    %31 = vector.load %arg11[%c0_23, %c0_24] : memref<32x128xbf16, #tpu.memory_space<vmem>>, vector<32x128xbf16>
    %c0_25 = arith.constant 0 : index
    %c0_26 = arith.constant 0 : index
    %32 = vector.load %arg12[%c0_25, %c0_26] : memref<32x128xbf16, #tpu.memory_space<vmem>>, vector<32x128xbf16>
    %c0_27 = arith.constant 0 : index
    %c0_28 = arith.constant 0 : index
    %c0_29 = arith.constant 0 : index
    %33 = vector.load %arg3[%c0_27, %c0_28, %c0_29] : memref<3x8x32xf32, #tpu.memory_space<vmem>>, vector<1x8x32xf32>
    %34 = vector.shape_cast %33 : vector<1x8x32xf32> to vector<8x32xf32>
    %c0_30 = arith.constant 0 : index
    %c0_31 = arith.constant 0 : index
    %c0_32 = arith.constant 0 : index
    %35 = vector.load %arg4[%c0_30, %c0_31, %c0_32] : memref<3x8x32xf32, #tpu.memory_space<vmem>>, vector<1x8x32xf32>
    %36 = vector.shape_cast %35 : vector<1x8x32xf32> to vector<8x32xf32>
    %c1 = arith.constant 1 : index
    %c0_33 = arith.constant 0 : index
    %c0_34 = arith.constant 0 : index
    %37 = vector.load %arg3[%c1, %c0_33, %c0_34] : memref<3x8x32xf32, #tpu.memory_space<vmem>>, vector<1x8x32xf32>
    %38 = vector.shape_cast %37 : vector<1x8x32xf32> to vector<8x32xf32>
    %c1_35 = arith.constant 1 : index
    %c0_36 = arith.constant 0 : index
    %c0_37 = arith.constant 0 : index
    %39 = vector.load %arg4[%c1_35, %c0_36, %c0_37] : memref<3x8x32xf32, #tpu.memory_space<vmem>>, vector<1x8x32xf32>
    %40 = vector.shape_cast %39 : vector<1x8x32xf32> to vector<8x32xf32>
    %c2 = arith.constant 2 : index
    %c0_38 = arith.constant 0 : index
    %c0_39 = arith.constant 0 : index
    %41 = vector.load %arg3[%c2, %c0_38, %c0_39] : memref<3x8x32xf32, #tpu.memory_space<vmem>>, vector<1x8x32xf32>
    %42 = vector.shape_cast %41 : vector<1x8x32xf32> to vector<8x32xf32>
    %c2_40 = arith.constant 2 : index
    %c0_41 = arith.constant 0 : index
    %c0_42 = arith.constant 0 : index
    %43 = vector.load %arg4[%c2_40, %c0_41, %c0_42] : memref<3x8x32xf32, #tpu.memory_space<vmem>>, vector<1x8x32xf32>
    %44 = vector.shape_cast %43 : vector<1x8x32xf32> to vector<8x32xf32>
    %c0_43 = arith.constant 0 : index
    %c0_44 = arith.constant 0 : index
    %45 = vector.load %arg19[%c0_43, %c0_44] : memref<64x128xf32, #tpu.memory_space<vmem>>, vector<8x128xf32>
    %46 = arith.truncf %34 : vector<8x32xf32> to vector<8x32xbf16>
    %cst_45 = arith.constant dense<0.000000e+00> : vector<8x128xf32>
    %47 = tpu.matmul %46, %28, %cst_45 {dimension_numbers = #tpu.dot_dimension_numbers<[1], [0], [0], [1], [0, 0, 1, 1], [], []>} : vector<8x32xbf16>, vector<32x128xbf16>, vector<8x128xf32> -> vector<8x128xf32>
    %48 = arith.addf %45, %47 : vector<8x128xf32>
    %cst_46 = arith.constant 0.000000e+00 : f32
    %49 = vector.broadcast %cst_46 : f32 to vector<8x128xf32>
    %50 = arith.subf %49, %48 : vector<8x128xf32>
    %51 = math.exp %50 : vector<8x128xf32>
    %cst_47 = arith.constant 1.000000e+00 : f32
    %52 = vector.broadcast %cst_47 : f32 to vector<8x128xf32>
    %53 = arith.addf %52, %51 : vector<8x128xf32>
    %54 = tpu.reciprocal %53 {approx = true} : vector<8x128xf32> -> vector<8x128xf32>
    %55 = math.tanh %48 : vector<8x128xf32>
    %56 = arith.select %21, %54, %55 : vector<8x128xi1>, vector<8x128xf32>
    %57 = vector.extract_strided_slice %56 {offsets = [0, 0], sizes = [8, 32], strides = [1, 1]} : vector<8x128xf32> to vector<8x32xf32>
    %58 = vector.extract_strided_slice %56 {offsets = [0, 32], sizes = [8, 32], strides = [1, 1]} : vector<8x128xf32> to vector<8x32xf32>
    %59 = vector.extract_strided_slice %56 {offsets = [0, 64], sizes = [8, 32], strides = [1, 1]} : vector<8x128xf32> to vector<8x32xf32>
    %60 = vector.extract_strided_slice %56 {offsets = [0, 96], sizes = [8, 32], strides = [1, 1]} : vector<8x128xf32> to vector<8x32xf32>
    %61 = arith.mulf %58, %36 : vector<8x32xf32>
    %62 = arith.mulf %57, %60 : vector<8x32xf32>
    %63 = arith.addf %61, %62 : vector<8x32xf32>
    %64 = math.tanh %63 : vector<8x32xf32>
    %65 = arith.mulf %59, %64 : vector<8x32xf32>
    %66 = arith.truncf %65 : vector<8x32xf32> to vector<8x32xbf16>
    %cst_48 = arith.constant dense<0.000000e+00> : vector<8x128xf32>
    %67 = tpu.matmul %66, %29, %cst_48 {dimension_numbers = #tpu.dot_dimension_numbers<[1], [0], [0], [1], [0, 0, 1, 1], [], []>} : vector<8x32xbf16>, vector<32x128xbf16>, vector<8x128xf32> -> vector<8x128xf32>
    %68 = arith.truncf %38 : vector<8x32xf32> to vector<8x32xbf16>
    %cst_49 = arith.constant dense<0.000000e+00> : vector<8x128xf32>
    %69 = tpu.matmul %68, %30, %cst_49 {dimension_numbers = #tpu.dot_dimension_numbers<[1], [0], [0], [1], [0, 0, 1, 1], [], []>} : vector<8x32xbf16>, vector<32x128xbf16>, vector<8x128xf32> -> vector<8x128xf32>
    %70 = arith.addf %67, %69 : vector<8x128xf32>
    %71 = arith.addf %70, %24 : vector<8x128xf32>
    %cst_50 = arith.constant 0.000000e+00 : f32
    %72 = vector.broadcast %cst_50 : f32 to vector<8x128xf32>
    %73 = arith.subf %72, %71 : vector<8x128xf32>
    %74 = math.exp %73 : vector<8x128xf32>
    %cst_51 = arith.constant 1.000000e+00 : f32
    %75 = vector.broadcast %cst_51 : f32 to vector<8x128xf32>
    %76 = arith.addf %75, %74 : vector<8x128xf32>
    %77 = tpu.reciprocal %76 {approx = true} : vector<8x128xf32> -> vector<8x128xf32>
    %78 = math.tanh %71 : vector<8x128xf32>
    %79 = arith.select %21, %77, %78 : vector<8x128xi1>, vector<8x128xf32>
    %80 = vector.extract_strided_slice %79 {offsets = [0, 0], sizes = [8, 32], strides = [1, 1]} : vector<8x128xf32> to vector<8x32xf32>
    %81 = vector.extract_strided_slice %79 {offsets = [0, 32], sizes = [8, 32], strides = [1, 1]} : vector<8x128xf32> to vector<8x32xf32>
    %82 = vector.extract_strided_slice %79 {offsets = [0, 64], sizes = [8, 32], strides = [1, 1]} : vector<8x128xf32> to vector<8x32xf32>
    %83 = vector.extract_strided_slice %79 {offsets = [0, 96], sizes = [8, 32], strides = [1, 1]} : vector<8x128xf32> to vector<8x32xf32>
    %84 = arith.mulf %81, %40 : vector<8x32xf32>
    %85 = arith.mulf %80, %83 : vector<8x32xf32>
    %86 = arith.addf %84, %85 : vector<8x32xf32>
    %87 = math.tanh %86 : vector<8x32xf32>
    %88 = arith.mulf %82, %87 : vector<8x32xf32>
    %89 = arith.truncf %88 : vector<8x32xf32> to vector<8x32xbf16>
    %cst_52 = arith.constant dense<0.000000e+00> : vector<8x128xf32>
    %90 = tpu.matmul %89, %31, %cst_52 {dimension_numbers = #tpu.dot_dimension_numbers<[1], [0], [0], [1], [0, 0, 1, 1], [], []>} : vector<8x32xbf16>, vector<32x128xbf16>, vector<8x128xf32> -> vector<8x128xf32>
    %91 = arith.truncf %42 : vector<8x32xf32> to vector<8x32xbf16>
    %cst_53 = arith.constant dense<0.000000e+00> : vector<8x128xf32>
    %92 = tpu.matmul %91, %32, %cst_53 {dimension_numbers = #tpu.dot_dimension_numbers<[1], [0], [0], [1], [0, 0, 1, 1], [], []>} : vector<8x32xbf16>, vector<32x128xbf16>, vector<8x128xf32> -> vector<8x128xf32>
    %93 = arith.addf %90, %92 : vector<8x128xf32>
    %94 = arith.addf %93, %27 : vector<8x128xf32>
    %cst_54 = arith.constant 0.000000e+00 : f32
    %95 = vector.broadcast %cst_54 : f32 to vector<8x128xf32>
    %96 = arith.subf %95, %94 : vector<8x128xf32>
    %97 = math.exp %96 : vector<8x128xf32>
    %cst_55 = arith.constant 1.000000e+00 : f32
    %98 = vector.broadcast %cst_55 : f32 to vector<8x128xf32>
    %99 = arith.addf %98, %97 : vector<8x128xf32>
    %100 = tpu.reciprocal %99 {approx = true} : vector<8x128xf32> -> vector<8x128xf32>
    %101 = math.tanh %94 : vector<8x128xf32>
    %102 = arith.select %21, %100, %101 : vector<8x128xi1>, vector<8x128xf32>
    %103 = vector.extract_strided_slice %102 {offsets = [0, 0], sizes = [8, 32], strides = [1, 1]} : vector<8x128xf32> to vector<8x32xf32>
    %104 = vector.extract_strided_slice %102 {offsets = [0, 32], sizes = [8, 32], strides = [1, 1]} : vector<8x128xf32> to vector<8x32xf32>
    %105 = vector.extract_strided_slice %102 {offsets = [0, 64], sizes = [8, 32], strides = [1, 1]} : vector<8x128xf32> to vector<8x32xf32>
    %106 = vector.extract_strided_slice %102 {offsets = [0, 96], sizes = [8, 32], strides = [1, 1]} : vector<8x128xf32> to vector<8x32xf32>
    %107 = arith.mulf %104, %44 : vector<8x32xf32>
    %108 = arith.mulf %103, %106 : vector<8x32xf32>
    %109 = arith.addf %107, %108 : vector<8x32xf32>
    %110 = math.tanh %109 : vector<8x32xf32>
    %111 = arith.mulf %105, %110 : vector<8x32xf32>
    %c8 = arith.constant 8 : index
    %c0_56 = arith.constant 0 : index
    %112 = vector.load %arg19[%c8, %c0_56] : memref<64x128xf32, #tpu.memory_space<vmem>>, vector<8x128xf32>
    %113 = arith.truncf %65 : vector<8x32xf32> to vector<8x32xbf16>
    %cst_57 = arith.constant dense<0.000000e+00> : vector<8x128xf32>
    %114 = tpu.matmul %113, %28, %cst_57 {dimension_numbers = #tpu.dot_dimension_numbers<[1], [0], [0], [1], [0, 0, 1, 1], [], []>} : vector<8x32xbf16>, vector<32x128xbf16>, vector<8x128xf32> -> vector<8x128xf32>
    %115 = arith.addf %112, %114 : vector<8x128xf32>
    %cst_58 = arith.constant 0.000000e+00 : f32
    %116 = vector.broadcast %cst_58 : f32 to vector<8x128xf32>
    %117 = arith.subf %116, %115 : vector<8x128xf32>
    %118 = math.exp %117 : vector<8x128xf32>
    %cst_59 = arith.constant 1.000000e+00 : f32
    %119 = vector.broadcast %cst_59 : f32 to vector<8x128xf32>
    %120 = arith.addf %119, %118 : vector<8x128xf32>
    %121 = tpu.reciprocal %120 {approx = true} : vector<8x128xf32> -> vector<8x128xf32>
    %122 = math.tanh %115 : vector<8x128xf32>
    %123 = arith.select %21, %121, %122 : vector<8x128xi1>, vector<8x128xf32>
    %124 = vector.extract_strided_slice %123 {offsets = [0, 0], sizes = [8, 32], strides = [1, 1]} : vector<8x128xf32> to vector<8x32xf32>
    %125 = vector.extract_strided_slice %123 {offsets = [0, 32], sizes = [8, 32], strides = [1, 1]} : vector<8x128xf32> to vector<8x32xf32>
    %126 = vector.extract_strided_slice %123 {offsets = [0, 64], sizes = [8, 32], strides = [1, 1]} : vector<8x128xf32> to vector<8x32xf32>
    %127 = vector.extract_strided_slice %123 {offsets = [0, 96], sizes = [8, 32], strides = [1, 1]} : vector<8x128xf32> to vector<8x32xf32>
    %128 = arith.mulf %125, %63 : vector<8x32xf32>
    %129 = arith.mulf %124, %127 : vector<8x32xf32>
    %130 = arith.addf %128, %129 : vector<8x32xf32>
    %131 = math.tanh %130 : vector<8x32xf32>
    %132 = arith.mulf %126, %131 : vector<8x32xf32>
    %133 = arith.truncf %132 : vector<8x32xf32> to vector<8x32xbf16>
    %cst_60 = arith.constant dense<0.000000e+00> : vector<8x128xf32>
    %134 = tpu.matmul %133, %29, %cst_60 {dimension_numbers = #tpu.dot_dimension_numbers<[1], [0], [0], [1], [0, 0, 1, 1], [], []>} : vector<8x32xbf16>, vector<32x128xbf16>, vector<8x128xf32> -> vector<8x128xf32>
    %135 = arith.truncf %88 : vector<8x32xf32> to vector<8x32xbf16>
    %cst_61 = arith.constant dense<0.000000e+00> : vector<8x128xf32>
    %136 = tpu.matmul %135, %30, %cst_61 {dimension_numbers = #tpu.dot_dimension_numbers<[1], [0], [0], [1], [0, 0, 1, 1], [], []>} : vector<8x32xbf16>, vector<32x128xbf16>, vector<8x128xf32> -> vector<8x128xf32>
    %137 = arith.addf %134, %136 : vector<8x128xf32>
    %138 = arith.addf %137, %24 : vector<8x128xf32>
    %cst_62 = arith.constant 0.000000e+00 : f32
    %139 = vector.broadcast %cst_62 : f32 to vector<8x128xf32>
    %140 = arith.subf %139, %138 : vector<8x128xf32>
    %141 = math.exp %140 : vector<8x128xf32>
    %cst_63 = arith.constant 1.000000e+00 : f32
    %142 = vector.broadcast %cst_63 : f32 to vector<8x128xf32>
    %143 = arith.addf %142, %141 : vector<8x128xf32>
    %144 = tpu.reciprocal %143 {approx = true} : vector<8x128xf32> -> vector<8x128xf32>
    %145 = math.tanh %138 : vector<8x128xf32>
    %146 = arith.select %21, %144, %145 : vector<8x128xi1>, vector<8x128xf32>
    %147 = vector.extract_strided_slice %146 {offsets = [0, 0], sizes = [8, 32], strides = [1, 1]} : vector<8x128xf32> to vector<8x32xf32>
    %148 = vector.extract_strided_slice %146 {offsets = [0, 32], sizes = [8, 32], strides = [1, 1]} : vector<8x128xf32> to vector<8x32xf32>
    %149 = vector.extract_strided_slice %146 {offsets = [0, 64], sizes = [8, 32], strides = [1, 1]} : vector<8x128xf32> to vector<8x32xf32>
    %150 = vector.extract_strided_slice %146 {offsets = [0, 96], sizes = [8, 32], strides = [1, 1]} : vector<8x128xf32> to vector<8x32xf32>
    %151 = arith.mulf %148, %86 : vector<8x32xf32>
    %152 = arith.mulf %147, %150 : vector<8x32xf32>
    %153 = arith.addf %151, %152 : vector<8x32xf32>
    %154 = math.tanh %153 : vector<8x32xf32>
    %155 = arith.mulf %149, %154 : vector<8x32xf32>
    %156 = arith.truncf %155 : vector<8x32xf32> to vector<8x32xbf16>
    %cst_64 = arith.constant dense<0.000000e+00> : vector<8x128xf32>
    %157 = tpu.matmul %156, %31, %cst_64 {dimension_numbers = #tpu.dot_dimension_numbers<[1], [0], [0], [1], [0, 0, 1, 1], [], []>} : vector<8x32xbf16>, vector<32x128xbf16>, vector<8x128xf32> -> vector<8x128xf32>
    %158 = arith.truncf %111 : vector<8x32xf32> to vector<8x32xbf16>
    %cst_65 = arith.constant dense<0.000000e+00> : vector<8x128xf32>
    %159 = tpu.matmul %158, %32, %cst_65 {dimension_numbers = #tpu.dot_dimension_numbers<[1], [0], [0], [1], [0, 0, 1, 1], [], []>} : vector<8x32xbf16>, vector<32x128xbf16>, vector<8x128xf32> -> vector<8x128xf32>
    %160 = arith.addf %157, %159 : vector<8x128xf32>
    %161 = arith.addf %160, %27 : vector<8x128xf32>
    %cst_66 = arith.constant 0.000000e+00 : f32
    %162 = vector.broadcast %cst_66 : f32 to vector<8x128xf32>
    %163 = arith.subf %162, %161 : vector<8x128xf32>
    %164 = math.exp %163 : vector<8x128xf32>
    %cst_67 = arith.constant 1.000000e+00 : f32
    %165 = vector.broadcast %cst_67 : f32 to vector<8x128xf32>
    %166 = arith.addf %165, %164 : vector<8x128xf32>
    %167 = tpu.reciprocal %166 {approx = true} : vector<8x128xf32> -> vector<8x128xf32>
    %168 = math.tanh %161 : vector<8x128xf32>
    %169 = arith.select %21, %167, %168 : vector<8x128xi1>, vector<8x128xf32>
    %170 = vector.extract_strided_slice %169 {offsets = [0, 0], sizes = [8, 32], strides = [1, 1]} : vector<8x128xf32> to vector<8x32xf32>
    %171 = vector.extract_strided_slice %169 {offsets = [0, 32], sizes = [8, 32], strides = [1, 1]} : vector<8x128xf32> to vector<8x32xf32>
    %172 = vector.extract_strided_slice %169 {offsets = [0, 64], sizes = [8, 32], strides = [1, 1]} : vector<8x128xf32> to vector<8x32xf32>
    %173 = vector.extract_strided_slice %169 {offsets = [0, 96], sizes = [8, 32], strides = [1, 1]} : vector<8x128xf32> to vector<8x32xf32>
    %174 = arith.mulf %171, %109 : vector<8x32xf32>
    %175 = arith.mulf %170, %173 : vector<8x32xf32>
    %176 = arith.addf %174, %175 : vector<8x32xf32>
    %177 = math.tanh %176 : vector<8x32xf32>
    %178 = arith.mulf %172, %177 : vector<8x32xf32>
    %c16 = arith.constant 16 : index
    %c0_68 = arith.constant 0 : index
    %179 = vector.load %arg19[%c16, %c0_68] : memref<64x128xf32, #tpu.memory_space<vmem>>, vector<8x128xf32>
    %180 = arith.truncf %132 : vector<8x32xf32> to vector<8x32xbf16>
    %cst_69 = arith.constant dense<0.000000e+00> : vector<8x128xf32>
    %181 = tpu.matmul %180, %28, %cst_69 {dimension_numbers = #tpu.dot_dimension_numbers<[1], [0], [0], [1], [0, 0, 1, 1], [], []>} : vector<8x32xbf16>, vector<32x128xbf16>, vector<8x128xf32> -> vector<8x128xf32>
    %182 = arith.addf %179, %181 : vector<8x128xf32>
    %cst_70 = arith.constant 0.000000e+00 : f32
    %183 = vector.broadcast %cst_70 : f32 to vector<8x128xf32>
    %184 = arith.subf %183, %182 : vector<8x128xf32>
    %185 = math.exp %184 : vector<8x128xf32>
    %cst_71 = arith.constant 1.000000e+00 : f32
    %186 = vector.broadcast %cst_71 : f32 to vector<8x128xf32>
    %187 = arith.addf %186, %185 : vector<8x128xf32>
    %188 = tpu.reciprocal %187 {approx = true} : vector<8x128xf32> -> vector<8x128xf32>
    %189 = math.tanh %182 : vector<8x128xf32>
    %190 = arith.select %21, %188, %189 : vector<8x128xi1>, vector<8x128xf32>
    %191 = vector.extract_strided_slice %190 {offsets = [0, 0], sizes = [8, 32], strides = [1, 1]} : vector<8x128xf32> to vector<8x32xf32>
    %192 = vector.extract_strided_slice %190 {offsets = [0, 32], sizes = [8, 32], strides = [1, 1]} : vector<8x128xf32> to vector<8x32xf32>
    %193 = vector.extract_strided_slice %190 {offsets = [0, 64], sizes = [8, 32], strides = [1, 1]} : vector<8x128xf32> to vector<8x32xf32>
    %194 = vector.extract_strided_slice %190 {offsets = [0, 96], sizes = [8, 32], strides = [1, 1]} : vector<8x128xf32> to vector<8x32xf32>
    %195 = arith.mulf %192, %130 : vector<8x32xf32>
    %196 = arith.mulf %191, %194 : vector<8x32xf32>
    %197 = arith.addf %195, %196 : vector<8x32xf32>
    %198 = math.tanh %197 : vector<8x32xf32>
    %199 = arith.mulf %193, %198 : vector<8x32xf32>
    %200 = arith.truncf %199 : vector<8x32xf32> to vector<8x32xbf16>
    %cst_72 = arith.constant dense<0.000000e+00> : vector<8x128xf32>
    %201 = tpu.matmul %200, %29, %cst_72 {dimension_numbers = #tpu.dot_dimension_numbers<[1], [0], [0], [1], [0, 0, 1, 1], [], []>} : vector<8x32xbf16>, vector<32x128xbf16>, vector<8x128xf32> -> vector<8x128xf32>
    %202 = arith.truncf %155 : vector<8x32xf32> to vector<8x32xbf16>
    %cst_73 = arith.constant dense<0.000000e+00> : vector<8x128xf32>
    %203 = tpu.matmul %202, %30, %cst_73 {dimension_numbers = #tpu.dot_dimension_numbers<[1], [0], [0], [1], [0, 0, 1, 1], [], []>} : vector<8x32xbf16>, vector<32x128xbf16>, vector<8x128xf32> -> vector<8x128xf32>
    %204 = arith.addf %201, %203 : vector<8x128xf32>
    %205 = arith.addf %204, %24 : vector<8x128xf32>
    %cst_74 = arith.constant 0.000000e+00 : f32
    %206 = vector.broadcast %cst_74 : f32 to vector<8x128xf32>
    %207 = arith.subf %206, %205 : vector<8x128xf32>
    %208 = math.exp %207 : vector<8x128xf32>
    %cst_75 = arith.constant 1.000000e+00 : f32
    %209 = vector.broadcast %cst_75 : f32 to vector<8x128xf32>
    %210 = arith.addf %209, %208 : vector<8x128xf32>
    %211 = tpu.reciprocal %210 {approx = true} : vector<8x128xf32> -> vector<8x128xf32>
    %212 = math.tanh %205 : vector<8x128xf32>
    %213 = arith.select %21, %211, %212 : vector<8x128xi1>, vector<8x128xf32>
    %214 = vector.extract_strided_slice %213 {offsets = [0, 0], sizes = [8, 32], strides = [1, 1]} : vector<8x128xf32> to vector<8x32xf32>
    %215 = vector.extract_strided_slice %213 {offsets = [0, 32], sizes = [8, 32], strides = [1, 1]} : vector<8x128xf32> to vector<8x32xf32>
    %216 = vector.extract_strided_slice %213 {offsets = [0, 64], sizes = [8, 32], strides = [1, 1]} : vector<8x128xf32> to vector<8x32xf32>
    %217 = vector.extract_strided_slice %213 {offsets = [0, 96], sizes = [8, 32], strides = [1, 1]} : vector<8x128xf32> to vector<8x32xf32>
    %218 = arith.mulf %215, %153 : vector<8x32xf32>
    %219 = arith.mulf %214, %217 : vector<8x32xf32>
    %220 = arith.addf %218, %219 : vector<8x32xf32>
    %221 = math.tanh %220 : vector<8x32xf32>
    %222 = arith.mulf %216, %221 : vector<8x32xf32>
    %223 = arith.truncf %222 : vector<8x32xf32> to vector<8x32xbf16>
    %cst_76 = arith.constant dense<0.000000e+00> : vector<8x128xf32>
    %224 = tpu.matmul %223, %31, %cst_76 {dimension_numbers = #tpu.dot_dimension_numbers<[1], [0], [0], [1], [0, 0, 1, 1], [], []>} : vector<8x32xbf16>, vector<32x128xbf16>, vector<8x128xf32> -> vector<8x128xf32>
    %225 = arith.truncf %178 : vector<8x32xf32> to vector<8x32xbf16>
    %cst_77 = arith.constant dense<0.000000e+00> : vector<8x128xf32>
    %226 = tpu.matmul %225, %32, %cst_77 {dimension_numbers = #tpu.dot_dimension_numbers<[1], [0], [0], [1], [0, 0, 1, 1], [], []>} : vector<8x32xbf16>, vector<32x128xbf16>, vector<8x128xf32> -> vector<8x128xf32>
    %227 = arith.addf %224, %226 : vector<8x128xf32>
    %228 = arith.addf %227, %27 : vector<8x128xf32>
    %cst_78 = arith.constant 0.000000e+00 : f32
    %229 = vector.broadcast %cst_78 : f32 to vector<8x128xf32>
    %230 = arith.subf %229, %228 : vector<8x128xf32>
    %231 = math.exp %230 : vector<8x128xf32>
    %cst_79 = arith.constant 1.000000e+00 : f32
    %232 = vector.broadcast %cst_79 : f32 to vector<8x128xf32>
    %233 = arith.addf %232, %231 : vector<8x128xf32>
    %234 = tpu.reciprocal %233 {approx = true} : vector<8x128xf32> -> vector<8x128xf32>
    %235 = math.tanh %228 : vector<8x128xf32>
    %236 = arith.select %21, %234, %235 : vector<8x128xi1>, vector<8x128xf32>
    %237 = vector.extract_strided_slice %236 {offsets = [0, 0], sizes = [8, 32], strides = [1, 1]} : vector<8x128xf32> to vector<8x32xf32>
    %238 = vector.extract_strided_slice %236 {offsets = [0, 32], sizes = [8, 32], strides = [1, 1]} : vector<8x128xf32> to vector<8x32xf32>
    %239 = vector.extract_strided_slice %236 {offsets = [0, 64], sizes = [8, 32], strides = [1, 1]} : vector<8x128xf32> to vector<8x32xf32>
    %240 = vector.extract_strided_slice %236 {offsets = [0, 96], sizes = [8, 32], strides = [1, 1]} : vector<8x128xf32> to vector<8x32xf32>
    %241 = arith.mulf %238, %176 : vector<8x32xf32>
    %242 = arith.mulf %237, %240 : vector<8x32xf32>
    %243 = arith.addf %241, %242 : vector<8x32xf32>
    %244 = math.tanh %243 : vector<8x32xf32>
    %245 = arith.mulf %239, %244 : vector<8x32xf32>
    %c24 = arith.constant 24 : index
    %c0_80 = arith.constant 0 : index
    %246 = vector.load %arg19[%c24, %c0_80] : memref<64x128xf32, #tpu.memory_space<vmem>>, vector<8x128xf32>
    %247 = arith.truncf %199 : vector<8x32xf32> to vector<8x32xbf16>
    %cst_81 = arith.constant dense<0.000000e+00> : vector<8x128xf32>
    %248 = tpu.matmul %247, %28, %cst_81 {dimension_numbers = #tpu.dot_dimension_numbers<[1], [0], [0], [1], [0, 0, 1, 1], [], []>} : vector<8x32xbf16>, vector<32x128xbf16>, vector<8x128xf32> -> vector<8x128xf32>
    %249 = arith.addf %246, %248 : vector<8x128xf32>
    %cst_82 = arith.constant 0.000000e+00 : f32
    %250 = vector.broadcast %cst_82 : f32 to vector<8x128xf32>
    %251 = arith.subf %250, %249 : vector<8x128xf32>
    %252 = math.exp %251 : vector<8x128xf32>
    %cst_83 = arith.constant 1.000000e+00 : f32
    %253 = vector.broadcast %cst_83 : f32 to vector<8x128xf32>
    %254 = arith.addf %253, %252 : vector<8x128xf32>
    %255 = tpu.reciprocal %254 {approx = true} : vector<8x128xf32> -> vector<8x128xf32>
    %256 = math.tanh %249 : vector<8x128xf32>
    %257 = arith.select %21, %255, %256 : vector<8x128xi1>, vector<8x128xf32>
    %258 = vector.extract_strided_slice %257 {offsets = [0, 0], sizes = [8, 32], strides = [1, 1]} : vector<8x128xf32> to vector<8x32xf32>
    %259 = vector.extract_strided_slice %257 {offsets = [0, 32], sizes = [8, 32], strides = [1, 1]} : vector<8x128xf32> to vector<8x32xf32>
    %260 = vector.extract_strided_slice %257 {offsets = [0, 64], sizes = [8, 32], strides = [1, 1]} : vector<8x128xf32> to vector<8x32xf32>
    %261 = vector.extract_strided_slice %257 {offsets = [0, 96], sizes = [8, 32], strides = [1, 1]} : vector<8x128xf32> to vector<8x32xf32>
    %262 = arith.mulf %259, %197 : vector<8x32xf32>
    %263 = arith.mulf %258, %261 : vector<8x32xf32>
    %264 = arith.addf %262, %263 : vector<8x32xf32>
    %265 = math.tanh %264 : vector<8x32xf32>
    %266 = arith.mulf %260, %265 : vector<8x32xf32>
    %267 = arith.truncf %266 : vector<8x32xf32> to vector<8x32xbf16>
    %cst_84 = arith.constant dense<0.000000e+00> : vector<8x128xf32>
    %268 = tpu.matmul %267, %29, %cst_84 {dimension_numbers = #tpu.dot_dimension_numbers<[1], [0], [0], [1], [0, 0, 1, 1], [], []>} : vector<8x32xbf16>, vector<32x128xbf16>, vector<8x128xf32> -> vector<8x128xf32>
    %269 = arith.truncf %222 : vector<8x32xf32> to vector<8x32xbf16>
    %cst_85 = arith.constant dense<0.000000e+00> : vector<8x128xf32>
    %270 = tpu.matmul %269, %30, %cst_85 {dimension_numbers = #tpu.dot_dimension_numbers<[1], [0], [0], [1], [0, 0, 1, 1], [], []>} : vector<8x32xbf16>, vector<32x128xbf16>, vector<8x128xf32> -> vector<8x128xf32>
    %271 = arith.addf %268, %270 : vector<8x128xf32>
    %272 = arith.addf %271, %24 : vector<8x128xf32>
    %cst_86 = arith.constant 0.000000e+00 : f32
    %273 = vector.broadcast %cst_86 : f32 to vector<8x128xf32>
    %274 = arith.subf %273, %272 : vector<8x128xf32>
    %275 = math.exp %274 : vector<8x128xf32>
    %cst_87 = arith.constant 1.000000e+00 : f32
    %276 = vector.broadcast %cst_87 : f32 to vector<8x128xf32>
    %277 = arith.addf %276, %275 : vector<8x128xf32>
    %278 = tpu.reciprocal %277 {approx = true} : vector<8x128xf32> -> vector<8x128xf32>
    %279 = math.tanh %272 : vector<8x128xf32>
    %280 = arith.select %21, %278, %279 : vector<8x128xi1>, vector<8x128xf32>
    %281 = vector.extract_strided_slice %280 {offsets = [0, 0], sizes = [8, 32], strides = [1, 1]} : vector<8x128xf32> to vector<8x32xf32>
    %282 = vector.extract_strided_slice %280 {offsets = [0, 32], sizes = [8, 32], strides = [1, 1]} : vector<8x128xf32> to vector<8x32xf32>
    %283 = vector.extract_strided_slice %280 {offsets = [0, 64], sizes = [8, 32], strides = [1, 1]} : vector<8x128xf32> to vector<8x32xf32>
    %284 = vector.extract_strided_slice %280 {offsets = [0, 96], sizes = [8, 32], strides = [1, 1]} : vector<8x128xf32> to vector<8x32xf32>
    %285 = arith.mulf %282, %220 : vector<8x32xf32>
    %286 = arith.mulf %281, %284 : vector<8x32xf32>
    %287 = arith.addf %285, %286 : vector<8x32xf32>
    %288 = math.tanh %287 : vector<8x32xf32>
    %289 = arith.mulf %283, %288 : vector<8x32xf32>
    %290 = arith.truncf %289 : vector<8x32xf32> to vector<8x32xbf16>
    %cst_88 = arith.constant dense<0.000000e+00> : vector<8x128xf32>
    %291 = tpu.matmul %290, %31, %cst_88 {dimension_numbers = #tpu.dot_dimension_numbers<[1], [0], [0], [1], [0, 0, 1, 1], [], []>} : vector<8x32xbf16>, vector<32x128xbf16>, vector<8x128xf32> -> vector<8x128xf32>
    %292 = arith.truncf %245 : vector<8x32xf32> to vector<8x32xbf16>
    %cst_89 = arith.constant dense<0.000000e+00> : vector<8x128xf32>
    %293 = tpu.matmul %292, %32, %cst_89 {dimension_numbers = #tpu.dot_dimension_numbers<[1], [0], [0], [1], [0, 0, 1, 1], [], []>} : vector<8x32xbf16>, vector<32x128xbf16>, vector<8x128xf32> -> vector<8x128xf32>
    %294 = arith.addf %291, %293 : vector<8x128xf32>
    %295 = arith.addf %294, %27 : vector<8x128xf32>
    %cst_90 = arith.constant 0.000000e+00 : f32
    %296 = vector.broadcast %cst_90 : f32 to vector<8x128xf32>
    %297 = arith.subf %296, %295 : vector<8x128xf32>
    %298 = math.exp %297 : vector<8x128xf32>
    %cst_91 = arith.constant 1.000000e+00 : f32
    %299 = vector.broadcast %cst_91 : f32 to vector<8x128xf32>
    %300 = arith.addf %299, %298 : vector<8x128xf32>
    %301 = tpu.reciprocal %300 {approx = true} : vector<8x128xf32> -> vector<8x128xf32>
    %302 = math.tanh %295 : vector<8x128xf32>
    %303 = arith.select %21, %301, %302 : vector<8x128xi1>, vector<8x128xf32>
    %304 = vector.extract_strided_slice %303 {offsets = [0, 0], sizes = [8, 32], strides = [1, 1]} : vector<8x128xf32> to vector<8x32xf32>
    %305 = vector.extract_strided_slice %303 {offsets = [0, 32], sizes = [8, 32], strides = [1, 1]} : vector<8x128xf32> to vector<8x32xf32>
    %306 = vector.extract_strided_slice %303 {offsets = [0, 64], sizes = [8, 32], strides = [1, 1]} : vector<8x128xf32> to vector<8x32xf32>
    %307 = vector.extract_strided_slice %303 {offsets = [0, 96], sizes = [8, 32], strides = [1, 1]} : vector<8x128xf32> to vector<8x32xf32>
    %308 = arith.mulf %305, %243 : vector<8x32xf32>
    %309 = arith.mulf %304, %307 : vector<8x32xf32>
    %310 = arith.addf %308, %309 : vector<8x32xf32>
    %311 = math.tanh %310 : vector<8x32xf32>
    %312 = arith.mulf %306, %311 : vector<8x32xf32>
    %c32 = arith.constant 32 : index
    %c0_92 = arith.constant 0 : index
    %313 = vector.load %arg19[%c32, %c0_92] : memref<64x128xf32, #tpu.memory_space<vmem>>, vector<8x128xf32>
    %314 = arith.truncf %266 : vector<8x32xf32> to vector<8x32xbf16>
    %cst_93 = arith.constant dense<0.000000e+00> : vector<8x128xf32>
    %315 = tpu.matmul %314, %28, %cst_93 {dimension_numbers = #tpu.dot_dimension_numbers<[1], [0], [0], [1], [0, 0, 1, 1], [], []>} : vector<8x32xbf16>, vector<32x128xbf16>, vector<8x128xf32> -> vector<8x128xf32>
    %316 = arith.addf %313, %315 : vector<8x128xf32>
    %cst_94 = arith.constant 0.000000e+00 : f32
    %317 = vector.broadcast %cst_94 : f32 to vector<8x128xf32>
    %318 = arith.subf %317, %316 : vector<8x128xf32>
    %319 = math.exp %318 : vector<8x128xf32>
    %cst_95 = arith.constant 1.000000e+00 : f32
    %320 = vector.broadcast %cst_95 : f32 to vector<8x128xf32>
    %321 = arith.addf %320, %319 : vector<8x128xf32>
    %322 = tpu.reciprocal %321 {approx = true} : vector<8x128xf32> -> vector<8x128xf32>
    %323 = math.tanh %316 : vector<8x128xf32>
    %324 = arith.select %21, %322, %323 : vector<8x128xi1>, vector<8x128xf32>
    %325 = vector.extract_strided_slice %324 {offsets = [0, 0], sizes = [8, 32], strides = [1, 1]} : vector<8x128xf32> to vector<8x32xf32>
    %326 = vector.extract_strided_slice %324 {offsets = [0, 32], sizes = [8, 32], strides = [1, 1]} : vector<8x128xf32> to vector<8x32xf32>
    %327 = vector.extract_strided_slice %324 {offsets = [0, 64], sizes = [8, 32], strides = [1, 1]} : vector<8x128xf32> to vector<8x32xf32>
    %328 = vector.extract_strided_slice %324 {offsets = [0, 96], sizes = [8, 32], strides = [1, 1]} : vector<8x128xf32> to vector<8x32xf32>
    %329 = arith.mulf %326, %264 : vector<8x32xf32>
    %330 = arith.mulf %325, %328 : vector<8x32xf32>
    %331 = arith.addf %329, %330 : vector<8x32xf32>
    %332 = math.tanh %331 : vector<8x32xf32>
    %333 = arith.mulf %327, %332 : vector<8x32xf32>
    %334 = arith.truncf %333 : vector<8x32xf32> to vector<8x32xbf16>
    %cst_96 = arith.constant dense<0.000000e+00> : vector<8x128xf32>
    %335 = tpu.matmul %334, %29, %cst_96 {dimension_numbers = #tpu.dot_dimension_numbers<[1], [0], [0], [1], [0, 0, 1, 1], [], []>} : vector<8x32xbf16>, vector<32x128xbf16>, vector<8x128xf32> -> vector<8x128xf32>
    %336 = arith.truncf %289 : vector<8x32xf32> to vector<8x32xbf16>
    %cst_97 = arith.constant dense<0.000000e+00> : vector<8x128xf32>
    %337 = tpu.matmul %336, %30, %cst_97 {dimension_numbers = #tpu.dot_dimension_numbers<[1], [0], [0], [1], [0, 0, 1, 1], [], []>} : vector<8x32xbf16>, vector<32x128xbf16>, vector<8x128xf32> -> vector<8x128xf32>
    %338 = arith.addf %335, %337 : vector<8x128xf32>
    %339 = arith.addf %338, %24 : vector<8x128xf32>
    %cst_98 = arith.constant 0.000000e+00 : f32
    %340 = vector.broadcast %cst_98 : f32 to vector<8x128xf32>
    %341 = arith.subf %340, %339 : vector<8x128xf32>
    %342 = math.exp %341 : vector<8x128xf32>
    %cst_99 = arith.constant 1.000000e+00 : f32
    %343 = vector.broadcast %cst_99 : f32 to vector<8x128xf32>
    %344 = arith.addf %343, %342 : vector<8x128xf32>
    %345 = tpu.reciprocal %344 {approx = true} : vector<8x128xf32> -> vector<8x128xf32>
    %346 = math.tanh %339 : vector<8x128xf32>
    %347 = arith.select %21, %345, %346 : vector<8x128xi1>, vector<8x128xf32>
    %348 = vector.extract_strided_slice %347 {offsets = [0, 0], sizes = [8, 32], strides = [1, 1]} : vector<8x128xf32> to vector<8x32xf32>
    %349 = vector.extract_strided_slice %347 {offsets = [0, 32], sizes = [8, 32], strides = [1, 1]} : vector<8x128xf32> to vector<8x32xf32>
    %350 = vector.extract_strided_slice %347 {offsets = [0, 64], sizes = [8, 32], strides = [1, 1]} : vector<8x128xf32> to vector<8x32xf32>
    %351 = vector.extract_strided_slice %347 {offsets = [0, 96], sizes = [8, 32], strides = [1, 1]} : vector<8x128xf32> to vector<8x32xf32>
    %352 = arith.mulf %349, %287 : vector<8x32xf32>
    %353 = arith.mulf %348, %351 : vector<8x32xf32>
    %354 = arith.addf %352, %353 : vector<8x32xf32>
    %355 = math.tanh %354 : vector<8x32xf32>
    %356 = arith.mulf %350, %355 : vector<8x32xf32>
    %357 = arith.truncf %356 : vector<8x32xf32> to vector<8x32xbf16>
    %cst_100 = arith.constant dense<0.000000e+00> : vector<8x128xf32>
    %358 = tpu.matmul %357, %31, %cst_100 {dimension_numbers = #tpu.dot_dimension_numbers<[1], [0], [0], [1], [0, 0, 1, 1], [], []>} : vector<8x32xbf16>, vector<32x128xbf16>, vector<8x128xf32> -> vector<8x128xf32>
    %359 = arith.truncf %312 : vector<8x32xf32> to vector<8x32xbf16>
    %cst_101 = arith.constant dense<0.000000e+00> : vector<8x128xf32>
    %360 = tpu.matmul %359, %32, %cst_101 {dimension_numbers = #tpu.dot_dimension_numbers<[1], [0], [0], [1], [0, 0, 1, 1], [], []>} : vector<8x32xbf16>, vector<32x128xbf16>, vector<8x128xf32> -> vector<8x128xf32>
    %361 = arith.addf %358, %360 : vector<8x128xf32>
    %362 = arith.addf %361, %27 : vector<8x128xf32>
    %cst_102 = arith.constant 0.000000e+00 : f32
    %363 = vector.broadcast %cst_102 : f32 to vector<8x128xf32>
    %364 = arith.subf %363, %362 : vector<8x128xf32>
    %365 = math.exp %364 : vector<8x128xf32>
    %cst_103 = arith.constant 1.000000e+00 : f32
    %366 = vector.broadcast %cst_103 : f32 to vector<8x128xf32>
    %367 = arith.addf %366, %365 : vector<8x128xf32>
    %368 = tpu.reciprocal %367 {approx = true} : vector<8x128xf32> -> vector<8x128xf32>
    %369 = math.tanh %362 : vector<8x128xf32>
    %370 = arith.select %21, %368, %369 : vector<8x128xi1>, vector<8x128xf32>
    %371 = vector.extract_strided_slice %370 {offsets = [0, 0], sizes = [8, 32], strides = [1, 1]} : vector<8x128xf32> to vector<8x32xf32>
    %372 = vector.extract_strided_slice %370 {offsets = [0, 32], sizes = [8, 32], strides = [1, 1]} : vector<8x128xf32> to vector<8x32xf32>
    %373 = vector.extract_strided_slice %370 {offsets = [0, 64], sizes = [8, 32], strides = [1, 1]} : vector<8x128xf32> to vector<8x32xf32>
    %374 = vector.extract_strided_slice %370 {offsets = [0, 96], sizes = [8, 32], strides = [1, 1]} : vector<8x128xf32> to vector<8x32xf32>
    %375 = arith.mulf %372, %310 : vector<8x32xf32>
    %376 = arith.mulf %371, %374 : vector<8x32xf32>
    %377 = arith.addf %375, %376 : vector<8x32xf32>
    %378 = math.tanh %377 : vector<8x32xf32>
    %379 = arith.mulf %373, %378 : vector<8x32xf32>
    %c40 = arith.constant 40 : index
    %c0_104 = arith.constant 0 : index
    %380 = vector.load %arg19[%c40, %c0_104] : memref<64x128xf32, #tpu.memory_space<vmem>>, vector<8x128xf32>
    %381 = arith.truncf %333 : vector<8x32xf32> to vector<8x32xbf16>
    %cst_105 = arith.constant dense<0.000000e+00> : vector<8x128xf32>
    %382 = tpu.matmul %381, %28, %cst_105 {dimension_numbers = #tpu.dot_dimension_numbers<[1], [0], [0], [1], [0, 0, 1, 1], [], []>} : vector<8x32xbf16>, vector<32x128xbf16>, vector<8x128xf32> -> vector<8x128xf32>
    %383 = arith.addf %380, %382 : vector<8x128xf32>
    %cst_106 = arith.constant 0.000000e+00 : f32
    %384 = vector.broadcast %cst_106 : f32 to vector<8x128xf32>
    %385 = arith.subf %384, %383 : vector<8x128xf32>
    %386 = math.exp %385 : vector<8x128xf32>
    %cst_107 = arith.constant 1.000000e+00 : f32
    %387 = vector.broadcast %cst_107 : f32 to vector<8x128xf32>
    %388 = arith.addf %387, %386 : vector<8x128xf32>
    %389 = tpu.reciprocal %388 {approx = true} : vector<8x128xf32> -> vector<8x128xf32>
    %390 = math.tanh %383 : vector<8x128xf32>
    %391 = arith.select %21, %389, %390 : vector<8x128xi1>, vector<8x128xf32>
    %392 = vector.extract_strided_slice %391 {offsets = [0, 0], sizes = [8, 32], strides = [1, 1]} : vector<8x128xf32> to vector<8x32xf32>
    %393 = vector.extract_strided_slice %391 {offsets = [0, 32], sizes = [8, 32], strides = [1, 1]} : vector<8x128xf32> to vector<8x32xf32>
    %394 = vector.extract_strided_slice %391 {offsets = [0, 64], sizes = [8, 32], strides = [1, 1]} : vector<8x128xf32> to vector<8x32xf32>
    %395 = vector.extract_strided_slice %391 {offsets = [0, 96], sizes = [8, 32], strides = [1, 1]} : vector<8x128xf32> to vector<8x32xf32>
    %396 = arith.mulf %393, %331 : vector<8x32xf32>
    %397 = arith.mulf %392, %395 : vector<8x32xf32>
    %398 = arith.addf %396, %397 : vector<8x32xf32>
    %399 = math.tanh %398 : vector<8x32xf32>
    %400 = arith.mulf %394, %399 : vector<8x32xf32>
    %401 = arith.truncf %400 : vector<8x32xf32> to vector<8x32xbf16>
    %cst_108 = arith.constant dense<0.000000e+00> : vector<8x128xf32>
    %402 = tpu.matmul %401, %29, %cst_108 {dimension_numbers = #tpu.dot_dimension_numbers<[1], [0], [0], [1], [0, 0, 1, 1], [], []>} : vector<8x32xbf16>, vector<32x128xbf16>, vector<8x128xf32> -> vector<8x128xf32>
    %403 = arith.truncf %356 : vector<8x32xf32> to vector<8x32xbf16>
    %cst_109 = arith.constant dense<0.000000e+00> : vector<8x128xf32>
    %404 = tpu.matmul %403, %30, %cst_109 {dimension_numbers = #tpu.dot_dimension_numbers<[1], [0], [0], [1], [0, 0, 1, 1], [], []>} : vector<8x32xbf16>, vector<32x128xbf16>, vector<8x128xf32> -> vector<8x128xf32>
    %405 = arith.addf %402, %404 : vector<8x128xf32>
    %406 = arith.addf %405, %24 : vector<8x128xf32>
    %cst_110 = arith.constant 0.000000e+00 : f32
    %407 = vector.broadcast %cst_110 : f32 to vector<8x128xf32>
    %408 = arith.subf %407, %406 : vector<8x128xf32>
    %409 = math.exp %408 : vector<8x128xf32>
    %cst_111 = arith.constant 1.000000e+00 : f32
    %410 = vector.broadcast %cst_111 : f32 to vector<8x128xf32>
    %411 = arith.addf %410, %409 : vector<8x128xf32>
    %412 = tpu.reciprocal %411 {approx = true} : vector<8x128xf32> -> vector<8x128xf32>
    %413 = math.tanh %406 : vector<8x128xf32>
    %414 = arith.select %21, %412, %413 : vector<8x128xi1>, vector<8x128xf32>
    %415 = vector.extract_strided_slice %414 {offsets = [0, 0], sizes = [8, 32], strides = [1, 1]} : vector<8x128xf32> to vector<8x32xf32>
    %416 = vector.extract_strided_slice %414 {offsets = [0, 32], sizes = [8, 32], strides = [1, 1]} : vector<8x128xf32> to vector<8x32xf32>
    %417 = vector.extract_strided_slice %414 {offsets = [0, 64], sizes = [8, 32], strides = [1, 1]} : vector<8x128xf32> to vector<8x32xf32>
    %418 = vector.extract_strided_slice %414 {offsets = [0, 96], sizes = [8, 32], strides = [1, 1]} : vector<8x128xf32> to vector<8x32xf32>
    %419 = arith.mulf %416, %354 : vector<8x32xf32>
    %420 = arith.mulf %415, %418 : vector<8x32xf32>
    %421 = arith.addf %419, %420 : vector<8x32xf32>
    %422 = math.tanh %421 : vector<8x32xf32>
    %423 = arith.mulf %417, %422 : vector<8x32xf32>
    %424 = arith.truncf %423 : vector<8x32xf32> to vector<8x32xbf16>
    %cst_112 = arith.constant dense<0.000000e+00> : vector<8x128xf32>
    %425 = tpu.matmul %424, %31, %cst_112 {dimension_numbers = #tpu.dot_dimension_numbers<[1], [0], [0], [1], [0, 0, 1, 1], [], []>} : vector<8x32xbf16>, vector<32x128xbf16>, vector<8x128xf32> -> vector<8x128xf32>
    %426 = arith.truncf %379 : vector<8x32xf32> to vector<8x32xbf16>
    %cst_113 = arith.constant dense<0.000000e+00> : vector<8x128xf32>
    %427 = tpu.matmul %426, %32, %cst_113 {dimension_numbers = #tpu.dot_dimension_numbers<[1], [0], [0], [1], [0, 0, 1, 1], [], []>} : vector<8x32xbf16>, vector<32x128xbf16>, vector<8x128xf32> -> vector<8x128xf32>
    %428 = arith.addf %425, %427 : vector<8x128xf32>
    %429 = arith.addf %428, %27 : vector<8x128xf32>
    %cst_114 = arith.constant 0.000000e+00 : f32
    %430 = vector.broadcast %cst_114 : f32 to vector<8x128xf32>
    %431 = arith.subf %430, %429 : vector<8x128xf32>
    %432 = math.exp %431 : vector<8x128xf32>
    %cst_115 = arith.constant 1.000000e+00 : f32
    %433 = vector.broadcast %cst_115 : f32 to vector<8x128xf32>
    %434 = arith.addf %433, %432 : vector<8x128xf32>
    %435 = tpu.reciprocal %434 {approx = true} : vector<8x128xf32> -> vector<8x128xf32>
    %436 = math.tanh %429 : vector<8x128xf32>
    %437 = arith.select %21, %435, %436 : vector<8x128xi1>, vector<8x128xf32>
    %438 = vector.extract_strided_slice %437 {offsets = [0, 0], sizes = [8, 32], strides = [1, 1]} : vector<8x128xf32> to vector<8x32xf32>
    %439 = vector.extract_strided_slice %437 {offsets = [0, 32], sizes = [8, 32], strides = [1, 1]} : vector<8x128xf32> to vector<8x32xf32>
    %440 = vector.extract_strided_slice %437 {offsets = [0, 64], sizes = [8, 32], strides = [1, 1]} : vector<8x128xf32> to vector<8x32xf32>
    %441 = vector.extract_strided_slice %437 {offsets = [0, 96], sizes = [8, 32], strides = [1, 1]} : vector<8x128xf32> to vector<8x32xf32>
    %442 = arith.mulf %439, %377 : vector<8x32xf32>
    %443 = arith.mulf %438, %441 : vector<8x32xf32>
    %444 = arith.addf %442, %443 : vector<8x32xf32>
    %445 = math.tanh %444 : vector<8x32xf32>
    %446 = arith.mulf %440, %445 : vector<8x32xf32>
    %c48 = arith.constant 48 : index
    %c0_116 = arith.constant 0 : index
    %447 = vector.load %arg19[%c48, %c0_116] : memref<64x128xf32, #tpu.memory_space<vmem>>, vector<8x128xf32>
    %448 = arith.truncf %400 : vector<8x32xf32> to vector<8x32xbf16>
    %cst_117 = arith.constant dense<0.000000e+00> : vector<8x128xf32>
    %449 = tpu.matmul %448, %28, %cst_117 {dimension_numbers = #tpu.dot_dimension_numbers<[1], [0], [0], [1], [0, 0, 1, 1], [], []>} : vector<8x32xbf16>, vector<32x128xbf16>, vector<8x128xf32> -> vector<8x128xf32>
    %450 = arith.addf %447, %449 : vector<8x128xf32>
    %cst_118 = arith.constant 0.000000e+00 : f32
    %451 = vector.broadcast %cst_118 : f32 to vector<8x128xf32>
    %452 = arith.subf %451, %450 : vector<8x128xf32>
    %453 = math.exp %452 : vector<8x128xf32>
    %cst_119 = arith.constant 1.000000e+00 : f32
    %454 = vector.broadcast %cst_119 : f32 to vector<8x128xf32>
    %455 = arith.addf %454, %453 : vector<8x128xf32>
    %456 = tpu.reciprocal %455 {approx = true} : vector<8x128xf32> -> vector<8x128xf32>
    %457 = math.tanh %450 : vector<8x128xf32>
    %458 = arith.select %21, %456, %457 : vector<8x128xi1>, vector<8x128xf32>
    %459 = vector.extract_strided_slice %458 {offsets = [0, 0], sizes = [8, 32], strides = [1, 1]} : vector<8x128xf32> to vector<8x32xf32>
    %460 = vector.extract_strided_slice %458 {offsets = [0, 32], sizes = [8, 32], strides = [1, 1]} : vector<8x128xf32> to vector<8x32xf32>
    %461 = vector.extract_strided_slice %458 {offsets = [0, 64], sizes = [8, 32], strides = [1, 1]} : vector<8x128xf32> to vector<8x32xf32>
    %462 = vector.extract_strided_slice %458 {offsets = [0, 96], sizes = [8, 32], strides = [1, 1]} : vector<8x128xf32> to vector<8x32xf32>
    %463 = arith.mulf %460, %398 : vector<8x32xf32>
    %464 = arith.mulf %459, %462 : vector<8x32xf32>
    %465 = arith.addf %463, %464 : vector<8x32xf32>
    %466 = math.tanh %465 : vector<8x32xf32>
    %467 = arith.mulf %461, %466 : vector<8x32xf32>
    %468 = arith.truncf %467 : vector<8x32xf32> to vector<8x32xbf16>
    %cst_120 = arith.constant dense<0.000000e+00> : vector<8x128xf32>
    %469 = tpu.matmul %468, %29, %cst_120 {dimension_numbers = #tpu.dot_dimension_numbers<[1], [0], [0], [1], [0, 0, 1, 1], [], []>} : vector<8x32xbf16>, vector<32x128xbf16>, vector<8x128xf32> -> vector<8x128xf32>
    %470 = arith.truncf %423 : vector<8x32xf32> to vector<8x32xbf16>
    %cst_121 = arith.constant dense<0.000000e+00> : vector<8x128xf32>
    %471 = tpu.matmul %470, %30, %cst_121 {dimension_numbers = #tpu.dot_dimension_numbers<[1], [0], [0], [1], [0, 0, 1, 1], [], []>} : vector<8x32xbf16>, vector<32x128xbf16>, vector<8x128xf32> -> vector<8x128xf32>
    %472 = arith.addf %469, %471 : vector<8x128xf32>
    %473 = arith.addf %472, %24 : vector<8x128xf32>
    %cst_122 = arith.constant 0.000000e+00 : f32
    %474 = vector.broadcast %cst_122 : f32 to vector<8x128xf32>
    %475 = arith.subf %474, %473 : vector<8x128xf32>
    %476 = math.exp %475 : vector<8x128xf32>
    %cst_123 = arith.constant 1.000000e+00 : f32
    %477 = vector.broadcast %cst_123 : f32 to vector<8x128xf32>
    %478 = arith.addf %477, %476 : vector<8x128xf32>
    %479 = tpu.reciprocal %478 {approx = true} : vector<8x128xf32> -> vector<8x128xf32>
    %480 = math.tanh %473 : vector<8x128xf32>
    %481 = arith.select %21, %479, %480 : vector<8x128xi1>, vector<8x128xf32>
    %482 = vector.extract_strided_slice %481 {offsets = [0, 0], sizes = [8, 32], strides = [1, 1]} : vector<8x128xf32> to vector<8x32xf32>
    %483 = vector.extract_strided_slice %481 {offsets = [0, 32], sizes = [8, 32], strides = [1, 1]} : vector<8x128xf32> to vector<8x32xf32>
    %484 = vector.extract_strided_slice %481 {offsets = [0, 64], sizes = [8, 32], strides = [1, 1]} : vector<8x128xf32> to vector<8x32xf32>
    %485 = vector.extract_strided_slice %481 {offsets = [0, 96], sizes = [8, 32], strides = [1, 1]} : vector<8x128xf32> to vector<8x32xf32>
    %486 = arith.mulf %483, %421 : vector<8x32xf32>
    %487 = arith.mulf %482, %485 : vector<8x32xf32>
    %488 = arith.addf %486, %487 : vector<8x32xf32>
    %489 = math.tanh %488 : vector<8x32xf32>
    %490 = arith.mulf %484, %489 : vector<8x32xf32>
    %491 = arith.truncf %490 : vector<8x32xf32> to vector<8x32xbf16>
    %cst_124 = arith.constant dense<0.000000e+00> : vector<8x128xf32>
    %492 = tpu.matmul %491, %31, %cst_124 {dimension_numbers = #tpu.dot_dimension_numbers<[1], [0], [0], [1], [0, 0, 1, 1], [], []>} : vector<8x32xbf16>, vector<32x128xbf16>, vector<8x128xf32> -> vector<8x128xf32>
    %493 = arith.truncf %446 : vector<8x32xf32> to vector<8x32xbf16>
    %cst_125 = arith.constant dense<0.000000e+00> : vector<8x128xf32>
    %494 = tpu.matmul %493, %32, %cst_125 {dimension_numbers = #tpu.dot_dimension_numbers<[1], [0], [0], [1], [0, 0, 1, 1], [], []>} : vector<8x32xbf16>, vector<32x128xbf16>, vector<8x128xf32> -> vector<8x128xf32>
    %495 = arith.addf %492, %494 : vector<8x128xf32>
    %496 = arith.addf %495, %27 : vector<8x128xf32>
    %cst_126 = arith.constant 0.000000e+00 : f32
    %497 = vector.broadcast %cst_126 : f32 to vector<8x128xf32>
    %498 = arith.subf %497, %496 : vector<8x128xf32>
    %499 = math.exp %498 : vector<8x128xf32>
    %cst_127 = arith.constant 1.000000e+00 : f32
    %500 = vector.broadcast %cst_127 : f32 to vector<8x128xf32>
    %501 = arith.addf %500, %499 : vector<8x128xf32>
    %502 = tpu.reciprocal %501 {approx = true} : vector<8x128xf32> -> vector<8x128xf32>
    %503 = math.tanh %496 : vector<8x128xf32>
    %504 = arith.select %21, %502, %503 : vector<8x128xi1>, vector<8x128xf32>
    %505 = vector.extract_strided_slice %504 {offsets = [0, 0], sizes = [8, 32], strides = [1, 1]} : vector<8x128xf32> to vector<8x32xf32>
    %506 = vector.extract_strided_slice %504 {offsets = [0, 32], sizes = [8, 32], strides = [1, 1]} : vector<8x128xf32> to vector<8x32xf32>
    %507 = vector.extract_strided_slice %504 {offsets = [0, 64], sizes = [8, 32], strides = [1, 1]} : vector<8x128xf32> to vector<8x32xf32>
    %508 = vector.extract_strided_slice %504 {offsets = [0, 96], sizes = [8, 32], strides = [1, 1]} : vector<8x128xf32> to vector<8x32xf32>
    %509 = arith.mulf %506, %444 : vector<8x32xf32>
    %510 = arith.mulf %505, %508 : vector<8x32xf32>
    %511 = arith.addf %509, %510 : vector<8x32xf32>
    %512 = math.tanh %511 : vector<8x32xf32>
    %513 = arith.mulf %507, %512 : vector<8x32xf32>
    %c56 = arith.constant 56 : index
    %c0_128 = arith.constant 0 : index
    %514 = vector.load %arg19[%c56, %c0_128] : memref<64x128xf32, #tpu.memory_space<vmem>>, vector<8x128xf32>
    %515 = arith.truncf %467 : vector<8x32xf32> to vector<8x32xbf16>
    %cst_129 = arith.constant dense<0.000000e+00> : vector<8x128xf32>
    %516 = tpu.matmul %515, %28, %cst_129 {dimension_numbers = #tpu.dot_dimension_numbers<[1], [0], [0], [1], [0, 0, 1, 1], [], []>} : vector<8x32xbf16>, vector<32x128xbf16>, vector<8x128xf32> -> vector<8x128xf32>
    %517 = arith.addf %514, %516 : vector<8x128xf32>
    %cst_130 = arith.constant 0.000000e+00 : f32
    %518 = vector.broadcast %cst_130 : f32 to vector<8x128xf32>
    %519 = arith.subf %518, %517 : vector<8x128xf32>
    %520 = math.exp %519 : vector<8x128xf32>
    %cst_131 = arith.constant 1.000000e+00 : f32
    %521 = vector.broadcast %cst_131 : f32 to vector<8x128xf32>
    %522 = arith.addf %521, %520 : vector<8x128xf32>
    %523 = tpu.reciprocal %522 {approx = true} : vector<8x128xf32> -> vector<8x128xf32>
    %524 = math.tanh %517 : vector<8x128xf32>
    %525 = arith.select %21, %523, %524 : vector<8x128xi1>, vector<8x128xf32>
    %526 = vector.extract_strided_slice %525 {offsets = [0, 0], sizes = [8, 32], strides = [1, 1]} : vector<8x128xf32> to vector<8x32xf32>
    %527 = vector.extract_strided_slice %525 {offsets = [0, 32], sizes = [8, 32], strides = [1, 1]} : vector<8x128xf32> to vector<8x32xf32>
    %528 = vector.extract_strided_slice %525 {offsets = [0, 64], sizes = [8, 32], strides = [1, 1]} : vector<8x128xf32> to vector<8x32xf32>
    %529 = vector.extract_strided_slice %525 {offsets = [0, 96], sizes = [8, 32], strides = [1, 1]} : vector<8x128xf32> to vector<8x32xf32>
    %530 = arith.mulf %527, %465 : vector<8x32xf32>
    %531 = arith.mulf %526, %529 : vector<8x32xf32>
    %532 = arith.addf %530, %531 : vector<8x32xf32>
    %533 = math.tanh %532 : vector<8x32xf32>
    %534 = arith.mulf %528, %533 : vector<8x32xf32>
    %535 = arith.truncf %534 : vector<8x32xf32> to vector<8x32xbf16>
    %cst_132 = arith.constant dense<0.000000e+00> : vector<8x128xf32>
    %536 = tpu.matmul %535, %29, %cst_132 {dimension_numbers = #tpu.dot_dimension_numbers<[1], [0], [0], [1], [0, 0, 1, 1], [], []>} : vector<8x32xbf16>, vector<32x128xbf16>, vector<8x128xf32> -> vector<8x128xf32>
    %537 = arith.truncf %490 : vector<8x32xf32> to vector<8x32xbf16>
    %cst_133 = arith.constant dense<0.000000e+00> : vector<8x128xf32>
    %538 = tpu.matmul %537, %30, %cst_133 {dimension_numbers = #tpu.dot_dimension_numbers<[1], [0], [0], [1], [0, 0, 1, 1], [], []>} : vector<8x32xbf16>, vector<32x128xbf16>, vector<8x128xf32> -> vector<8x128xf32>
    %539 = arith.addf %536, %538 : vector<8x128xf32>
    %540 = arith.addf %539, %24 : vector<8x128xf32>
    %cst_134 = arith.constant 0.000000e+00 : f32
    %541 = vector.broadcast %cst_134 : f32 to vector<8x128xf32>
    %542 = arith.subf %541, %540 : vector<8x128xf32>
    %543 = math.exp %542 : vector<8x128xf32>
    %cst_135 = arith.constant 1.000000e+00 : f32
    %544 = vector.broadcast %cst_135 : f32 to vector<8x128xf32>
    %545 = arith.addf %544, %543 : vector<8x128xf32>
    %546 = tpu.reciprocal %545 {approx = true} : vector<8x128xf32> -> vector<8x128xf32>
    %547 = math.tanh %540 : vector<8x128xf32>
    %548 = arith.select %21, %546, %547 : vector<8x128xi1>, vector<8x128xf32>
    %549 = vector.extract_strided_slice %548 {offsets = [0, 0], sizes = [8, 32], strides = [1, 1]} : vector<8x128xf32> to vector<8x32xf32>
    %550 = vector.extract_strided_slice %548 {offsets = [0, 32], sizes = [8, 32], strides = [1, 1]} : vector<8x128xf32> to vector<8x32xf32>
    %551 = vector.extract_strided_slice %548 {offsets = [0, 64], sizes = [8, 32], strides = [1, 1]} : vector<8x128xf32> to vector<8x32xf32>
    %552 = vector.extract_strided_slice %548 {offsets = [0, 96], sizes = [8, 32], strides = [1, 1]} : vector<8x128xf32> to vector<8x32xf32>
    %553 = arith.mulf %550, %488 : vector<8x32xf32>
    %554 = arith.mulf %549, %552 : vector<8x32xf32>
    %555 = arith.addf %553, %554 : vector<8x32xf32>
    %556 = math.tanh %555 : vector<8x32xf32>
    %557 = arith.mulf %551, %556 : vector<8x32xf32>
    %558 = arith.truncf %557 : vector<8x32xf32> to vector<8x32xbf16>
    %cst_136 = arith.constant dense<0.000000e+00> : vector<8x128xf32>
    %559 = tpu.matmul %558, %31, %cst_136 {dimension_numbers = #tpu.dot_dimension_numbers<[1], [0], [0], [1], [0, 0, 1, 1], [], []>} : vector<8x32xbf16>, vector<32x128xbf16>, vector<8x128xf32> -> vector<8x128xf32>
    %560 = arith.truncf %513 : vector<8x32xf32> to vector<8x32xbf16>
    %cst_137 = arith.constant dense<0.000000e+00> : vector<8x128xf32>
    %561 = tpu.matmul %560, %32, %cst_137 {dimension_numbers = #tpu.dot_dimension_numbers<[1], [0], [0], [1], [0, 0, 1, 1], [], []>} : vector<8x32xbf16>, vector<32x128xbf16>, vector<8x128xf32> -> vector<8x128xf32>
    %562 = arith.addf %559, %561 : vector<8x128xf32>
    %563 = arith.addf %562, %27 : vector<8x128xf32>
    %cst_138 = arith.constant 0.000000e+00 : f32
    %564 = vector.broadcast %cst_138 : f32 to vector<8x128xf32>
    %565 = arith.subf %564, %563 : vector<8x128xf32>
    %566 = math.exp %565 : vector<8x128xf32>
    %cst_139 = arith.constant 1.000000e+00 : f32
    %567 = vector.broadcast %cst_139 : f32 to vector<8x128xf32>
    %568 = arith.addf %567, %566 : vector<8x128xf32>
    %569 = tpu.reciprocal %568 {approx = true} : vector<8x128xf32> -> vector<8x128xf32>
    %570 = math.tanh %563 : vector<8x128xf32>
    %571 = arith.select %21, %569, %570 : vector<8x128xi1>, vector<8x128xf32>
    %572 = vector.extract_strided_slice %571 {offsets = [0, 0], sizes = [8, 32], strides = [1, 1]} : vector<8x128xf32> to vector<8x32xf32>
    %573 = vector.extract_strided_slice %571 {offsets = [0, 32], sizes = [8, 32], strides = [1, 1]} : vector<8x128xf32> to vector<8x32xf32>
    %574 = vector.extract_strided_slice %571 {offsets = [0, 64], sizes = [8, 32], strides = [1, 1]} : vector<8x128xf32> to vector<8x32xf32>
    %575 = vector.extract_strided_slice %571 {offsets = [0, 96], sizes = [8, 32], strides = [1, 1]} : vector<8x128xf32> to vector<8x32xf32>
    %576 = arith.mulf %573, %511 : vector<8x32xf32>
    %577 = arith.mulf %572, %575 : vector<8x32xf32>
    %578 = arith.addf %576, %577 : vector<8x32xf32>
    %579 = math.tanh %578 : vector<8x32xf32>
    %580 = arith.mulf %574, %579 : vector<8x32xf32>
    %c0_140 = arith.constant 0 : index
    %c0_141 = arith.constant 0 : index
    %c0_142 = arith.constant 0 : index
    %581 = vector.load %arg17[%c0_140, %c0_141, %c0_142] : memref<3x8x32xf32, #tpu.memory_space<vmem>>, vector<1x8x32xf32>
    %582 = vector.shape_cast %581 : vector<1x8x32xf32> to vector<8x32xf32>
    %583 = vector.shape_cast %534 : vector<8x32xf32> to vector<1x8x32xf32>
    tpu.vector_store %arg17[%c0_140, %c0_141, %c0_142], %583 {strides = array<i32>} : memref<3x8x32xf32, #tpu.memory_space<vmem>>, vector<1x8x32xf32>,
    %c1_143 = arith.constant 1 : index
    %c0_144 = arith.constant 0 : index
    %c0_145 = arith.constant 0 : index
    %584 = vector.load %arg17[%c1_143, %c0_144, %c0_145] : memref<3x8x32xf32, #tpu.memory_space<vmem>>, vector<1x8x32xf32>
    %585 = vector.shape_cast %584 : vector<1x8x32xf32> to vector<8x32xf32>
    %586 = vector.shape_cast %557 : vector<8x32xf32> to vector<1x8x32xf32>
    tpu.vector_store %arg17[%c1_143, %c0_144, %c0_145], %586 {strides = array<i32>} : memref<3x8x32xf32, #tpu.memory_space<vmem>>, vector<1x8x32xf32>,
    %c2_146 = arith.constant 2 : index
    %c0_147 = arith.constant 0 : index
    %c0_148 = arith.constant 0 : index
    %587 = vector.load %arg17[%c2_146, %c0_147, %c0_148] : memref<3x8x32xf32, #tpu.memory_space<vmem>>, vector<1x8x32xf32>
    %588 = vector.shape_cast %587 : vector<1x8x32xf32> to vector<8x32xf32>
    %589 = vector.shape_cast %580 : vector<8x32xf32> to vector<1x8x32xf32>
    tpu.vector_store %arg17[%c2_146, %c0_147, %c0_148], %589 {strides = array<i32>} : memref<3x8x32xf32, #tpu.memory_space<vmem>>, vector<1x8x32xf32>,
    %c0_149 = arith.constant 0 : index
    %c0_150 = arith.constant 0 : index
    %c0_151 = arith.constant 0 : index
    %590 = vector.load %arg18[%c0_149, %c0_150, %c0_151] : memref<3x8x32xf32, #tpu.memory_space<vmem>>, vector<1x8x32xf32>
    %591 = vector.shape_cast %590 : vector<1x8x32xf32> to vector<8x32xf32>
    %592 = vector.shape_cast %532 : vector<8x32xf32> to vector<1x8x32xf32>
    tpu.vector_store %arg18[%c0_149, %c0_150, %c0_151], %592 {strides = array<i32>} : memref<3x8x32xf32, #tpu.memory_space<vmem>>, vector<1x8x32xf32>,
    %c1_152 = arith.constant 1 : index
    %c0_153 = arith.constant 0 : index
    %c0_154 = arith.constant 0 : index
    %593 = vector.load %arg18[%c1_152, %c0_153, %c0_154] : memref<3x8x32xf32, #tpu.memory_space<vmem>>, vector<1x8x32xf32>
    %594 = vector.shape_cast %593 : vector<1x8x32xf32> to vector<8x32xf32>
    %595 = vector.shape_cast %555 : vector<8x32xf32> to vector<1x8x32xf32>
    tpu.vector_store %arg18[%c1_152, %c0_153, %c0_154], %595 {strides = array<i32>} : memref<3x8x32xf32, #tpu.memory_space<vmem>>, vector<1x8x32xf32>,
    %c2_155 = arith.constant 2 : index
    %c0_156 = arith.constant 0 : index
    %c0_157 = arith.constant 0 : index
    %596 = vector.load %arg18[%c2_155, %c0_156, %c0_157] : memref<3x8x32xf32, #tpu.memory_space<vmem>>, vector<1x8x32xf32>
    %597 = vector.shape_cast %596 : vector<1x8x32xf32> to vector<8x32xf32>
    %598 = vector.shape_cast %578 : vector<8x32xf32> to vector<1x8x32xf32>
    tpu.vector_store %arg18[%c2_155, %c0_156, %c0_157], %598 {strides = array<i32>} : memref<3x8x32xf32, #tpu.memory_space<vmem>>, vector<1x8x32xf32>,
    %599 = arith.truncf %580 : vector<8x32xf32> to vector<8x32xbf16>
    %c0_158 = arith.constant 0 : index
    %c0_159 = arith.constant 0 : index
    %600 = vector.load %arg14[%c0_158, %c0_159] : memref<32x4xbf16, #tpu.memory_space<vmem>>, vector<32x4xbf16>
    %cst_160 = arith.constant dense<0.000000e+00> : vector<8x4xf32>
    %601 = tpu.matmul %599, %600, %cst_160 {dimension_numbers = #tpu.dot_dimension_numbers<[1], [0], [0], [1], [0, 0, 1, 1], [], []>} : vector<8x32xbf16>, vector<32x4xbf16>, vector<8x4xf32> -> vector<8x4xf32>
    %c0_161 = arith.constant 0 : index
    %c0_162 = arith.constant 0 : index
    %602 = vector.load %arg15[%c0_161, %c0_162] : memref<1x4xf32, #tpu.memory_space<vmem>>, vector<1x4xf32>
    %603 = vector.broadcast %602 : vector<1x4xf32> to vector<8x4xf32>
    %604 = arith.addf %601, %603 : vector<8x4xf32>
    %cst_163 = arith.constant dense<0xFF800000> : vector<8xf32>
    %605 = vector.multi_reduction <maximumf>, %604, %cst_163 [1] : vector<8x4xf32> to vector<8xf32>
    %606 = vector.shape_cast %605 : vector<8xf32> to vector<8x1xf32>
    %607 = vector.broadcast %606 : vector<8x1xf32> to vector<8x4xf32>
    %608 = arith.subf %604, %607 : vector<8x4xf32>
    %609 = math.exp %608 : vector<8x4xf32>
    %cst_164 = arith.constant dense<0.000000e+00> : vector<8xf32>
    %610 = vector.multi_reduction <add>, %609, %cst_164 [1] : vector<8x4xf32> to vector<8xf32>
    %611 = vector.shape_cast %610 : vector<8xf32> to vector<8x1xf32>
    %612 = tpu.reciprocal %611 {approx = true} : vector<8x1xf32> -> vector<8x1xf32>
    %613 = vector.broadcast %612 : vector<8x1xf32> to vector<8x4xf32>
    %614 = arith.mulf %609, %613 : vector<8x4xf32>
    %c0_165 = arith.constant 0 : index
    %c0_166 = arith.constant 0 : index
    %615 = vector.load %arg16[%c0_165, %c0_166] : memref<8x4xf32, #tpu.memory_space<vmem>>, vector<8x4xf32>
    tpu.vector_store %arg16[%c0_165, %c0_166], %614 {strides = array<i32>} : memref<8x4xf32, #tpu.memory_space<vmem>>, vector<8x4xf32>,
    return
  }
  func.func @transform_0(%arg0: i32) -> (i32, i32, i32) {
    %c0_i32 = arith.constant 0 : i32
    %c0_i32_0 = arith.constant 0 : i32
    %c0_i32_1 = arith.constant 0 : i32
    return %arg0, %c0_i32, %c0_i32_0 : i32, i32, i32
  }
  func.func @transform_1(%arg0: i32) -> (i32, i32) {
    %c0_i32 = arith.constant 0 : i32
    %c0_i32_0 = arith.constant 0 : i32
    %c0_i32_1 = arith.constant 0 : i32
    return %c0_i32, %c0_i32_0 : i32, i32
  }
  func.func @transform_2(%arg0: i32) -> (i32, i32, i32) {
    %c0_i32 = arith.constant 0 : i32
    %c0_i32_0 = arith.constant 0 : i32
    %c0_i32_1 = arith.constant 0 : i32
    return %c0_i32, %arg0, %c0_i32_0 : i32, i32, i32
  }
  func.func @transform_3(%arg0: i32) -> (i32, i32, i32) {
    %c0_i32 = arith.constant 0 : i32
    %c0_i32_0 = arith.constant 0 : i32
    %c0_i32_1 = arith.constant 0 : i32
    return %c0_i32, %arg0, %c0_i32_0 : i32, i32, i32
  }
  func.func @transform_4(%arg0: i32) -> (i32, i32) {
    %c0_i32 = arith.constant 0 : i32
    %c0_i32_0 = arith.constant 0 : i32
    %c0_i32_1 = arith.constant 0 : i32
    return %c0_i32, %c0_i32_0 : i32, i32
  }
  func.func @transform_5(%arg0: i32) -> (i32, i32) {
    %c0_i32 = arith.constant 0 : i32
    %c0_i32_0 = arith.constant 0 : i32
    %c0_i32_1 = arith.constant 0 : i32
    return %c0_i32, %c0_i32_0 : i32, i32
  }
  func.func @transform_6(%arg0: i32) -> (i32, i32) {
    %c0_i32 = arith.constant 0 : i32
    %c0_i32_0 = arith.constant 0 : i32
    %c0_i32_1 = arith.constant 0 : i32
    return %c0_i32, %c0_i32_0 : i32, i32
  }
  func.func @transform_7(%arg0: i32) -> (i32, i32) {
    %c0_i32 = arith.constant 0 : i32
    %c0_i32_0 = arith.constant 0 : i32
    %c0_i32_1 = arith.constant 0 : i32
    return %c0_i32, %c0_i32_0 : i32, i32
  }
  func.func @transform_8(%arg0: i32) -> (i32, i32) {
    %c0_i32 = arith.constant 0 : i32
    %c0_i32_0 = arith.constant 0 : i32
    %c0_i32_1 = arith.constant 0 : i32
    return %c0_i32, %c0_i32_0 : i32, i32
  }
  func.func @transform_9(%arg0: i32) -> (i32, i32) {
    %c0_i32 = arith.constant 0 : i32
    %c0_i32_0 = arith.constant 0 : i32
    %c0_i32_1 = arith.constant 0 : i32
    return %c0_i32, %c0_i32_0 : i32, i32
  }
  func.func @transform_10(%arg0: i32) -> (i32, i32) {
    %c0_i32 = arith.constant 0 : i32
    %c0_i32_0 = arith.constant 0 : i32
    %c0_i32_1 = arith.constant 0 : i32
    return %c0_i32, %c0_i32_0 : i32, i32
  }
  func.func @transform_11(%arg0: i32) -> (i32, i32) {
    %c0_i32 = arith.constant 0 : i32
    %c0_i32_0 = arith.constant 0 : i32
    %c0_i32_1 = arith.constant 0 : i32
    return %c0_i32, %c0_i32_0 : i32, i32
  }
  func.func @transform_12(%arg0: i32) -> (i32, i32) {
    %c0_i32 = arith.constant 0 : i32
    %c0_i32_0 = arith.constant 0 : i32
    %c0_i32_1 = arith.constant 0 : i32
    return %c0_i32, %c0_i32_0 : i32, i32
  }
  func.func @transform_13(%arg0: i32) -> (i32, i32) {
    %c0_i32 = arith.constant 0 : i32
    %c0_i32_0 = arith.constant 0 : i32
    %c0_i32_1 = arith.constant 0 : i32
    return %c0_i32, %c0_i32_0 : i32, i32
  }
  func.func @transform_14(%arg0: i32) -> (i32, i32) {
    %c0_i32 = arith.constant 0 : i32
    %c0_i32_0 = arith.constant 0 : i32
    %c0_i32_1 = arith.constant 0 : i32
    return %c0_i32, %c0_i32_0 : i32, i32
  }
  func.func @transform_15(%arg0: i32) -> (i32, i32) {
    %c0_i32 = arith.constant 0 : i32
    %c0_i32_0 = arith.constant 0 : i32
    return %arg0, %c0_i32 : i32, i32
  }
  func.func @transform_16(%arg0: i32) -> (i32, i32, i32) {
    %c0_i32 = arith.constant 0 : i32
    %c0_i32_0 = arith.constant 0 : i32
    %c0_i32_1 = arith.constant 0 : i32
    return %c0_i32, %arg0, %c0_i32_0 : i32, i32, i32
  }
  func.func @transform_17(%arg0: i32) -> (i32, i32, i32) {
    %c0_i32 = arith.constant 0 : i32
    %c0_i32_0 = arith.constant 0 : i32
    %c0_i32_1 = arith.constant 0 : i32
    return %c0_i32, %arg0, %c0_i32_0 : i32, i32, i32
  }
}

</mosaic_0001>

<llo_original>
// kernel: bert_plus_rnn_forward.1
$region0: #{bert_plus_rnn_forward.1}
  #allocation0 [shape = 'u32[]', space=smem, size = 0x4, offset = 0x4, fixed_abs, tag = 'smem constant byte address 0x4 - core index']
  #allocation1 [shape = 'u32[144,128]{1,0:T(1,128)}', space=vmem, size = 0x12000, scoped, tag = 'internal scratch']
  #allocation2 [shape = 'f32[64,128]{1,0:T(8,128)}', space=vmem, size = 0x8000, scoped, tag = 'scratch operand']
  %s0 = inlined_call_operand.vmem [shape: s32[1,64,1], index: 0, kind: input, shape index: {}]
  %s1 = inlined_call_operand.vmem [shape: f32[100,128], index: 1, kind: input, shape index: {}]
  %s2 = inlined_call_operand.hbm [shape: f32[3,8,32], index: 2, kind: input, shape index: {}]
  %s3 = inlined_call_operand.hbm [shape: f32[3,8,32], index: 3, kind: input, shape index: {}]
  %s4 = inlined_call_operand.hbm [shape: bf16[128,128], index: 4, kind: input, shape index: {}]
  %s5 = inlined_call_operand.vmem [shape: bf16[32,128], index: 5, kind: input, shape index: {}]
  %s6 = inlined_call_operand.hbm [shape: f32[1,128], index: 6, kind: input, shape index: {}]
  %s7 = inlined_call_operand.hbm [shape: bf16[32,128], index: 7, kind: input, shape index: {}]
  %s8 = inlined_call_operand.hbm [shape: bf16[32,128], index: 8, kind: input, shape index: {}]
  %s9 = inlined_call_operand.hbm [shape: f32[1,128], index: 9, kind: input, shape index: {}]
  %s10 = inlined_call_operand.hbm [shape: bf16[32,128], index: 10, kind: input, shape index: {}]
  %s11 = inlined_call_operand.hbm [shape: bf16[32,128], index: 11, kind: input, shape index: {}]
  %s12 = inlined_call_operand.hbm [shape: f32[1,128], index: 12, kind: input, shape index: {}]
  %s13 = inlined_call_operand.vmem [shape: bf16[32,4], index: 13, kind: input, shape index: {}]
  %s14 = inlined_call_operand.hbm [shape: f32[1,4], index: 14, kind: input, shape index: {}]
  %s15 = inlined_call_operand.vmem [shape: f32[8,4], index: 15, kind: output, shape index: {0}]
  %s16 = inlined_call_operand.hbm [shape: f32[3,8,32], index: 16, kind: output, shape index: {1}]
  %s17 = inlined_call_operand.hbm [shape: f32[3,8,32], index: 17, kind: output, shape index: {2}]
  %18 = xla_tuple %s15, %s16, %s17
  %s19 = sld [smem:[#allocation0]]
  $region130: #{bert_plus_rnn_forward.1} parent=0
    _
  %s21 = ssub.s32 1, %s19
  %s22 = scalar_select 0, %s21, %s19
  $region1: #{bert_plus_rnn_forward.1} parent=0
    #allocation3 [shape = 'u8[12288]{0}', space=vmem, size = 0x3000, scoped, tag = 'input window, operand 2, single buffered']
    #allocation4 [shape = 's32[1]{0}', space=sflag, size = 0x4, scoped, tag = 'scoped memory for bert_plus_rnn_forward.1']
    #allocation5 [shape = 's32[1]{0}', space=sflag, size = 0x4, scoped, tag = 'scoped memory for bert_plus_rnn_forward.1']
    #allocation6 [shape = 'u8[12288]{0}', space=vmem, size = 0x3000, scoped, tag = 'input window, operand 3, single buffered']
    #allocation7 [shape = 's32[1]{0}', space=sflag, size = 0x4, scoped, tag = 'scoped memory for bert_plus_rnn_forward.1']
    #allocation8 [shape = 'u8[32768]{0}', space=vmem, size = 0x8000, scoped, tag = 'input window, operand 4, single buffered']
    #allocation9 [shape = 'u8[512]{0}', space=vmem, size = 0x400, scoped, tag = 'input window, operand 6, single buffered']
    #allocation10 [shape = 's32[1]{0}', space=sflag, size = 0x4, scoped, tag = 'scoped memory for bert_plus_rnn_forward.1']
    #allocation11 [shape = 'u8[8192]{0}', space=vmem, size = 0x2000, scoped, tag = 'input window, operand 7, single buffered']
    #allocation12 [shape = 'u8[8192]{0}', space=vmem, size = 0x2000, scoped, tag = 'input window, operand 8, single buffered']
    #allocation13 [shape = 's32[1]{0}', space=sflag, size = 0x4, scoped, tag = 'scoped memory for bert_plus_rnn_forward.1']
    #allocation14 [shape = 'u8[512]{0}', space=vmem, size = 0x400, scoped, tag = 'input window, operand 9, single buffered']
    #allocation15 [shape = 'u8[8192]{0}', space=vmem, size = 0x2000, scoped, tag = 'input window, operand 10, single buffered']
    #allocation16 [shape = 's32[1]{0}', space=sflag, size = 0x4, scoped, tag = 'scoped memory for bert_plus_rnn_forward.1']
    #allocation17 [shape = 'u8[8192]{0}', space=vmem, size = 0x2000, scoped, tag = 'input window, operand 11, single buffered']
    #allocation18 [shape = 'u8[512]{0}', space=vmem, size = 0x400, scoped, tag = 'input window, operand 12, single buffered']
    #allocation19 [shape = 's32[1]{0}', space=sflag, size = 0x4, scoped, tag = 'scoped memory for bert_plus_rnn_forward.1']
    #allocation20 [shape = 'u8[512]{0}', space=vmem, size = 0x400, scoped, tag = 'input window, operand 14, single buffered']
    #allocation21 [shape = 'u8[12288]{0}', space=vmem, size = 0x3000, scoped, tag = 'output window, operand 1, single buffered']
    #allocation22 [shape = 'u8[12288]{0}', space=vmem, size = 0x3000, scoped, tag = 'output window, operand 2, single buffered']
    #allocation23 [shape = 's32[1]{0}', space=sflag, size = 0x4, scoped, tag = 'scoped memory for bert_plus_rnn_forward.1']
    %23 = vsyncpa [#allocation4], 0
    %24 = vsyncpa [#allocation7], 0
    %25 = vsyncpa [#allocation10], 0
    %26 = vsyncpa [#allocation13], 0
    %27 = vsyncpa [#allocation16], 0
    %28 = vsyncpa [#allocation19], 0
    %29 = vsyncpa [#allocation5], 0
    %30 = vsyncpa [#allocation23], 0
    // Predicated region
    $region2: #{bert_plus_rnn_forward.1} parent=1 // pred_check
      _
    $region3: #{bert_plus_rnn_forward.1} parent=1 // pred_check_branch
      %32 = sbr.rel (0) target = $region5
    $region4: #{bert_plus_rnn_forward.1} parent=1 // pred_region
      _
    $region5: #{bert_plus_rnn_forward.1} parent=1 // pred_fallthru
      _
    // Predicated region
    $region6: #{bert_plus_rnn_forward.1} parent=1 // pred_check
      _
    $region7: #{bert_plus_rnn_forward.1} parent=1 // pred_check_branch
      %34 = sbr.rel (0) target = $region9
    $region8: #{bert_plus_rnn_forward.1} parent=1 // pred_region
      _
    $region9: #{bert_plus_rnn_forward.1} parent=1 // pred_fallthru
      _
    // Predicated region
    $region10: #{bert_plus_rnn_forward.1} parent=1 // pred_check
      _
    $region11: #{bert_plus_rnn_forward.1} parent=1 // pred_check_branch
      %36 = sbr.rel (0) target = $region13
    $region12: #{bert_plus_rnn_forward.1} parent=1 // pred_region
      %s38 = ssub.s32 384, 384
      %39 = vsyncadd [#allocation4], %s38
      %s40 = sshll.u32 [#allocation3], 4
      %s41 = int_to_ptr.vmem [resolvable:$true] %s40
      %46 = dma.hbm_to_vmem [thread:$0]  %s2, 384, %s41, [#allocation4], 128, 128, 8
    $region13: #{bert_plus_rnn_forward.1} parent=1 // pred_fallthru
      _
    // Predicated region
    $region14: #{bert_plus_rnn_forward.1} parent=1 // pred_check
      _
    $region15: #{bert_plus_rnn_forward.1} parent=1 // pred_check_branch
      %48 = sbr.rel (0) target = $region17
    $region16: #{bert_plus_rnn_forward.1} parent=1 // pred_region
      %s50 = ssub.s32 384, 384
      %51 = vsyncadd [#allocation7], %s50
      %s52 = sshll.u32 [#allocation6], 4
      %s53 = int_to_ptr.vmem [resolvable:$true] %s52
      %58 = dma.hbm_to_vmem [thread:$0]  %s3, 384, %s53, [#allocation7], 128, 128, 8
    $region17: #{bert_plus_rnn_forward.1} parent=1 // pred_fallthru
      _
    // Predicated region
    $region18: #{bert_plus_rnn_forward.1} parent=1 // pred_check
      _
    $region19: #{bert_plus_rnn_forward.1} parent=1 // pred_check_branch
      %60 = sbr.rel (0) target = $region21
    $region20: #{bert_plus_rnn_forward.1} parent=1 // pred_region
      %s62 = ssub.s32 1024, 1024
      %63 = vsyncadd [#allocation7], %s62
      %s64 = sshll.u32 [#allocation8], 4
      %s65 = int_to_ptr.vmem [resolvable:$true] %s64
      %70 = dma.hbm_to_vmem [thread:$0]  %s4, 1024, %s65, [#allocation7], 64, 64, 4
    $region21: #{bert_plus_rnn_forward.1} parent=1 // pred_fallthru
      _
    // Predicated region
    $region22: #{bert_plus_rnn_forward.1} parent=1 // pred_check
      _
    $region23: #{bert_plus_rnn_forward.1} parent=1 // pred_check_branch
      %72 = sbr.rel (0) target = $region25
    $region24: #{bert_plus_rnn_forward.1} parent=1 // pred_region
      _
    $region25: #{bert_plus_rnn_forward.1} parent=1 // pred_fallthru
      _
    // Predicated region
    $region26: #{bert_plus_rnn_forward.1} parent=1 // pred_check
      _
    $region27: #{bert_plus_rnn_forward.1} parent=1 // pred_check_branch
      %74 = sbr.rel (0) target = $region29
    $region28: #{bert_plus_rnn_forward.1} parent=1 // pred_region
      %s76 = ssub.s32 16, 16
      %77 = vsyncadd [#allocation10], %s76
      %s79 = sshll.u32 [#allocation9], 4
      %s80 = int_to_ptr.vmem [resolvable:$true] %s79
      %82 = dma.hbm_to_vmem [thread:$0]  %s6, 16, %s80, [#allocation10]
    $region29: #{bert_plus_rnn_forward.1} parent=1 // pred_fallthru
      _
    // Predicated region
    $region30: #{bert_plus_rnn_forward.1} parent=1 // pred_check
      _
    $region31: #{bert_plus_rnn_forward.1} parent=1 // pred_check_branch
      %84 = sbr.rel (0) target = $region33
    $region32: #{bert_plus_rnn_forward.1} parent=1 // pred_region
      %s86 = ssub.s32 256, 256
      %87 = vsyncadd [#allocation10], %s86
      %s88 = sshll.u32 [#allocation11], 4
      %s89 = int_to_ptr.vmem [resolvable:$true] %s88
      %94 = dma.hbm_to_vmem [thread:$0]  %s7, 256, %s89, [#allocation10], 64, 64, 4
    $region33: #{bert_plus_rnn_forward.1} parent=1 // pred_fallthru
      _
    // Predicated region
    $region34: #{bert_plus_rnn_forward.1} parent=1 // pred_check
      _
    $region35: #{bert_plus_rnn_forward.1} parent=1 // pred_check_branch
      %96 = sbr.rel (0) target = $region37
    $region36: #{bert_plus_rnn_forward.1} parent=1 // pred_region
      %s98 = ssub.s32 256, 256
      %99 = vsyncadd [#allocation13], %s98
      %s100 = sshll.u32 [#allocation12], 4
      %s101 = int_to_ptr.vmem [resolvable:$true] %s100
      %106 = dma.hbm_to_vmem [thread:$0]  %s8, 256, %s101, [#allocation13], 64, 64, 4
    $region37: #{bert_plus_rnn_forward.1} parent=1 // pred_fallthru
      _
    // Predicated region
    $region38: #{bert_plus_rnn_forward.1} parent=1 // pred_check
      _
    $region39: #{bert_plus_rnn_forward.1} parent=1 // pred_check_branch
      %108 = sbr.rel (0) target = $region41
    $region40: #{bert_plus_rnn_forward.1} parent=1 // pred_region
      %s110 = ssub.s32 16, 16
      %111 = vsyncadd [#allocation13], %s110
      %s113 = sshll.u32 [#allocation14], 4
      %s114 = int_to_ptr.vmem [resolvable:$true] %s113
      %116 = dma.hbm_to_vmem [thread:$0]  %s9, 16, %s114, [#allocation13]
    $region41: #{bert_plus_rnn_forward.1} parent=1 // pred_fallthru
      _
    // Predicated region
    $region42: #{bert_plus_rnn_forward.1} parent=1 // pred_check
      _
    $region43: #{bert_plus_rnn_forward.1} parent=1 // pred_check_branch
      %118 = sbr.rel (0) target = $region45
    $region44: #{bert_plus_rnn_forward.1} parent=1 // pred_region
      %s120 = ssub.s32 256, 256
      %121 = vsyncadd [#allocation16], %s120
      %s122 = sshll.u32 [#allocation15], 4
      %s123 = int_to_ptr.vmem [resolvable:$true] %s122
      %128 = dma.hbm_to_vmem [thread:$0]  %s10, 256, %s123, [#allocation16], 64, 64, 4
    $region45: #{bert_plus_rnn_forward.1} parent=1 // pred_fallthru
      _
    // Predicated region
    $region46: #{bert_plus_rnn_forward.1} parent=1 // pred_check
      _
    $region47: #{bert_plus_rnn_forward.1} parent=1 // pred_check_branch
      %130 = sbr.rel (0) target = $region49
    $region48: #{bert_plus_rnn_forward.1} parent=1 // pred_region
      %s132 = ssub.s32 256, 256
      %133 = vsyncadd [#allocation16], %s132
      %s134 = sshll.u32 [#allocation17], 4
      %s135 = int_to_ptr.vmem [resolvable:$true] %s134
      %140 = dma.hbm_to_vmem [thread:$0]  %s11, 256, %s135, [#allocation16], 64, 64, 4
    $region49: #{bert_plus_rnn_forward.1} parent=1 // pred_fallthru
      _
    // Predicated region
    $region50: #{bert_plus_rnn_forward.1} parent=1 // pred_check
      _
    $region51: #{bert_plus_rnn_forward.1} parent=1 // pred_check_branch
      %142 = sbr.rel (0) target = $region53
    $region52: #{bert_plus_rnn_forward.1} parent=1 // pred_region
      %s144 = ssub.s32 16, 16
      %145 = vsyncadd [#allocation19], %s144
      %s147 = sshll.u32 [#allocation18], 4
      %s148 = int_to_ptr.vmem [resolvable:$true] %s147
      %150 = dma.hbm_to_vmem [thread:$0]  %s12, 16, %s148, [#allocation19]
    $region53: #{bert_plus_rnn_forward.1} parent=1 // pred_fallthru
      _
    // Predicated region
    $region54: #{bert_plus_rnn_forward.1} parent=1 // pred_check
      _
    $region55: #{bert_plus_rnn_forward.1} parent=1 // pred_check_branch
      %152 = sbr.rel (0) target = $region57
    $region56: #{bert_plus_rnn_forward.1} parent=1 // pred_region
      _
    $region57: #{bert_plus_rnn_forward.1} parent=1 // pred_fallthru
      _
    // Predicated region
    $region58: #{bert_plus_rnn_forward.1} parent=1 // pred_check
      _
    $region59: #{bert_plus_rnn_forward.1} parent=1 // pred_check_branch
      %154 = sbr.rel (0) target = $region61
    $region60: #{bert_plus_rnn_forward.1} parent=1 // pred_region
      %s156 = ssub.s32 16, 16
      %157 = vsyncadd [#allocation19], %s156
      %s159 = sshll.u32 [#allocation20], 4
      %s160 = int_to_ptr.vmem [resolvable:$true] %s159
      %162 = dma.hbm_to_vmem [thread:$0]  %s14, 16, %s160, [#allocation19]
    $region61: #{bert_plus_rnn_forward.1} parent=1 // pred_fallthru
      _
    // Predicated region
    $region62: #{bert_plus_rnn_forward.1} parent=1 // pred_check
      _
    $region63: #{bert_plus_rnn_forward.1} parent=1 // pred_check_branch
      %164 = sbr.rel (0) target = $region65
    $region64: #{bert_plus_rnn_forward.1} parent=1 // pred_region
      %165 = dma.done [#allocation4], 384
    $region65: #{bert_plus_rnn_forward.1} parent=1 // pred_fallthru
      _
    // Predicated region
    $region66: #{bert_plus_rnn_forward.1} parent=1 // pred_check
      _
    $region67: #{bert_plus_rnn_forward.1} parent=1 // pred_check_branch
      %167 = sbr.rel (0) target = $region69
    $region68: #{bert_plus_rnn_forward.1} parent=1 // pred_region
      %168 = dma.done [#allocation7], 384
    $region69: #{bert_plus_rnn_forward.1} parent=1 // pred_fallthru
      _
    // Predicated region
    $region70: #{bert_plus_rnn_forward.1} parent=1 // pred_check
      _
    $region71: #{bert_plus_rnn_forward.1} parent=1 // pred_check_branch
      %170 = sbr.rel (0) target = $region73
    $region72: #{bert_plus_rnn_forward.1} parent=1 // pred_region
      %171 = dma.done [#allocation7], 1024
    $region73: #{bert_plus_rnn_forward.1} parent=1 // pred_fallthru
      _
    // Predicated region
    $region74: #{bert_plus_rnn_forward.1} parent=1 // pred_check
      _
    $region75: #{bert_plus_rnn_forward.1} parent=1 // pred_check_branch
      %173 = sbr.rel (0) target = $region77
    $region76: #{bert_plus_rnn_forward.1} parent=1 // pred_region
      %174 = dma.done [#allocation10], 16
    $region77: #{bert_plus_rnn_forward.1} parent=1 // pred_fallthru
      _
    // Predicated region
    $region78: #{bert_plus_rnn_forward.1} parent=1 // pred_check
      _
    $region79: #{bert_plus_rnn_forward.1} parent=1 // pred_check_branch
      %176 = sbr.rel (0) target = $region81
    $region80: #{bert_plus_rnn_forward.1} parent=1 // pred_region
      %177 = dma.done [#allocation10], 256
    $region81: #{bert_plus_rnn_forward.1} parent=1 // pred_fallthru
      _
    // Predicated region
    $region82: #{bert_plus_rnn_forward.1} parent=1 // pred_check
      _
    $region83: #{bert_plus_rnn_forward.1} parent=1 // pred_check_branch
      %179 = sbr.rel (0) target = $region85
    $region84: #{bert_plus_rnn_forward.1} parent=1 // pred_region
      %180 = dma.done [#allocation13], 256
    $region85: #{bert_plus_rnn_forward.1} parent=1 // pred_fallthru
      _
    // Predicated region
    $region86: #{bert_plus_rnn_forward.1} parent=1 // pred_check
      _
    $region87: #{bert_plus_rnn_forward.1} parent=1 // pred_check_branch
      %182 = sbr.rel (0) target = $region89
    $region88: #{bert_plus_rnn_forward.1} parent=1 // pred_region
      %183 = dma.done [#allocation13], 16
    $region89: #{bert_plus_rnn_forward.1} parent=1 // pred_fallthru
      _
    // Predicated region
    $region90: #{bert_plus_rnn_forward.1} parent=1 // pred_check
      _
    $region91: #{bert_plus_rnn_forward.1} parent=1 // pred_check_branch
      %185 = sbr.rel (0) target = $region93
    $region92: #{bert_plus_rnn_forward.1} parent=1 // pred_region
      %186 = dma.done [#allocation16], 256
    $region93: #{bert_plus_rnn_forward.1} parent=1 // pred_fallthru
      _
    // Predicated region
    $region94: #{bert_plus_rnn_forward.1} parent=1 // pred_check
      _
    $region95: #{bert_plus_rnn_forward.1} parent=1 // pred_check_branch
      %188 = sbr.rel (0) target = $region97
    $region96: #{bert_plus_rnn_forward.1} parent=1 // pred_region
      %189 = dma.done [#allocation16], 256
    $region97: #{bert_plus_rnn_forward.1} parent=1 // pred_fallthru
      _
    // Predicated region
    $region98: #{bert_plus_rnn_forward.1} parent=1 // pred_check
      _
    $region99: #{bert_plus_rnn_forward.1} parent=1 // pred_check_branch
      %191 = sbr.rel (0) target = $region101
    $region100: #{bert_plus_rnn_forward.1} parent=1 // pred_region
      %192 = dma.done [#allocation19], 16
    $region101: #{bert_plus_rnn_forward.1} parent=1 // pred_fallthru
      _
    // Predicated region
    $region102: #{bert_plus_rnn_forward.1} parent=1 // pred_check
      _
    $region103: #{bert_plus_rnn_forward.1} parent=1 // pred_check_branch
      %194 = sbr.rel (0) target = $region105
    $region104: #{bert_plus_rnn_forward.1} parent=1 // pred_region
      %195 = dma.done [#allocation19], 16
    $region105: #{bert_plus_rnn_forward.1} parent=1 // pred_fallthru
      _
    %v197 = vld [vmem:[%s0] sm:$0xff]
    %v198 = vld [vmem:[%s0 + $0x8] sm:$0xff]
    %v199 = vld [vmem:[%s0 + $0x10] sm:$0xff]
    %v200 = vld [vmem:[%s0 + $0x18] sm:$0xff]
    %v201 = vld [vmem:[%s0 + $0x20] sm:$0xff]
    %v202 = vld [vmem:[%s0 + $0x28] sm:$0xff]
    %v203 = vld [vmem:[%s0 + $0x30] sm:$0xff]
    %v204 = vld [vmem:[%s0 + $0x38] sm:$0xff]
    %v205 = vlaneseq
    %v206 = vand.u32 %v205, 127
    %207 = vset.pattern.permute.xlu0 0
    %208 = vperm.xlu0 %207, %v197
    %v209 = vpop.permute.xlu0 %208
    %210 = vset.pattern.permute.xlu0 0
    %211 = vperm.xlu0 %210, %v198
    %v212 = vpop.permute.xlu0 %211
    %213 = vset.pattern.permute.xlu0 0
    %214 = vperm.xlu0 %213, %v199
    %v215 = vpop.permute.xlu0 %214
    %216 = vset.pattern.permute.xlu0 0
    %217 = vperm.xlu0 %216, %v200
    %v218 = vpop.permute.xlu0 %217
    %219 = vset.pattern.permute.xlu0 0
    %220 = vperm.xlu0 %219, %v201
    %v221 = vpop.permute.xlu0 %220
    %222 = vset.pattern.permute.xlu0 0
    %223 = vperm.xlu0 %222, %v202
    %v224 = vpop.permute.xlu0 %223
    %225 = vset.pattern.permute.xlu0 0
    %226 = vperm.xlu0 %225, %v203
    %v227 = vpop.permute.xlu0 %226
    %228 = vset.pattern.permute.xlu0 0
    %229 = vperm.xlu0 %228, %v204
    %v230 = vpop.permute.xlu0 %229
    %vm231 = vcmp.eq.s32.totalorder %v209, %v206
    %vm232 = vcmp.eq.s32.totalorder %v212, %v206
    %vm233 = vcmp.eq.s32.totalorder %v215, %v206
    %vm234 = vcmp.eq.s32.totalorder %v218, %v206
    %vm235 = vcmp.eq.s32.totalorder %v221, %v206
    %vm236 = vcmp.eq.s32.totalorder %v224, %v206
    %vm237 = vcmp.eq.s32.totalorder %v227, %v206
    %vm238 = vcmp.eq.s32.totalorder %v230, %v206
    %v239 = vsel %vm231, 1.0, 0.0
    %v240 = vsel %vm232, 1.0, 0.0
    %v241 = vsel %vm233, 1.0, 0.0
    %v242 = vsel %vm234, 1.0, 0.0
    %v243 = vsel %vm235, 1.0, 0.0
    %v244 = vsel %vm236, 1.0, 0.0
    %v245 = vsel %vm237, 1.0, 0.0
    %v246 = vsel %vm238, 1.0, 0.0
    %v247 = vpack.c.bf16 %v240, %v239
    %v248 = vpack.c.bf16 %v242, %v241
    %v249 = vpack.c.bf16 %v244, %v243
    %v250 = vpack.c.bf16 %v246, %v245
    %v251 = vld [vmem:[%s1] sm:$0xff]
    %v252 = vld [vmem:[%s1 + $0x8] sm:$0xff]
    %v253 = vld [vmem:[%s1 + $0x10] sm:$0xff]
    %v254 = vld [vmem:[%s1 + $0x18] sm:$0xff]
    %v255 = vld [vmem:[%s1 + $0x20] sm:$0xff]
    %v256 = vld [vmem:[%s1 + $0x28] sm:$0xff]
    %v257 = vld [vmem:[%s1 + $0x30] sm:$0xff]
    %v258 = vld [vmem:[%s1 + $0x38] sm:$0xff]
    %v259 = vld [vmem:[%s1 + $0x40] sm:$0xff]
    %v260 = vld [vmem:[%s1 + $0x48] sm:$0xff]
    %v261 = vld [vmem:[%s1 + $0x50] sm:$0xff]
    %v262 = vld [vmem:[%s1 + $0x58] sm:$0xff]
    %v263 = vld [vmem:[%s1 + $0x60] sm:$0xf]
    %v264 = vpack.c.bf16 %v252, %v251
    %v265 = vpack.c.bf16 %v254, %v253
    %v266 = vpack.c.bf16 %v256, %v255
    %v267 = vpack.c.bf16 %v258, %v257
    %v268 = vpack.c.bf16 %v260, %v259
    %v269 = vpack.c.bf16 %v262, %v261
    %v270 = vpack.c.bf16 %v263, %v263
    %vm271 = vcmask 818176
    %v273 = vsel %vm271, %v247, 0
    %v276 = vsel %vm271, %v248, 0
    %v279 = vsel %vm271, %v249, 0
    %v282 = vsel %vm271, %v250, 0
    %vm284 = vcmask 1041408
    %v286 = vsel %vm284, %v270, 0
    %288 = vmatprep.subr.bf16.mxu0 0
    %289 = vmatpush1.bf16.msra.mxu0 0
    %290 = vmatprep.subr.bf16.mxu0 0
    %291 = vmatpush1.bf16.msra.mxu0 %v286
    %292 = vmatprep.subr.bf16.mxu0 0
    %293 = vmatpush1.bf16.msra.mxu0 %v269
    %294 = vmatprep.subr.bf16.mxu0 0
    %295 = vmatpush1.bf16.msra.mxu0 %v268
    %296 = vmatprep.subr.bf16.mxu0 0
    %297 = vmatpush1.bf16.msra.mxu0 %v267
    %298 = vmatprep.subr.bf16.mxu0 0
    %299 = vmatpush1.bf16.msra.mxu0 %v266
    %300 = vmatprep.subr.bf16.mxu0 0
    %301 = vmatpush1.bf16.msra.mxu0 %v265
    %302 = vmatprep.subr.bf16.mxu0 0
    %303 = vmatpush1.bf16.msra.mxu0 %v264
    %304 = vmatprep.subr.bf16.mxu0 0
    %305 = vmatpush2.bf16.msra.mxu0 0
    %306 = vmatprep.subr.bf16.mxu0 0
    %307 = vmatpush2.bf16.msra.mxu0 0
    %308 = vmatprep.subr.bf16.mxu0 0
    %309 = vmatpush2.bf16.msra.mxu0 0
    %310 = vmatprep.subr.bf16.mxu0 0
    %311 = vmatpush2.bf16.msra.mxu0 0
    %312 = vmatprep.subr.bf16.mxu0 0
    %313 = vmatpush2.bf16.msra.mxu0 0
    %314 = vmatprep.subr.bf16.mxu0 0
    %315 = vmatpush2.bf16.msra.mxu0 0
    %316 = vmatprep.subr.bf16.mxu0 0
    %317 = vmatpush2.bf16.msra.mxu0 0
    %318 = vmatprep.subr.bf16.mxu0 0
    %319 = vmatpush2.bf16.msra.mxu0 0
    %320 = vmatprep.mubr.bf16.mxu0 0
    %321 = vmatmul.mubr.bf16.gmra.mxu0 %v273
    %v322 = vpop.f32.mrf.mxu0
    %v323 = vadd.f32 0.0, %v322
    %v324 = vpop.f32.mrf.mxu0
    %v325 = vpop.f32.mrf.mxu0
    %v326 = vadd.f32 0.0, %v325
    %v327 = vpop.f32.mrf.mxu0
    %328 = vmatprep.mubr.bf16.mxu0 0
    %329 = vmatmul.mubr.bf16.gmra.mxu0 %v276
    %v330 = vpop.f32.mrf.mxu0
    %v331 = vadd.f32 0.0, %v330
    %v332 = vpop.f32.mrf.mxu0
    %v333 = vpop.f32.mrf.mxu0
    %v334 = vadd.f32 0.0, %v333
    %v335 = vpop.f32.mrf.mxu0
    %336 = vmatprep.mubr.bf16.mxu0 0
    %337 = vmatmul.mubr.bf16.gmra.mxu0 %v279
    %v338 = vpop.f32.mrf.mxu0
    %v339 = vadd.f32 0.0, %v338
    %v340 = vpop.f32.mrf.mxu0
    %v341 = vpop.f32.mrf.mxu0
    %v342 = vadd.f32 0.0, %v341
    %v343 = vpop.f32.mrf.mxu0
    %344 = vmatprep.mubr.bf16.mxu0 0
    %345 = vmatmul.mubr.bf16.gmra.mxu0 %v282
    %v346 = vpop.f32.mrf.mxu0
    %v347 = vadd.f32 0.0, %v346
    %v348 = vpop.f32.mrf.mxu0
    %v349 = vpop.f32.mrf.mxu0
    %v350 = vadd.f32 0.0, %v349
    %v351 = vpop.f32.mrf.mxu0
    %352 = vdwg.mxu0
    %v353 = vpack.c.bf16 %v326, %v323
    %v354 = vpack.c.bf16 %v334, %v331
    %v355 = vpack.c.bf16 %v342, %v339
    %v356 = vpack.c.bf16 %v350, %v347
    %v357 = vld [vmem:[#allocation8] sm:$0xf]
    %v358 = vld [vmem:[#allocation8 + $0x4] sm:$0xf]
    %v359 = vld [vmem:[#allocation8 + $0x8] sm:$0xf]
    %v360 = vld [vmem:[#allocation8 + $0xc] sm:$0xf]
    %v361 = vld [vmem:[#allocation8 + $0x10] sm:$0xf]
    %v362 = vld [vmem:[#allocation8 + $0x14] sm:$0xf]
    %v363 = vld [vmem:[#allocation8 + $0x18] sm:$0xf]
    %v364 = vld [vmem:[#allocation8 + $0x1c] sm:$0xf]
    %v365 = vld [vmem:[#allocation8 + $0x20] sm:$0xf]
    %v366 = vld [vmem:[#allocation8 + $0x24] sm:$0xf]
    %v367 = vld [vmem:[#allocation8 + $0x28] sm:$0xf]
    %v368 = vld [vmem:[#allocation8 + $0x2c] sm:$0xf]
    %v369 = vld [vmem:[#allocation8 + $0x30] sm:$0xf]
    %v370 = vld [vmem:[#allocation8 + $0x34] sm:$0xf]
    %v371 = vld [vmem:[#allocation8 + $0x38] sm:$0xf]
    %v372 = vld [vmem:[#allocation8 + $0x3c] sm:$0xf]
    %v373 = vld [vmem:[#allocation9] sm:$0x1]
    %v375 = vlaneseq
    %v376 = vshrl.u32 %v375, 7
    %v377 = vsub.s32 0, %v376
    %v378 = vrot.slane %v373, %v377
    %v396 = vunpack.c.l.b16 %v357
    %v397 = vunpack.c.l.b16 %v358
    %v398 = vunpack.c.l.b16 %v359
    %v399 = vunpack.c.l.b16 %v360
    %v400 = vunpack.c.l.b16 %v361
    %v401 = vunpack.c.l.b16 %v362
    %v402 = vunpack.c.l.b16 %v363
    %v403 = vunpack.c.l.b16 %v364
    %v404 = vunpack.c.l.b16 %v365
    %v405 = vunpack.c.l.b16 %v366
    %v406 = vunpack.c.l.b16 %v367
    %v407 = vunpack.c.l.b16 %v368
    %v408 = vunpack.c.l.b16 %v369
    %v409 = vunpack.c.l.b16 %v370
    %v410 = vunpack.c.l.b16 %v371
    %v411 = vunpack.c.l.b16 %v372
    %v412 = vpack.c.b16 %v397, %v396
    %v413 = vpack.c.b16 %v399, %v398
    %v414 = vpack.c.b16 %v401, %v400
    %v415 = vpack.c.b16 %v403, %v402
    %v416 = vpack.c.b16 %v405, %v404
    %v417 = vpack.c.b16 %v407, %v406
    %v418 = vpack.c.b16 %v409, %v408
    %v419 = vpack.c.b16 %v411, %v410
    %428 = vmatprep.subr.bf16.mxu0 0
    %429 = vmatpush1.bf16.msra.mxu0 %v419
    %430 = vmatprep.subr.bf16.mxu0 0
    %431 = vmatpush1.bf16.msra.mxu0 %v418
    %432 = vmatprep.subr.bf16.mxu0 0
    %433 = vmatpush1.bf16.msra.mxu0 %v417
    %434 = vmatprep.subr.bf16.mxu0 0
    %435 = vmatpush1.bf16.msra.mxu0 %v416
    %436 = vmatprep.subr.bf16.mxu0 0
    %437 = vmatpush1.bf16.msra.mxu0 %v415
    %438 = vmatprep.subr.bf16.mxu0 0
    %439 = vmatpush1.bf16.msra.mxu0 %v414
    %440 = vmatprep.subr.bf16.mxu0 0
    %441 = vmatpush1.bf16.msra.mxu0 %v413
    %442 = vmatprep.subr.bf16.mxu0 0
    %443 = vmatpush1.bf16.msra.mxu0 %v412
    %444 = vmatprep.subr.bf16.mxu0 0
    %445 = vmatpush2.bf16.msra.mxu0 0
    %446 = vmatprep.subr.bf16.mxu0 0
    %447 = vmatpush2.bf16.msra.mxu0 0
    %448 = vmatprep.subr.bf16.mxu0 0
    %449 = vmatpush2.bf16.msra.mxu0 0
    %450 = vmatprep.subr.bf16.mxu0 0
    %451 = vmatpush2.bf16.msra.mxu0 0
    %452 = vmatprep.subr.bf16.mxu0 0
    %453 = vmatpush2.bf16.msra.mxu0 0
    %454 = vmatprep.subr.bf16.mxu0 0
    %455 = vmatpush2.bf16.msra.mxu0 0
    %456 = vmatprep.subr.bf16.mxu0 0
    %457 = vmatpush2.bf16.msra.mxu0 0
    %458 = vmatprep.subr.bf16.mxu0 0
    %459 = vmatpush2.bf16.msra.mxu0 0
    %460 = vmatprep.mubr.bf16.mxu0 0
    %461 = vmatmul.mubr.bf16.gmra.mxu0 %v353
    %v462 = vpop.f32.mrf.mxu0
    %v463 = vadd.f32 %v378, %v462
    %v464 = vpop.f32.mrf.mxu0
    %v465 = vpop.f32.mrf.mxu0
    %v466 = vadd.f32 %v378, %v465
    %v467 = vpop.f32.mrf.mxu0
    %468 = vmatprep.mubr.bf16.mxu0 0
    %469 = vmatmul.mubr.bf16.gmra.mxu0 %v354
    %v470 = vpop.f32.mrf.mxu0
    %v471 = vadd.f32 %v378, %v470
    %v472 = vpop.f32.mrf.mxu0
    %v473 = vpop.f32.mrf.mxu0
    %v474 = vadd.f32 %v378, %v473
    %v475 = vpop.f32.mrf.mxu0
    %476 = vmatprep.mubr.bf16.mxu0 0
    %477 = vmatmul.mubr.bf16.gmra.mxu0 %v355
    %v478 = vpop.f32.mrf.mxu0
    %v479 = vadd.f32 %v378, %v478
    %v480 = vpop.f32.mrf.mxu0
    %v481 = vpop.f32.mrf.mxu0
    %v482 = vadd.f32 %v378, %v481
    %v483 = vpop.f32.mrf.mxu0
    %484 = vmatprep.mubr.bf16.mxu0 0
    %485 = vmatmul.mubr.bf16.gmra.mxu0 %v356
    %v486 = vpop.f32.mrf.mxu0
    %v487 = vadd.f32 %v378, %v486
    %v488 = vpop.f32.mrf.mxu0
    %v489 = vpop.f32.mrf.mxu0
    %v490 = vadd.f32 %v378, %v489
    %v491 = vpop.f32.mrf.mxu0
    %492 = vdwg.mxu0
    %493 = vst [vmem:[#allocation2] sm:$0xff] %v463
    %494 = vst [vmem:[#allocation2 + $0x8] sm:$0xff] %v466
    %495 = vst [vmem:[#allocation2 + $0x10] sm:$0xff] %v471
    %496 = vst [vmem:[#allocation2 + $0x18] sm:$0xff] %v474
    %497 = vst [vmem:[#allocation2 + $0x20] sm:$0xff] %v479
    %498 = vst [vmem:[#allocation2 + $0x28] sm:$0xff] %v482
    %499 = vst [vmem:[#allocation2 + $0x30] sm:$0xff] %v487
    %500 = vst [vmem:[#allocation2 + $0x38] sm:$0xff] %v490
    %vm501 = vcmp.lt.s32.totalorder %v206, 96
    %v502 = vld [vmem:[#allocation14] sm:$0x1]
    %v504 = vlaneseq
    %v505 = vshrl.u32 %v504, 7
    %v506 = vsub.s32 0, %v505
    %v507 = vrot.slane %v502, %v506
    %v509 = vld [vmem:[#allocation18] sm:$0x1]
    %v511 = vlaneseq
    %v512 = vshrl.u32 %v511, 7
    %v513 = vsub.s32 0, %v512
    %v514 = vrot.slane %v509, %v513
    %v516 = vld [vmem:[%s5] sm:$0xf]
    %v517 = vld [vmem:[%s5 + $0x4] sm:$0xf]
    %v518 = vld [vmem:[%s5 + $0x8] sm:$0xf]
    %v519 = vld [vmem:[%s5 + $0xc] sm:$0xf]
    %v520 = vld [vmem:[#allocation11] sm:$0xf]
    %v521 = vld [vmem:[#allocation11 + $0x4] sm:$0xf]
    %v522 = vld [vmem:[#allocation11 + $0x8] sm:$0xf]
    %v523 = vld [vmem:[#allocation11 + $0xc] sm:$0xf]
    %v524 = vld [vmem:[#allocation12] sm:$0xf]
    %v525 = vld [vmem:[#allocation12 + $0x4] sm:$0xf]
    %v526 = vld [vmem:[#allocation12 + $0x8] sm:$0xf]
    %v527 = vld [vmem:[#allocation12 + $0xc] sm:$0xf]
    %v528 = vld [vmem:[#allocation15] sm:$0xf]
    %v529 = vld [vmem:[#allocation15 + $0x4] sm:$0xf]
    %v530 = vld [vmem:[#allocation15 + $0x8] sm:$0xf]
    %v531 = vld [vmem:[#allocation15 + $0xc] sm:$0xf]
    %v532 = vld [vmem:[#allocation17] sm:$0xf]
    %v533 = vld [vmem:[#allocation17 + $0x4] sm:$0xf]
    %v534 = vld [vmem:[#allocation17 + $0x8] sm:$0xf]
    %v535 = vld [vmem:[#allocation17 + $0xc] sm:$0xf]
    %v536 = vld [vmem:[#allocation3] sm:$0xff]
    %v537 = vld [vmem:[#allocation6] sm:$0xff]
    %s538 = scalar_lea.vmem [#allocation3], 8
    %v539 = vld [vmem:[%s538] sm:$0xff]
    %s540 = scalar_lea.vmem [#allocation6], 8
    %v541 = vld [vmem:[%s540] sm:$0xff]
    %s542 = scalar_lea.vmem [#allocation3], 16
    %v543 = vld [vmem:[%s542] sm:$0xff]
    %s544 = scalar_lea.vmem [#allocation6], 16
    %v545 = vld [vmem:[%s544] sm:$0xff]
    %v546 = vld [vmem:[#allocation2] sm:$0xff]
    %v547 = vpack.c.bf16 %v536, %v536
    %v552 = vunpack.c.l.b16 %v516
    %v553 = vunpack.c.l.b16 %v517
    %v554 = vunpack.c.l.b16 %v518
    %v555 = vunpack.c.l.b16 %v519
    %v556 = vpack.c.b16 %v553, %v552
    %v557 = vpack.c.b16 %v555, %v554
    %vm560 = vcmask 261120
    %v562 = vsel %vm560, %v547, 0
    %564 = vmatprep.subr.bf16.mxu0 0
    %565 = vmatpush1.bf16.msra.mxu0 0
    %566 = vmatprep.subr.bf16.mxu0 0
    %567 = vmatpush1.bf16.msra.mxu0 0
    %568 = vmatprep.subr.bf16.mxu0 0
    %569 = vmatpush1.bf16.msra.mxu0 0
    %570 = vmatprep.subr.bf16.mxu0 0
    %571 = vmatpush1.bf16.msra.mxu0 0
    %572 = vmatprep.subr.bf16.mxu0 0
    %573 = vmatpush1.bf16.msra.mxu0 0
    %574 = vmatprep.subr.bf16.mxu0 0
    %575 = vmatpush1.bf16.msra.mxu0 0
    %576 = vmatprep.subr.bf16.mxu0 0
    %577 = vmatpush1.bf16.msra.mxu0 %v557
    %578 = vmatprep.subr.bf16.mxu0 0
    %579 = vmatpush1.bf16.msra.mxu0 %v556
    %580 = vmatprep.subr.bf16.mxu0 0
    %581 = vmatpush2.bf16.msra.mxu0 0
    %582 = vmatprep.subr.bf16.mxu0 0
    %583 = vmatpush2.bf16.msra.mxu0 0
    %584 = vmatprep.subr.bf16.mxu0 0
    %585 = vmatpush2.bf16.msra.mxu0 0
    %586 = vmatprep.subr.bf16.mxu0 0
    %587 = vmatpush2.bf16.msra.mxu0 0
    %588 = vmatprep.subr.bf16.mxu0 0
    %589 = vmatpush2.bf16.msra.mxu0 0
    %590 = vmatprep.subr.bf16.mxu0 0
    %591 = vmatpush2.bf16.msra.mxu0 0
    %592 = vmatprep.subr.bf16.mxu0 0
    %593 = vmatpush2.bf16.msra.mxu0 0
    %594 = vmatprep.subr.bf16.mxu0 0
    %595 = vmatpush2.bf16.msra.mxu0 0
    %596 = vmatprep.mubr.bf16.mxu0 0
    %597 = vmatmul.mubr.bf16.gmra.mxu0 %v562
    %v598 = vpop.f32.mrf.mxu0
    %v599 = vadd.f32 0.0, %v598
    %v600 = vpop.f32.mrf.mxu0
    %v601 = vpop.f32.mrf.mxu0
    %v602 = vpop.f32.mrf.mxu0
    %603 = vdwg.mxu0
    %v604 = vadd.f32 %v546, %v599
    %v605 = vsub.f32 0.0, %v604
    %v606 = vmul.f32 %v605, 1.442695
    %v607 = vpow.pop %v606
    %v608 = vadd.f32 %v607, 1.0
    %v609 = vrcp.pop %v608
    %v610 = vtanh.pop %v604
    %v611 = vsel %vm501, %v609, %v610
    %613 = vrot.lane.b32.xlu0 %v537, 32
    %v614 = vpop.permute.xlu0 %613
    %v616 = vmul.f32 %v611, %v614
    %618 = vrot.lane.b32.xlu0 %v611, 32
    %v619 = vpop.permute.xlu0 %618
    %v621 = vmul.f32 %v611, %v619
    %623 = vrot.lane.b32.xlu0 %v621, 32
    %v624 = vpop.permute.xlu0 %623
    %v626 = vadd.f32 %v616, %v624
    %v627 = vtanh.pop %v626
    %629 = vrot.lane.b32.xlu0 %v627, 32
    %v630 = vpop.permute.xlu0 %629
    %v632 = vmul.f32 %v611, %v630
    %v633 = vpack.c.bf16 %v632, %v632
    %v634 = vpack.c.bf16 %v539, %v539
    %v639 = vunpack.c.l.b16 %v524
    %v640 = vunpack.c.l.b16 %v525
    %v641 = vunpack.c.l.b16 %v526
    %v642 = vunpack.c.l.b16 %v527
    %v643 = vpack.c.b16 %v640, %v639
    %v644 = vpack.c.b16 %v642, %v641
    %v648 = vsel %vm560, %v634, 0
    %650 = vmatprep.subr.bf16.mxu0 0
    %651 = vmatpush1.bf16.msra.mxu0 0
    %652 = vmatprep.subr.bf16.mxu0 0
    %653 = vmatpush1.bf16.msra.mxu0 0
    %654 = vmatprep.subr.bf16.mxu0 0
    %655 = vmatpush1.bf16.msra.mxu0 0
    %656 = vmatprep.subr.bf16.mxu0 0
    %657 = vmatpush1.bf16.msra.mxu0 0
    %658 = vmatprep.subr.bf16.mxu0 0
    %659 = vmatpush1.bf16.msra.mxu0 0
    %660 = vmatprep.subr.bf16.mxu0 0
    %661 = vmatpush1.bf16.msra.mxu0 0
    %662 = vmatprep.subr.bf16.mxu0 0
    %663 = vmatpush1.bf16.msra.mxu0 %v644
    %664 = vmatprep.subr.bf16.mxu0 0
    %665 = vmatpush1.bf16.msra.mxu0 %v643
    %666 = vmatprep.subr.bf16.mxu0 0
    %667 = vmatpush2.bf16.msra.mxu0 0
    %668 = vmatprep.subr.bf16.mxu0 0
    %669 = vmatpush2.bf16.msra.mxu0 0
    %670 = vmatprep.subr.bf16.mxu0 0
    %671 = vmatpush2.bf16.msra.mxu0 0
    %672 = vmatprep.subr.bf16.mxu0 0
    %673 = vmatpush2.bf16.msra.mxu0 0
    %674 = vmatprep.subr.bf16.mxu0 0
    %675 = vmatpush2.bf16.msra.mxu0 0
    %676 = vmatprep.subr.bf16.mxu0 0
    %677 = vmatpush2.bf16.msra.mxu0 0
    %678 = vmatprep.subr.bf16.mxu0 0
    %679 = vmatpush2.bf16.msra.mxu0 0
    %680 = vmatprep.subr.bf16.mxu0 0
    %681 = vmatpush2.bf16.msra.mxu0 0
    %682 = vmatprep.mubr.bf16.mxu0 0
    %683 = vmatmul.mubr.bf16.gmra.mxu0 %v648
    %v684 = vpop.f32.mrf.mxu0
    %v685 = vadd.f32 0.0, %v684
    %v686 = vpop.f32.mrf.mxu0
    %v687 = vpop.f32.mrf.mxu0
    %v688 = vpop.f32.mrf.mxu0
    %689 = vdwg.mxu0
    %691 = vrot.lane.b32.xlu0 %v633, 64
    %v692 = vpop.permute.xlu0 %691
    %v697 = vunpack.c.l.b16 %v520
    %v698 = vunpack.c.l.b16 %v521
    %v699 = vunpack.c.l.b16 %v522
    %v700 = vunpack.c.l.b16 %v523
    %v701 = vpack.c.b16 %v698, %v697
    %v702 = vpack.c.b16 %v700, %v699
    %v706 = vsel %vm560, %v692, 0
    %708 = vmatprep.subr.bf16.mxu0 0
    %709 = vmatpush1.bf16.msra.mxu0 0
    %710 = vmatprep.subr.bf16.mxu0 0
    %711 = vmatpush1.bf16.msra.mxu0 0
    %712 = vmatprep.subr.bf16.mxu0 0
    %713 = vmatpush1.bf16.msra.mxu0 0
    %714 = vmatprep.subr.bf16.mxu0 0
    %715 = vmatpush1.bf16.msra.mxu0 0
    %716 = vmatprep.subr.bf16.mxu0 0
    %717 = vmatpush1.bf16.msra.mxu0 0
    %718 = vmatprep.subr.bf16.mxu0 0
    %719 = vmatpush1.bf16.msra.mxu0 0
    %720 = vmatprep.subr.bf16.mxu0 0
    %721 = vmatpush1.bf16.msra.mxu0 %v702
    %722 = vmatprep.subr.bf16.mxu0 0
    %723 = vmatpush1.bf16.msra.mxu0 %v701
    %724 = vmatprep.subr.bf16.mxu0 0
    %725 = vmatpush2.bf16.msra.mxu0 0
    %726 = vmatprep.subr.bf16.mxu0 0
    %727 = vmatpush2.bf16.msra.mxu0 0
    %728 = vmatprep.subr.bf16.mxu0 0
    %729 = vmatpush2.bf16.msra.mxu0 0
    %730 = vmatprep.subr.bf16.mxu0 0
    %731 = vmatpush2.bf16.msra.mxu0 0
    %732 = vmatprep.subr.bf16.mxu0 0
    %733 = vmatpush2.bf16.msra.mxu0 0
    %734 = vmatprep.subr.bf16.mxu0 0
    %735 = vmatpush2.bf16.msra.mxu0 0
    %736 = vmatprep.subr.bf16.mxu0 0
    %737 = vmatpush2.bf16.msra.mxu0 0
    %738 = vmatprep.subr.bf16.mxu0 0
    %739 = vmatpush2.bf16.msra.mxu0 0
    %740 = vmatprep.mubr.bf16.mxu0 0
    %741 = vmatmul.mubr.bf16.gmra.mxu0 %v706
    %v742 = vpop.f32.mrf.mxu0
    %v743 = vadd.f32 %v685, %v742
    %v744 = vpop.f32.mrf.mxu0
    %v745 = vpop.f32.mrf.mxu0
    %v746 = vpop.f32.mrf.mxu0
    %747 = vdwg.mxu0
    %v748 = vadd.f32 %v743, %v507
    %v749 = vsub.f32 0.0, %v748
    %v750 = vmul.f32 %v749, 1.442695
    %v751 = vpow.pop %v750
    %v752 = vadd.f32 %v751, 1.0
    %v753 = vrcp.pop %v752
    %v754 = vtanh.pop %v748
    %v755 = vsel %vm501, %v753, %v754
    %757 = vrot.lane.b32.xlu0 %v541, 32
    %v758 = vpop.permute.xlu0 %757
    %v760 = vmul.f32 %v755, %v758
    %762 = vrot.lane.b32.xlu0 %v755, 32
    %v763 = vpop.permute.xlu0 %762
    %v765 = vmul.f32 %v755, %v763
    %767 = vrot.lane.b32.xlu0 %v765, 32
    %v768 = vpop.permute.xlu0 %767
    %v770 = vadd.f32 %v760, %v768
    %v771 = vtanh.pop %v770
    %773 = vrot.lane.b32.xlu0 %v771, 32
    %v774 = vpop.permute.xlu0 %773
    %v776 = vmul.f32 %v755, %v774
    %v777 = vpack.c.bf16 %v776, %v776
    %v778 = vpack.c.bf16 %v543, %v543
    %v783 = vunpack.c.l.b16 %v532
    %v784 = vunpack.c.l.b16 %v533
    %v785 = vunpack.c.l.b16 %v534
    %v786 = vunpack.c.l.b16 %v535
    %v787 = vpack.c.b16 %v784, %v783
    %v788 = vpack.c.b16 %v786, %v785
    %v792 = vsel %vm560, %v778, 0
    %794 = vmatprep.subr.bf16.mxu0 0
    %795 = vmatpush1.bf16.msra.mxu0 0
    %796 = vmatprep.subr.bf16.mxu0 0
    %797 = vmatpush1.bf16.msra.mxu0 0
    %798 = vmatprep.subr.bf16.mxu0 0
    %799 = vmatpush1.bf16.msra.mxu0 0
    %800 = vmatprep.subr.bf16.mxu0 0
    %801 = vmatpush1.bf16.msra.mxu0 0
    %802 = vmatprep.subr.bf16.mxu0 0
    %803 = vmatpush1.bf16.msra.mxu0 0
    %804 = vmatprep.subr.bf16.mxu0 0
    %805 = vmatpush1.bf16.msra.mxu0 0
    %806 = vmatprep.subr.bf16.mxu0 0
    %807 = vmatpush1.bf16.msra.mxu0 %v788
    %808 = vmatprep.subr.bf16.mxu0 0
    %809 = vmatpush1.bf16.msra.mxu0 %v787
    %810 = vmatprep.subr.bf16.mxu0 0
    %811 = vmatpush2.bf16.msra.mxu0 0
    %812 = vmatprep.subr.bf16.mxu0 0
    %813 = vmatpush2.bf16.msra.mxu0 0
    %814 = vmatprep.subr.bf16.mxu0 0
    %815 = vmatpush2.bf16.msra.mxu0 0
    %816 = vmatprep.subr.bf16.mxu0 0
    %817 = vmatpush2.bf16.msra.mxu0 0
    %818 = vmatprep.subr.bf16.mxu0 0
    %819 = vmatpush2.bf16.msra.mxu0 0
    %820 = vmatprep.subr.bf16.mxu0 0
    %821 = vmatpush2.bf16.msra.mxu0 0
    %822 = vmatprep.subr.bf16.mxu0 0
    %823 = vmatpush2.bf16.msra.mxu0 0
    %824 = vmatprep.subr.bf16.mxu0 0
    %825 = vmatpush2.bf16.msra.mxu0 0
    %826 = vmatprep.mubr.bf16.mxu0 0
    %827 = vmatmul.mubr.bf16.gmra.mxu0 %v792
    %v828 = vpop.f32.mrf.mxu0
    %v829 = vadd.f32 0.0, %v828
    %v830 = vpop.f32.mrf.mxu0
    %v831 = vpop.f32.mrf.mxu0
    %v832 = vpop.f32.mrf.mxu0
    %833 = vdwg.mxu0
    %835 = vrot.lane.b32.xlu0 %v777, 64
    %v836 = vpop.permute.xlu0 %835
    %v841 = vunpack.c.l.b16 %v528
    %v842 = vunpack.c.l.b16 %v529
    %v843 = vunpack.c.l.b16 %v530
    %v844 = vunpack.c.l.b16 %v531
    %v845 = vpack.c.b16 %v842, %v841
    %v846 = vpack.c.b16 %v844, %v843
    %v850 = vsel %vm560, %v836, 0
    %852 = vmatprep.subr.bf16.mxu0 0
    %853 = vmatpush1.bf16.msra.mxu0 0
    %854 = vmatprep.subr.bf16.mxu0 0
    %855 = vmatpush1.bf16.msra.mxu0 0
    %856 = vmatprep.subr.bf16.mxu0 0
    %857 = vmatpush1.bf16.msra.mxu0 0
    %858 = vmatprep.subr.bf16.mxu0 0
    %859 = vmatpush1.bf16.msra.mxu0 0
    %860 = vmatprep.subr.bf16.mxu0 0
    %861 = vmatpush1.bf16.msra.mxu0 0
    %862 = vmatprep.subr.bf16.mxu0 0
    %863 = vmatpush1.bf16.msra.mxu0 0
    %864 = vmatprep.subr.bf16.mxu0 0
    %865 = vmatpush1.bf16.msra.mxu0 %v846
    %866 = vmatprep.subr.bf16.mxu0 0
    %867 = vmatpush1.bf16.msra.mxu0 %v845
    %868 = vmatprep.subr.bf16.mxu0 0
    %869 = vmatpush2.bf16.msra.mxu0 0
    %870 = vmatprep.subr.bf16.mxu0 0
    %871 = vmatpush2.bf16.msra.mxu0 0
    %872 = vmatprep.subr.bf16.mxu0 0
    %873 = vmatpush2.bf16.msra.mxu0 0
    %874 = vmatprep.subr.bf16.mxu0 0
    %875 = vmatpush2.bf16.msra.mxu0 0
    %876 = vmatprep.subr.bf16.mxu0 0
    %877 = vmatpush2.bf16.msra.mxu0 0
    %878 = vmatprep.subr.bf16.mxu0 0
    %879 = vmatpush2.bf16.msra.mxu0 0
    %880 = vmatprep.subr.bf16.mxu0 0
    %881 = vmatpush2.bf16.msra.mxu0 0
    %882 = vmatprep.subr.bf16.mxu0 0
    %883 = vmatpush2.bf16.msra.mxu0 0
    %884 = vmatprep.mubr.bf16.mxu0 0
    %885 = vmatmul.mubr.bf16.gmra.mxu0 %v850
    %v886 = vpop.f32.mrf.mxu0
    %v887 = vadd.f32 %v829, %v886
    %v888 = vpop.f32.mrf.mxu0
    %v889 = vpop.f32.mrf.mxu0
    %v890 = vpop.f32.mrf.mxu0
    %891 = vdwg.mxu0
    %v892 = vadd.f32 %v887, %v514
    %v893 = vsub.f32 0.0, %v892
    %v894 = vmul.f32 %v893, 1.442695
    %v895 = vpow.pop %v894
    %v896 = vadd.f32 %v895, 1.0
    %v897 = vrcp.pop %v896
    %v898 = vtanh.pop %v892
    %v899 = vsel %vm501, %v897, %v898
    %901 = vrot.lane.b32.xlu0 %v545, 32
    %v902 = vpop.permute.xlu0 %901
    %v904 = vmul.f32 %v899, %v902
    %906 = vrot.lane.b32.xlu0 %v899, 32
    %v907 = vpop.permute.xlu0 %906
    %v909 = vmul.f32 %v899, %v907
    %911 = vrot.lane.b32.xlu0 %v909, 32
    %v912 = vpop.permute.xlu0 %911
    %v914 = vadd.f32 %v904, %v912
    %v915 = vtanh.pop %v914
    %917 = vrot.lane.b32.xlu0 %v915, 32
    %v918 = vpop.permute.xlu0 %917
    %v920 = vmul.f32 %v899, %v918
    %v921 = vld [vmem:[#allocation2 + $0x8] sm:$0xff]
    %922 = vmatprep.subr.bf16.mxu0 0
    %923 = vmatpush1.bf16.msra.mxu0 0
    %924 = vmatprep.subr.bf16.mxu0 0
    %925 = vmatpush1.bf16.msra.mxu0 0
    %926 = vmatprep.subr.bf16.mxu0 0
    %927 = vmatpush1.bf16.msra.mxu0 0
    %928 = vmatprep.subr.bf16.mxu0 0
    %929 = vmatpush1.bf16.msra.mxu0 0
    %930 = vmatprep.subr.bf16.mxu0 0
    %931 = vmatpush1.bf16.msra.mxu0 0
    %932 = vmatprep.subr.bf16.mxu0 0
    %933 = vmatpush1.bf16.msra.mxu0 0
    %934 = vmatprep.subr.bf16.mxu0 0
    %935 = vmatpush1.bf16.msra.mxu0 %v557
    %936 = vmatprep.subr.bf16.mxu0 0
    %937 = vmatpush1.bf16.msra.mxu0 %v556
    %938 = vmatprep.subr.bf16.mxu0 0
    %939 = vmatpush2.bf16.msra.mxu0 0
    %940 = vmatprep.subr.bf16.mxu0 0
    %941 = vmatpush2.bf16.msra.mxu0 0
    %942 = vmatprep.subr.bf16.mxu0 0
    %943 = vmatpush2.bf16.msra.mxu0 0
    %944 = vmatprep.subr.bf16.mxu0 0
    %945 = vmatpush2.bf16.msra.mxu0 0
    %946 = vmatprep.subr.bf16.mxu0 0
    %947 = vmatpush2.bf16.msra.mxu0 0
    %948 = vmatprep.subr.bf16.mxu0 0
    %949 = vmatpush2.bf16.msra.mxu0 0
    %950 = vmatprep.subr.bf16.mxu0 0
    %951 = vmatpush2.bf16.msra.mxu0 0
    %952 = vmatprep.subr.bf16.mxu0 0
    %953 = vmatpush2.bf16.msra.mxu0 0
    %954 = vmatprep.mubr.bf16.mxu0 0
    %955 = vmatmul.mubr.bf16.gmra.mxu0 %v706
    %v956 = vpop.f32.mrf.mxu0
    %v957 = vadd.f32 0.0, %v956
    %v958 = vpop.f32.mrf.mxu0
    %v959 = vpop.f32.mrf.mxu0
    %v960 = vpop.f32.mrf.mxu0
    %961 = vdwg.mxu0
    %v962 = vadd.f32 %v921, %v957
    %v963 = vsub.f32 0.0, %v962
    %v964 = vmul.f32 %v963, 1.442695
    %v965 = vpow.pop %v964
    %v966 = vadd.f32 %v965, 1.0
    %v967 = vrcp.pop %v966
    %v968 = vtanh.pop %v962
    %v969 = vsel %vm501, %v967, %v968
    %v970 = vmul.f32 %v969, %v626
    %972 = vrot.lane.b32.xlu0 %v969, 32
    %v973 = vpop.permute.xlu0 %972
    %v975 = vmul.f32 %v969, %v973
    %977 = vrot.lane.b32.xlu0 %v975, 32
    %v978 = vpop.permute.xlu0 %977
    %v980 = vadd.f32 %v970, %v978
    %v981 = vtanh.pop %v980
    %983 = vrot.lane.b32.xlu0 %v981, 32
    %v984 = vpop.permute.xlu0 %983
    %v986 = vmul.f32 %v969, %v984
    %v987 = vpack.c.bf16 %v986, %v986
    %988 = vmatprep.subr.bf16.mxu0 0
    %989 = vmatpush1.bf16.msra.mxu0 0
    %990 = vmatprep.subr.bf16.mxu0 0
    %991 = vmatpush1.bf16.msra.mxu0 0
    %992 = vmatprep.subr.bf16.mxu0 0
    %993 = vmatpush1.bf16.msra.mxu0 0
    %994 = vmatprep.subr.bf16.mxu0 0
    %995 = vmatpush1.bf16.msra.mxu0 0
    %996 = vmatprep.subr.bf16.mxu0 0
    %997 = vmatpush1.bf16.msra.mxu0 0
    %998 = vmatprep.subr.bf16.mxu0 0
    %999 = vmatpush1.bf16.msra.mxu0 0
    %1000 = vmatprep.subr.bf16.mxu0 0
    %1001 = vmatpush1.bf16.msra.mxu0 %v644
    %1002 = vmatprep.subr.bf16.mxu0 0
    %1003 = vmatpush1.bf16.msra.mxu0 %v643
    %1004 = vmatprep.subr.bf16.mxu0 0
    %1005 = vmatpush2.bf16.msra.mxu0 0
    %1006 = vmatprep.subr.bf16.mxu0 0
    %1007 = vmatpush2.bf16.msra.mxu0 0
    %1008 = vmatprep.subr.bf16.mxu0 0
    %1009 = vmatpush2.bf16.msra.mxu0 0
    %1010 = vmatprep.subr.bf16.mxu0 0
    %1011 = vmatpush2.bf16.msra.mxu0 0
    %1012 = vmatprep.subr.bf16.mxu0 0
    %1013 = vmatpush2.bf16.msra.mxu0 0
    %1014 = vmatprep.subr.bf16.mxu0 0
    %1015 = vmatpush2.bf16.msra.mxu0 0
    %1016 = vmatprep.subr.bf16.mxu0 0
    %1017 = vmatpush2.bf16.msra.mxu0 0
    %1018 = vmatprep.subr.bf16.mxu0 0
    %1019 = vmatpush2.bf16.msra.mxu0 0
    %1020 = vmatprep.mubr.bf16.mxu0 0
    %1021 = vmatmul.mubr.bf16.gmra.mxu0 %v850
    %v1022 = vpop.f32.mrf.mxu0
    %v1023 = vadd.f32 0.0, %v1022
    %v1024 = vpop.f32.mrf.mxu0
    %v1025 = vpop.f32.mrf.mxu0
    %v1026 = vpop.f32.mrf.mxu0
    %1027 = vdwg.mxu0
    %1029 = vrot.lane.b32.xlu0 %v987, 64
    %v1030 = vpop.permute.xlu0 %1029
    %v1032 = vsel %vm560, %v1030, 0
    %1034 = vmatprep.subr.bf16.mxu0 0
    %1035 = vmatpush1.bf16.msra.mxu0 0
    %1036 = vmatprep.subr.bf16.mxu0 0
    %1037 = vmatpush1.bf16.msra.mxu0 0
    %1038 = vmatprep.subr.bf16.mxu0 0
    %1039 = vmatpush1.bf16.msra.mxu0 0
    %1040 = vmatprep.subr.bf16.mxu0 0
    %1041 = vmatpush1.bf16.msra.mxu0 0
    %1042 = vmatprep.subr.bf16.mxu0 0
    %1043 = vmatpush1.bf16.msra.mxu0 0
    %1044 = vmatprep.subr.bf16.mxu0 0
    %1045 = vmatpush1.bf16.msra.mxu0 0
    %1046 = vmatprep.subr.bf16.mxu0 0
    %1047 = vmatpush1.bf16.msra.mxu0 %v702
    %1048 = vmatprep.subr.bf16.mxu0 0
    %1049 = vmatpush1.bf16.msra.mxu0 %v701
    %1050 = vmatprep.subr.bf16.mxu0 0
    %1051 = vmatpush2.bf16.msra.mxu0 0
    %1052 = vmatprep.subr.bf16.mxu0 0
    %1053 = vmatpush2.bf16.msra.mxu0 0
    %1054 = vmatprep.subr.bf16.mxu0 0
    %1055 = vmatpush2.bf16.msra.mxu0 0
    %1056 = vmatprep.subr.bf16.mxu0 0
    %1057 = vmatpush2.bf16.msra.mxu0 0
    %1058 = vmatprep.subr.bf16.mxu0 0
    %1059 = vmatpush2.bf16.msra.mxu0 0
    %1060 = vmatprep.subr.bf16.mxu0 0
    %1061 = vmatpush2.bf16.msra.mxu0 0
    %1062 = vmatprep.subr.bf16.mxu0 0
    %1063 = vmatpush2.bf16.msra.mxu0 0
    %1064 = vmatprep.subr.bf16.mxu0 0
    %1065 = vmatpush2.bf16.msra.mxu0 0
    %1066 = vmatprep.mubr.bf16.mxu0 0
    %1067 = vmatmul.mubr.bf16.gmra.mxu0 %v1032
    %v1068 = vpop.f32.mrf.mxu0
    %v1069 = vadd.f32 %v1023, %v1068
    %v1070 = vpop.f32.mrf.mxu0
    %v1071 = vpop.f32.mrf.mxu0
    %v1072 = vpop.f32.mrf.mxu0
    %1073 = vdwg.mxu0
    %v1074 = vadd.f32 %v1069, %v507
    %v1075 = vsub.f32 0.0, %v1074
    %v1076 = vmul.f32 %v1075, 1.442695
    %v1077 = vpow.pop %v1076
    %v1078 = vadd.f32 %v1077, 1.0
    %v1079 = vrcp.pop %v1078
    %v1080 = vtanh.pop %v1074
    %v1081 = vsel %vm501, %v1079, %v1080
    %v1082 = vmul.f32 %v1081, %v770
    %1084 = vrot.lane.b32.xlu0 %v1081, 32
    %v1085 = vpop.permute.xlu0 %1084
    %v1087 = vmul.f32 %v1081, %v1085
    %1089 = vrot.lane.b32.xlu0 %v1087, 32
    %v1090 = vpop.permute.xlu0 %1089
    %v1092 = vadd.f32 %v1082, %v1090
    %v1093 = vtanh.pop %v1092
    %1095 = vrot.lane.b32.xlu0 %v1093, 32
    %v1096 = vpop.permute.xlu0 %1095
    %v1098 = vmul.f32 %v1081, %v1096
    %v1099 = vpack.c.bf16 %v1098, %v1098
    %v1100 = vpack.c.bf16 %v920, %v920
    %1102 = vrot.lane.b32.xlu0 %v1100, 64
    %v1103 = vpop.permute.xlu0 %1102
    %v1105 = vsel %vm560, %v1103, 0
    %1107 = vmatprep.subr.bf16.mxu0 0
    %1108 = vmatpush1.bf16.msra.mxu0 0
    %1109 = vmatprep.subr.bf16.mxu0 0
    %1110 = vmatpush1.bf16.msra.mxu0 0
    %1111 = vmatprep.subr.bf16.mxu0 0
    %1112 = vmatpush1.bf16.msra.mxu0 0
    %1113 = vmatprep.subr.bf16.mxu0 0
    %1114 = vmatpush1.bf16.msra.mxu0 0
    %1115 = vmatprep.subr.bf16.mxu0 0
    %1116 = vmatpush1.bf16.msra.mxu0 0
    %1117 = vmatprep.subr.bf16.mxu0 0
    %1118 = vmatpush1.bf16.msra.mxu0 0
    %1119 = vmatprep.subr.bf16.mxu0 0
    %1120 = vmatpush1.bf16.msra.mxu0 %v788
    %1121 = vmatprep.subr.bf16.mxu0 0
    %1122 = vmatpush1.bf16.msra.mxu0 %v787
    %1123 = vmatprep.subr.bf16.mxu0 0
    %1124 = vmatpush2.bf16.msra.mxu0 0
    %1125 = vmatprep.subr.bf16.mxu0 0
    %1126 = vmatpush2.bf16.msra.mxu0 0
    %1127 = vmatprep.subr.bf16.mxu0 0
    %1128 = vmatpush2.bf16.msra.mxu0 0
    %1129 = vmatprep.subr.bf16.mxu0 0
    %1130 = vmatpush2.bf16.msra.mxu0 0
    %1131 = vmatprep.subr.bf16.mxu0 0
    %1132 = vmatpush2.bf16.msra.mxu0 0
    %1133 = vmatprep.subr.bf16.mxu0 0
    %1134 = vmatpush2.bf16.msra.mxu0 0
    %1135 = vmatprep.subr.bf16.mxu0 0
    %1136 = vmatpush2.bf16.msra.mxu0 0
    %1137 = vmatprep.subr.bf16.mxu0 0
    %1138 = vmatpush2.bf16.msra.mxu0 0
    %1139 = vmatprep.mubr.bf16.mxu0 0
    %1140 = vmatmul.mubr.bf16.gmra.mxu0 %v1105
    %v1141 = vpop.f32.mrf.mxu0
    %v1142 = vadd.f32 0.0, %v1141
    %v1143 = vpop.f32.mrf.mxu0
    %v1144 = vpop.f32.mrf.mxu0
    %v1145 = vpop.f32.mrf.mxu0
    %1146 = vdwg.mxu0
    %1148 = vrot.lane.b32.xlu0 %v1099, 64
    %v1149 = vpop.permute.xlu0 %1148
    %v1151 = vsel %vm560, %v1149, 0
    %1153 = vmatprep.subr.bf16.mxu0 0
    %1154 = vmatpush1.bf16.msra.mxu0 0
    %1155 = vmatprep.subr.bf16.mxu0 0
    %1156 = vmatpush1.bf16.msra.mxu0 0
    %1157 = vmatprep.subr.bf16.mxu0 0
    %1158 = vmatpush1.bf16.msra.mxu0 0
    %1159 = vmatprep.subr.bf16.mxu0 0
    %1160 = vmatpush1.bf16.msra.mxu0 0
    %1161 = vmatprep.subr.bf16.mxu0 0
    %1162 = vmatpush1.bf16.msra.mxu0 0
    %1163 = vmatprep.subr.bf16.mxu0 0
    %1164 = vmatpush1.bf16.msra.mxu0 0
    %1165 = vmatprep.subr.bf16.mxu0 0
    %1166 = vmatpush1.bf16.msra.mxu0 %v846
    %1167 = vmatprep.subr.bf16.mxu0 0
    %1168 = vmatpush1.bf16.msra.mxu0 %v845
    %1169 = vmatprep.subr.bf16.mxu0 0
    %1170 = vmatpush2.bf16.msra.mxu0 0
    %1171 = vmatprep.subr.bf16.mxu0 0
    %1172 = vmatpush2.bf16.msra.mxu0 0
    %1173 = vmatprep.subr.bf16.mxu0 0
    %1174 = vmatpush2.bf16.msra.mxu0 0
    %1175 = vmatprep.subr.bf16.mxu0 0
    %1176 = vmatpush2.bf16.msra.mxu0 0
    %1177 = vmatprep.subr.bf16.mxu0 0
    %1178 = vmatpush2.bf16.msra.mxu0 0
    %1179 = vmatprep.subr.bf16.mxu0 0
    %1180 = vmatpush2.bf16.msra.mxu0 0
    %1181 = vmatprep.subr.bf16.mxu0 0
    %1182 = vmatpush2.bf16.msra.mxu0 0
    %1183 = vmatprep.subr.bf16.mxu0 0
    %1184 = vmatpush2.bf16.msra.mxu0 0
    %1185 = vmatprep.mubr.bf16.mxu0 0
    %1186 = vmatmul.mubr.bf16.gmra.mxu0 %v1151
    %v1187 = vpop.f32.mrf.mxu0
    %v1188 = vadd.f32 %v1142, %v1187
    %v1189 = vpop.f32.mrf.mxu0
    %v1190 = vpop.f32.mrf.mxu0
    %v1191 = vpop.f32.mrf.mxu0
    %1192 = vdwg.mxu0
    %v1193 = vadd.f32 %v1188, %v514
    %v1194 = vsub.f32 0.0, %v1193
    %v1195 = vmul.f32 %v1194, 1.442695
    %v1196 = vpow.pop %v1195
    %v1197 = vadd.f32 %v1196, 1.0
    %v1198 = vrcp.pop %v1197
    %v1199 = vtanh.pop %v1193
    %v1200 = vsel %vm501, %v1198, %v1199
    %v1201 = vmul.f32 %v1200, %v914
    %1203 = vrot.lane.b32.xlu0 %v1200, 32
    %v1204 = vpop.permute.xlu0 %1203
    %v1206 = vmul.f32 %v1200, %v1204
    %1208 = vrot.lane.b32.xlu0 %v1206, 32
    %v1209 = vpop.permute.xlu0 %1208
    %v1211 = vadd.f32 %v1201, %v1209
    %v1212 = vtanh.pop %v1211
    %1214 = vrot.lane.b32.xlu0 %v1212, 32
    %v1215 = vpop.permute.xlu0 %1214
    %v1217 = vmul.f32 %v1200, %v1215
    %v1218 = vld [vmem:[#allocation2 + $0x10] sm:$0xff]
    %1219 = vmatprep.subr.bf16.mxu0 0
    %1220 = vmatpush1.bf16.msra.mxu0 0
    %1221 = vmatprep.subr.bf16.mxu0 0
    %1222 = vmatpush1.bf16.msra.mxu0 0
    %1223 = vmatprep.subr.bf16.mxu0 0
    %1224 = vmatpush1.bf16.msra.mxu0 0
    %1225 = vmatprep.subr.bf16.mxu0 0
    %1226 = vmatpush1.bf16.msra.mxu0 0
    %1227 = vmatprep.subr.bf16.mxu0 0
    %1228 = vmatpush1.bf16.msra.mxu0 0
    %1229 = vmatprep.subr.bf16.mxu0 0
    %1230 = vmatpush1.bf16.msra.mxu0 0
    %1231 = vmatprep.subr.bf16.mxu0 0
    %1232 = vmatpush1.bf16.msra.mxu0 %v557
    %1233 = vmatprep.subr.bf16.mxu0 0
    %1234 = vmatpush1.bf16.msra.mxu0 %v556
    %1235 = vmatprep.subr.bf16.mxu0 0
    %1236 = vmatpush2.bf16.msra.mxu0 0
    %1237 = vmatprep.subr.bf16.mxu0 0
    %1238 = vmatpush2.bf16.msra.mxu0 0
    %1239 = vmatprep.subr.bf16.mxu0 0
    %1240 = vmatpush2.bf16.msra.mxu0 0
    %1241 = vmatprep.subr.bf16.mxu0 0
    %1242 = vmatpush2.bf16.msra.mxu0 0
    %1243 = vmatprep.subr.bf16.mxu0 0
    %1244 = vmatpush2.bf16.msra.mxu0 0
    %1245 = vmatprep.subr.bf16.mxu0 0
    %1246 = vmatpush2.bf16.msra.mxu0 0
    %1247 = vmatprep.subr.bf16.mxu0 0
    %1248 = vmatpush2.bf16.msra.mxu0 0
    %1249 = vmatprep.subr.bf16.mxu0 0
    %1250 = vmatpush2.bf16.msra.mxu0 0
    %1251 = vmatprep.mubr.bf16.mxu0 0
    %1252 = vmatmul.mubr.bf16.gmra.mxu0 %v1032
    %v1253 = vpop.f32.mrf.mxu0
    %v1254 = vadd.f32 0.0, %v1253
    %v1255 = vpop.f32.mrf.mxu0
    %v1256 = vpop.f32.mrf.mxu0
    %v1257 = vpop.f32.mrf.mxu0
    %1258 = vdwg.mxu0
    %v1259 = vadd.f32 %v1218, %v1254
    %v1260 = vsub.f32 0.0, %v1259
    %v1261 = vmul.f32 %v1260, 1.442695
    %v1262 = vpow.pop %v1261
    %v1263 = vadd.f32 %v1262, 1.0
    %v1264 = vrcp.pop %v1263
    %v1265 = vtanh.pop %v1259
    %v1266 = vsel %vm501, %v1264, %v1265
    %v1267 = vmul.f32 %v1266, %v980
    %1269 = vrot.lane.b32.xlu0 %v1266, 32
    %v1270 = vpop.permute.xlu0 %1269
    %v1272 = vmul.f32 %v1266, %v1270
    %1274 = vrot.lane.b32.xlu0 %v1272, 32
    %v1275 = vpop.permute.xlu0 %1274
    %v1277 = vadd.f32 %v1267, %v1275
    %v1278 = vtanh.pop %v1277
    %1280 = vrot.lane.b32.xlu0 %v1278, 32
    %v1281 = vpop.permute.xlu0 %1280
    %v1283 = vmul.f32 %v1266, %v1281
    %v1284 = vpack.c.bf16 %v1283, %v1283
    %1285 = vmatprep.subr.bf16.mxu0 0
    %1286 = vmatpush1.bf16.msra.mxu0 0
    %1287 = vmatprep.subr.bf16.mxu0 0
    %1288 = vmatpush1.bf16.msra.mxu0 0
    %1289 = vmatprep.subr.bf16.mxu0 0
    %1290 = vmatpush1.bf16.msra.mxu0 0
    %1291 = vmatprep.subr.bf16.mxu0 0
    %1292 = vmatpush1.bf16.msra.mxu0 0
    %1293 = vmatprep.subr.bf16.mxu0 0
    %1294 = vmatpush1.bf16.msra.mxu0 0
    %1295 = vmatprep.subr.bf16.mxu0 0
    %1296 = vmatpush1.bf16.msra.mxu0 0
    %1297 = vmatprep.subr.bf16.mxu0 0
    %1298 = vmatpush1.bf16.msra.mxu0 %v644
    %1299 = vmatprep.subr.bf16.mxu0 0
    %1300 = vmatpush1.bf16.msra.mxu0 %v643
    %1301 = vmatprep.subr.bf16.mxu0 0
    %1302 = vmatpush2.bf16.msra.mxu0 0
    %1303 = vmatprep.subr.bf16.mxu0 0
    %1304 = vmatpush2.bf16.msra.mxu0 0
    %1305 = vmatprep.subr.bf16.mxu0 0
    %1306 = vmatpush2.bf16.msra.mxu0 0
    %1307 = vmatprep.subr.bf16.mxu0 0
    %1308 = vmatpush2.bf16.msra.mxu0 0
    %1309 = vmatprep.subr.bf16.mxu0 0
    %1310 = vmatpush2.bf16.msra.mxu0 0
    %1311 = vmatprep.subr.bf16.mxu0 0
    %1312 = vmatpush2.bf16.msra.mxu0 0
    %1313 = vmatprep.subr.bf16.mxu0 0
    %1314 = vmatpush2.bf16.msra.mxu0 0
    %1315 = vmatprep.subr.bf16.mxu0 0
    %1316 = vmatpush2.bf16.msra.mxu0 0
    %1317 = vmatprep.mubr.bf16.mxu0 0
    %1318 = vmatmul.mubr.bf16.gmra.mxu0 %v1151
    %v1319 = vpop.f32.mrf.mxu0
    %v1320 = vadd.f32 0.0, %v1319
    %v1321 = vpop.f32.mrf.mxu0
    %v1322 = vpop.f32.mrf.mxu0
    %v1323 = vpop.f32.mrf.mxu0
    %1324 = vdwg.mxu0
    %1326 = vrot.lane.b32.xlu0 %v1284, 64
    %v1327 = vpop.permute.xlu0 %1326
    %v1329 = vsel %vm560, %v1327, 0
    %1331 = vmatprep.subr.bf16.mxu0 0
    %1332 = vmatpush1.bf16.msra.mxu0 0
    %1333 = vmatprep.subr.bf16.mxu0 0
    %1334 = vmatpush1.bf16.msra.mxu0 0
    %1335 = vmatprep.subr.bf16.mxu0 0
    %1336 = vmatpush1.bf16.msra.mxu0 0
    %1337 = vmatprep.subr.bf16.mxu0 0
    %1338 = vmatpush1.bf16.msra.mxu0 0
    %1339 = vmatprep.subr.bf16.mxu0 0
    %1340 = vmatpush1.bf16.msra.mxu0 0
    %1341 = vmatprep.subr.bf16.mxu0 0
    %1342 = vmatpush1.bf16.msra.mxu0 0
    %1343 = vmatprep.subr.bf16.mxu0 0
    %1344 = vmatpush1.bf16.msra.mxu0 %v702
    %1345 = vmatprep.subr.bf16.mxu0 0
    %1346 = vmatpush1.bf16.msra.mxu0 %v701
    %1347 = vmatprep.subr.bf16.mxu0 0
    %1348 = vmatpush2.bf16.msra.mxu0 0
    %1349 = vmatprep.subr.bf16.mxu0 0
    %1350 = vmatpush2.bf16.msra.mxu0 0
    %1351 = vmatprep.subr.bf16.mxu0 0
    %1352 = vmatpush2.bf16.msra.mxu0 0
    %1353 = vmatprep.subr.bf16.mxu0 0
    %1354 = vmatpush2.bf16.msra.mxu0 0
    %1355 = vmatprep.subr.bf16.mxu0 0
    %1356 = vmatpush2.bf16.msra.mxu0 0
    %1357 = vmatprep.subr.bf16.mxu0 0
    %1358 = vmatpush2.bf16.msra.mxu0 0
    %1359 = vmatprep.subr.bf16.mxu0 0
    %1360 = vmatpush2.bf16.msra.mxu0 0
    %1361 = vmatprep.subr.bf16.mxu0 0
    %1362 = vmatpush2.bf16.msra.mxu0 0
    %1363 = vmatprep.mubr.bf16.mxu0 0
    %1364 = vmatmul.mubr.bf16.gmra.mxu0 %v1329
    %v1365 = vpop.f32.mrf.mxu0
    %v1366 = vadd.f32 %v1320, %v1365
    %v1367 = vpop.f32.mrf.mxu0
    %v1368 = vpop.f32.mrf.mxu0
    %v1369 = vpop.f32.mrf.mxu0
    %1370 = vdwg.mxu0
    %v1371 = vadd.f32 %v1366, %v507
    %v1372 = vsub.f32 0.0, %v1371
    %v1373 = vmul.f32 %v1372, 1.442695
    %v1374 = vpow.pop %v1373
    %v1375 = vadd.f32 %v1374, 1.0
    %v1376 = vrcp.pop %v1375
    %v1377 = vtanh.pop %v1371
    %v1378 = vsel %vm501, %v1376, %v1377
    %v1379 = vmul.f32 %v1378, %v1092
    %1381 = vrot.lane.b32.xlu0 %v1378, 32
    %v1382 = vpop.permute.xlu0 %1381
    %v1384 = vmul.f32 %v1378, %v1382
    %1386 = vrot.lane.b32.xlu0 %v1384, 32
    %v1387 = vpop.permute.xlu0 %1386
    %v1389 = vadd.f32 %v1379, %v1387
    %v1390 = vtanh.pop %v1389
    %1392 = vrot.lane.b32.xlu0 %v1390, 32
    %v1393 = vpop.permute.xlu0 %1392
    %v1395 = vmul.f32 %v1378, %v1393
    %v1396 = vpack.c.bf16 %v1395, %v1395
    %v1397 = vpack.c.bf16 %v1217, %v1217
    %1399 = vrot.lane.b32.xlu0 %v1397, 64
    %v1400 = vpop.permute.xlu0 %1399
    %v1402 = vsel %vm560, %v1400, 0
    %1404 = vmatprep.subr.bf16.mxu0 0
    %1405 = vmatpush1.bf16.msra.mxu0 0
    %1406 = vmatprep.subr.bf16.mxu0 0
    %1407 = vmatpush1.bf16.msra.mxu0 0
    %1408 = vmatprep.subr.bf16.mxu0 0
    %1409 = vmatpush1.bf16.msra.mxu0 0
    %1410 = vmatprep.subr.bf16.mxu0 0
    %1411 = vmatpush1.bf16.msra.mxu0 0
    %1412 = vmatprep.subr.bf16.mxu0 0
    %1413 = vmatpush1.bf16.msra.mxu0 0
    %1414 = vmatprep.subr.bf16.mxu0 0
    %1415 = vmatpush1.bf16.msra.mxu0 0
    %1416 = vmatprep.subr.bf16.mxu0 0
    %1417 = vmatpush1.bf16.msra.mxu0 %v788
    %1418 = vmatprep.subr.bf16.mxu0 0
    %1419 = vmatpush1.bf16.msra.mxu0 %v787
    %1420 = vmatprep.subr.bf16.mxu0 0
    %1421 = vmatpush2.bf16.msra.mxu0 0
    %1422 = vmatprep.subr.bf16.mxu0 0
    %1423 = vmatpush2.bf16.msra.mxu0 0
    %1424 = vmatprep.subr.bf16.mxu0 0
    %1425 = vmatpush2.bf16.msra.mxu0 0
    %1426 = vmatprep.subr.bf16.mxu0 0
    %1427 = vmatpush2.bf16.msra.mxu0 0
    %1428 = vmatprep.subr.bf16.mxu0 0
    %1429 = vmatpush2.bf16.msra.mxu0 0
    %1430 = vmatprep.subr.bf16.mxu0 0
    %1431 = vmatpush2.bf16.msra.mxu0 0
    %1432 = vmatprep.subr.bf16.mxu0 0
    %1433 = vmatpush2.bf16.msra.mxu0 0
    %1434 = vmatprep.subr.bf16.mxu0 0
    %1435 = vmatpush2.bf16.msra.mxu0 0
    %1436 = vmatprep.mubr.bf16.mxu0 0
    %1437 = vmatmul.mubr.bf16.gmra.mxu0 %v1402
    %v1438 = vpop.f32.mrf.mxu0
    %v1439 = vadd.f32 0.0, %v1438
    %v1440 = vpop.f32.mrf.mxu0
    %v1441 = vpop.f32.mrf.mxu0
    %v1442 = vpop.f32.mrf.mxu0
    %1443 = vdwg.mxu0
    %1445 = vrot.lane.b32.xlu0 %v1396, 64
    %v1446 = vpop.permute.xlu0 %1445
    %v1448 = vsel %vm560, %v1446, 0
    %1450 = vmatprep.subr.bf16.mxu0 0
    %1451 = vmatpush1.bf16.msra.mxu0 0
    %1452 = vmatprep.subr.bf16.mxu0 0
    %1453 = vmatpush1.bf16.msra.mxu0 0
    %1454 = vmatprep.subr.bf16.mxu0 0
    %1455 = vmatpush1.bf16.msra.mxu0 0
    %1456 = vmatprep.subr.bf16.mxu0 0
    %1457 = vmatpush1.bf16.msra.mxu0 0
    %1458 = vmatprep.subr.bf16.mxu0 0
    %1459 = vmatpush1.bf16.msra.mxu0 0
    %1460 = vmatprep.subr.bf16.mxu0 0
    %1461 = vmatpush1.bf16.msra.mxu0 0
    %1462 = vmatprep.subr.bf16.mxu0 0
    %1463 = vmatpush1.bf16.msra.mxu0 %v846
    %1464 = vmatprep.subr.bf16.mxu0 0
    %1465 = vmatpush1.bf16.msra.mxu0 %v845
    %1466 = vmatprep.subr.bf16.mxu0 0
    %1467 = vmatpush2.bf16.msra.mxu0 0
    %1468 = vmatprep.subr.bf16.mxu0 0
    %1469 = vmatpush2.bf16.msra.mxu0 0
    %1470 = vmatprep.subr.bf16.mxu0 0
    %1471 = vmatpush2.bf16.msra.mxu0 0
    %1472 = vmatprep.subr.bf16.mxu0 0
    %1473 = vmatpush2.bf16.msra.mxu0 0
    %1474 = vmatprep.subr.bf16.mxu0 0
    %1475 = vmatpush2.bf16.msra.mxu0 0
    %1476 = vmatprep.subr.bf16.mxu0 0
    %1477 = vmatpush2.bf16.msra.mxu0 0
    %1478 = vmatprep.subr.bf16.mxu0 0
    %1479 = vmatpush2.bf16.msra.mxu0 0
    %1480 = vmatprep.subr.bf16.mxu0 0
    %1481 = vmatpush2.bf16.msra.mxu0 0
    %1482 = vmatprep.mubr.bf16.mxu0 0
    %1483 = vmatmul.mubr.bf16.gmra.mxu0 %v1448
    %v1484 = vpop.f32.mrf.mxu0
    %v1485 = vadd.f32 %v1439, %v1484
    %v1486 = vpop.f32.mrf.mxu0
    %v1487 = vpop.f32.mrf.mxu0
    %v1488 = vpop.f32.mrf.mxu0
    %1489 = vdwg.mxu0
    %v1490 = vadd.f32 %v1485, %v514
    %v1491 = vsub.f32 0.0, %v1490
    %v1492 = vmul.f32 %v1491, 1.442695
    %v1493 = vpow.pop %v1492
    %v1494 = vadd.f32 %v1493, 1.0
    %v1495 = vrcp.pop %v1494
    %v1496 = vtanh.pop %v1490
    %v1497 = vsel %vm501, %v1495, %v1496
    %v1498 = vmul.f32 %v1497, %v1211
    %1500 = vrot.lane.b32.xlu0 %v1497, 32
    %v1501 = vpop.permute.xlu0 %1500
    %v1503 = vmul.f32 %v1497, %v1501
    %1505 = vrot.lane.b32.xlu0 %v1503, 32
    %v1506 = vpop.permute.xlu0 %1505
    %v1508 = vadd.f32 %v1498, %v1506
    %v1509 = vtanh.pop %v1508
    %1511 = vrot.lane.b32.xlu0 %v1509, 32
    %v1512 = vpop.permute.xlu0 %1511
    %v1514 = vmul.f32 %v1497, %v1512
    %v1515 = vld [vmem:[#allocation2 + $0x18] sm:$0xff]
    %1516 = vmatprep.subr.bf16.mxu0 0
    %1517 = vmatpush1.bf16.msra.mxu0 0
    %1518 = vmatprep.subr.bf16.mxu0 0
    %1519 = vmatpush1.bf16.msra.mxu0 0
    %1520 = vmatprep.subr.bf16.mxu0 0
    %1521 = vmatpush1.bf16.msra.mxu0 0
    %1522 = vmatprep.subr.bf16.mxu0 0
    %1523 = vmatpush1.bf16.msra.mxu0 0
    %1524 = vmatprep.subr.bf16.mxu0 0
    %1525 = vmatpush1.bf16.msra.mxu0 0
    %1526 = vmatprep.subr.bf16.mxu0 0
    %1527 = vmatpush1.bf16.msra.mxu0 0
    %1528 = vmatprep.subr.bf16.mxu0 0
    %1529 = vmatpush1.bf16.msra.mxu0 %v557
    %1530 = vmatprep.subr.bf16.mxu0 0
    %1531 = vmatpush1.bf16.msra.mxu0 %v556
    %1532 = vmatprep.subr.bf16.mxu0 0
    %1533 = vmatpush2.bf16.msra.mxu0 0
    %1534 = vmatprep.subr.bf16.mxu0 0
    %1535 = vmatpush2.bf16.msra.mxu0 0
    %1536 = vmatprep.subr.bf16.mxu0 0
    %1537 = vmatpush2.bf16.msra.mxu0 0
    %1538 = vmatprep.subr.bf16.mxu0 0
    %1539 = vmatpush2.bf16.msra.mxu0 0
    %1540 = vmatprep.subr.bf16.mxu0 0
    %1541 = vmatpush2.bf16.msra.mxu0 0
    %1542 = vmatprep.subr.bf16.mxu0 0
    %1543 = vmatpush2.bf16.msra.mxu0 0
    %1544 = vmatprep.subr.bf16.mxu0 0
    %1545 = vmatpush2.bf16.msra.mxu0 0
    %1546 = vmatprep.subr.bf16.mxu0 0
    %1547 = vmatpush2.bf16.msra.mxu0 0
    %1548 = vmatprep.mubr.bf16.mxu0 0
    %1549 = vmatmul.mubr.bf16.gmra.mxu0 %v1329
    %v1550 = vpop.f32.mrf.mxu0
    %v1551 = vadd.f32 0.0, %v1550
    %v1552 = vpop.f32.mrf.mxu0
    %v1553 = vpop.f32.mrf.mxu0
    %v1554 = vpop.f32.mrf.mxu0
    %1555 = vdwg.mxu0
    %v1556 = vadd.f32 %v1515, %v1551
    %v1557 = vsub.f32 0.0, %v1556
    %v1558 = vmul.f32 %v1557, 1.442695
    %v1559 = vpow.pop %v1558
    %v1560 = vadd.f32 %v1559, 1.0
    %v1561 = vrcp.pop %v1560
    %v1562 = vtanh.pop %v1556
    %v1563 = vsel %vm501, %v1561, %v1562
    %v1564 = vmul.f32 %v1563, %v1277
    %1566 = vrot.lane.b32.xlu0 %v1563, 32
    %v1567 = vpop.permute.xlu0 %1566
    %v1569 = vmul.f32 %v1563, %v1567
    %1571 = vrot.lane.b32.xlu0 %v1569, 32
    %v1572 = vpop.permute.xlu0 %1571
    %v1574 = vadd.f32 %v1564, %v1572
    %v1575 = vtanh.pop %v1574
    %1577 = vrot.lane.b32.xlu0 %v1575, 32
    %v1578 = vpop.permute.xlu0 %1577
    %v1580 = vmul.f32 %v1563, %v1578
    %v1581 = vpack.c.bf16 %v1580, %v1580
    %1582 = vmatprep.subr.bf16.mxu0 0
    %1583 = vmatpush1.bf16.msra.mxu0 0
    %1584 = vmatprep.subr.bf16.mxu0 0
    %1585 = vmatpush1.bf16.msra.mxu0 0
    %1586 = vmatprep.subr.bf16.mxu0 0
    %1587 = vmatpush1.bf16.msra.mxu0 0
    %1588 = vmatprep.subr.bf16.mxu0 0
    %1589 = vmatpush1.bf16.msra.mxu0 0
    %1590 = vmatprep.subr.bf16.mxu0 0
    %1591 = vmatpush1.bf16.msra.mxu0 0
    %1592 = vmatprep.subr.bf16.mxu0 0
    %1593 = vmatpush1.bf16.msra.mxu0 0
    %1594 = vmatprep.subr.bf16.mxu0 0
    %1595 = vmatpush1.bf16.msra.mxu0 %v644
    %1596 = vmatprep.subr.bf16.mxu0 0
    %1597 = vmatpush1.bf16.msra.mxu0 %v643
    %1598 = vmatprep.subr.bf16.mxu0 0
    %1599 = vmatpush2.bf16.msra.mxu0 0
    %1600 = vmatprep.subr.bf16.mxu0 0
    %1601 = vmatpush2.bf16.msra.mxu0 0
    %1602 = vmatprep.subr.bf16.mxu0 0
    %1603 = vmatpush2.bf16.msra.mxu0 0
    %1604 = vmatprep.subr.bf16.mxu0 0
    %1605 = vmatpush2.bf16.msra.mxu0 0
    %1606 = vmatprep.subr.bf16.mxu0 0
    %1607 = vmatpush2.bf16.msra.mxu0 0
    %1608 = vmatprep.subr.bf16.mxu0 0
    %1609 = vmatpush2.bf16.msra.mxu0 0
    %1610 = vmatprep.subr.bf16.mxu0 0
    %1611 = vmatpush2.bf16.msra.mxu0 0
    %1612 = vmatprep.subr.bf16.mxu0 0
    %1613 = vmatpush2.bf16.msra.mxu0 0
    %1614 = vmatprep.mubr.bf16.mxu0 0
    %1615 = vmatmul.mubr.bf16.gmra.mxu0 %v1448
    %v1616 = vpop.f32.mrf.mxu0
    %v1617 = vadd.f32 0.0, %v1616
    %v1618 = vpop.f32.mrf.mxu0
    %v1619 = vpop.f32.mrf.mxu0
    %v1620 = vpop.f32.mrf.mxu0
    %1621 = vdwg.mxu0
    %1623 = vrot.lane.b32.xlu0 %v1581, 64
    %v1624 = vpop.permute.xlu0 %1623
    %v1626 = vsel %vm560, %v1624, 0
    %1628 = vmatprep.subr.bf16.mxu0 0
    %1629 = vmatpush1.bf16.msra.mxu0 0
    %1630 = vmatprep.subr.bf16.mxu0 0
    %1631 = vmatpush1.bf16.msra.mxu0 0
    %1632 = vmatprep.subr.bf16.mxu0 0
    %1633 = vmatpush1.bf16.msra.mxu0 0
    %1634 = vmatprep.subr.bf16.mxu0 0
    %1635 = vmatpush1.bf16.msra.mxu0 0
    %1636 = vmatprep.subr.bf16.mxu0 0
    %1637 = vmatpush1.bf16.msra.mxu0 0
    %1638 = vmatprep.subr.bf16.mxu0 0
    %1639 = vmatpush1.bf16.msra.mxu0 0
    %1640 = vmatprep.subr.bf16.mxu0 0
    %1641 = vmatpush1.bf16.msra.mxu0 %v702
    %1642 = vmatprep.subr.bf16.mxu0 0
    %1643 = vmatpush1.bf16.msra.mxu0 %v701
    %1644 = vmatprep.subr.bf16.mxu0 0
    %1645 = vmatpush2.bf16.msra.mxu0 0
    %1646 = vmatprep.subr.bf16.mxu0 0
    %1647 = vmatpush2.bf16.msra.mxu0 0
    %1648 = vmatprep.subr.bf16.mxu0 0
    %1649 = vmatpush2.bf16.msra.mxu0 0
    %1650 = vmatprep.subr.bf16.mxu0 0
    %1651 = vmatpush2.bf16.msra.mxu0 0
    %1652 = vmatprep.subr.bf16.mxu0 0
    %1653 = vmatpush2.bf16.msra.mxu0 0
    %1654 = vmatprep.subr.bf16.mxu0 0
    %1655 = vmatpush2.bf16.msra.mxu0 0
    %1656 = vmatprep.subr.bf16.mxu0 0
    %1657 = vmatpush2.bf16.msra.mxu0 0
    %1658 = vmatprep.subr.bf16.mxu0 0
    %1659 = vmatpush2.bf16.msra.mxu0 0
    %1660 = vmatprep.mubr.bf16.mxu0 0
    %1661 = vmatmul.mubr.bf16.gmra.mxu0 %v1626
    %v1662 = vpop.f32.mrf.mxu0
    %v1663 = vadd.f32 %v1617, %v1662
    %v1664 = vpop.f32.mrf.mxu0
    %v1665 = vpop.f32.mrf.mxu0
    %v1666 = vpop.f32.mrf.mxu0
    %1667 = vdwg.mxu0
    %v1668 = vadd.f32 %v1663, %v507
    %v1669 = vsub.f32 0.0, %v1668
    %v1670 = vmul.f32 %v1669, 1.442695
    %v1671 = vpow.pop %v1670
    %v1672 = vadd.f32 %v1671, 1.0
    %v1673 = vrcp.pop %v1672
    %v1674 = vtanh.pop %v1668
    %v1675 = vsel %vm501, %v1673, %v1674
    %v1676 = vmul.f32 %v1675, %v1389
    %1678 = vrot.lane.b32.xlu0 %v1675, 32
    %v1679 = vpop.permute.xlu0 %1678
    %v1681 = vmul.f32 %v1675, %v1679
    %1683 = vrot.lane.b32.xlu0 %v1681, 32
    %v1684 = vpop.permute.xlu0 %1683
    %v1686 = vadd.f32 %v1676, %v1684
    %v1687 = vtanh.pop %v1686
    %1689 = vrot.lane.b32.xlu0 %v1687, 32
    %v1690 = vpop.permute.xlu0 %1689
    %v1692 = vmul.f32 %v1675, %v1690
    %v1693 = vpack.c.bf16 %v1692, %v1692
    %v1694 = vpack.c.bf16 %v1514, %v1514
    %1696 = vrot.lane.b32.xlu0 %v1694, 64
    %v1697 = vpop.permute.xlu0 %1696
    %v1699 = vsel %vm560, %v1697, 0
    %1701 = vmatprep.subr.bf16.mxu0 0
    %1702 = vmatpush1.bf16.msra.mxu0 0
    %1703 = vmatprep.subr.bf16.mxu0 0
    %1704 = vmatpush1.bf16.msra.mxu0 0
    %1705 = vmatprep.subr.bf16.mxu0 0
    %1706 = vmatpush1.bf16.msra.mxu0 0
    %1707 = vmatprep.subr.bf16.mxu0 0
    %1708 = vmatpush1.bf16.msra.mxu0 0
    %1709 = vmatprep.subr.bf16.mxu0 0
    %1710 = vmatpush1.bf16.msra.mxu0 0
    %1711 = vmatprep.subr.bf16.mxu0 0
    %1712 = vmatpush1.bf16.msra.mxu0 0
    %1713 = vmatprep.subr.bf16.mxu0 0
    %1714 = vmatpush1.bf16.msra.mxu0 %v788
    %1715 = vmatprep.subr.bf16.mxu0 0
    %1716 = vmatpush1.bf16.msra.mxu0 %v787
    %1717 = vmatprep.subr.bf16.mxu0 0
    %1718 = vmatpush2.bf16.msra.mxu0 0
    %1719 = vmatprep.subr.bf16.mxu0 0
    %1720 = vmatpush2.bf16.msra.mxu0 0
    %1721 = vmatprep.subr.bf16.mxu0 0
    %1722 = vmatpush2.bf16.msra.mxu0 0
    %1723 = vmatprep.subr.bf16.mxu0 0
    %1724 = vmatpush2.bf16.msra.mxu0 0
    %1725 = vmatprep.subr.bf16.mxu0 0
    %1726 = vmatpush2.bf16.msra.mxu0 0
    %1727 = vmatprep.subr.bf16.mxu0 0
    %1728 = vmatpush2.bf16.msra.mxu0 0
    %1729 = vmatprep.subr.bf16.mxu0 0
    %1730 = vmatpush2.bf16.msra.mxu0 0
    %1731 = vmatprep.subr.bf16.mxu0 0
    %1732 = vmatpush2.bf16.msra.mxu0 0
    %1733 = vmatprep.mubr.bf16.mxu0 0
    %1734 = vmatmul.mubr.bf16.gmra.mxu0 %v1699
    %v1735 = vpop.f32.mrf.mxu0
    %v1736 = vadd.f32 0.0, %v1735
    %v1737 = vpop.f32.mrf.mxu0
    %v1738 = vpop.f32.mrf.mxu0
    %v1739 = vpop.f32.mrf.mxu0
    %1740 = vdwg.mxu0
    %1742 = vrot.lane.b32.xlu0 %v1693, 64
    %v1743 = vpop.permute.xlu0 %1742
    %v1745 = vsel %vm560, %v1743, 0
    %1747 = vmatprep.subr.bf16.mxu0 0
    %1748 = vmatpush1.bf16.msra.mxu0 0
    %1749 = vmatprep.subr.bf16.mxu0 0
    %1750 = vmatpush1.bf16.msra.mxu0 0
    %1751 = vmatprep.subr.bf16.mxu0 0
    %1752 = vmatpush1.bf16.msra.mxu0 0
    %1753 = vmatprep.subr.bf16.mxu0 0
    %1754 = vmatpush1.bf16.msra.mxu0 0
    %1755 = vmatprep.subr.bf16.mxu0 0
    %1756 = vmatpush1.bf16.msra.mxu0 0
    %1757 = vmatprep.subr.bf16.mxu0 0
    %1758 = vmatpush1.bf16.msra.mxu0 0
    %1759 = vmatprep.subr.bf16.mxu0 0
    %1760 = vmatpush1.bf16.msra.mxu0 %v846
    %1761 = vmatprep.subr.bf16.mxu0 0
    %1762 = vmatpush1.bf16.msra.mxu0 %v845
    %1763 = vmatprep.subr.bf16.mxu0 0
    %1764 = vmatpush2.bf16.msra.mxu0 0
    %1765 = vmatprep.subr.bf16.mxu0 0
    %1766 = vmatpush2.bf16.msra.mxu0 0
    %1767 = vmatprep.subr.bf16.mxu0 0
    %1768 = vmatpush2.bf16.msra.mxu0 0
    %1769 = vmatprep.subr.bf16.mxu0 0
    %1770 = vmatpush2.bf16.msra.mxu0 0
    %1771 = vmatprep.subr.bf16.mxu0 0
    %1772 = vmatpush2.bf16.msra.mxu0 0
    %1773 = vmatprep.subr.bf16.mxu0 0
    %1774 = vmatpush2.bf16.msra.mxu0 0
    %1775 = vmatprep.subr.bf16.mxu0 0
    %1776 = vmatpush2.bf16.msra.mxu0 0
    %1777 = vmatprep.subr.bf16.mxu0 0
    %1778 = vmatpush2.bf16.msra.mxu0 0
    %1779 = vmatprep.mubr.bf16.mxu0 0
    %1780 = vmatmul.mubr.bf16.gmra.mxu0 %v1745
    %v1781 = vpop.f32.mrf.mxu0
    %v1782 = vadd.f32 %v1736, %v1781
    %v1783 = vpop.f32.mrf.mxu0
    %v1784 = vpop.f32.mrf.mxu0
    %v1785 = vpop.f32.mrf.mxu0
    %1786 = vdwg.mxu0
    %v1787 = vadd.f32 %v1782, %v514
    %v1788 = vsub.f32 0.0, %v1787
    %v1789 = vmul.f32 %v1788, 1.442695
    %v1790 = vpow.pop %v1789
    %v1791 = vadd.f32 %v1790, 1.0
    %v1792 = vrcp.pop %v1791
    %v1793 = vtanh.pop %v1787
    %v1794 = vsel %vm501, %v1792, %v1793
    %v1795 = vmul.f32 %v1794, %v1508
    %1797 = vrot.lane.b32.xlu0 %v1794, 32
    %v1798 = vpop.permute.xlu0 %1797
    %v1800 = vmul.f32 %v1794, %v1798
    %1802 = vrot.lane.b32.xlu0 %v1800, 32
    %v1803 = vpop.permute.xlu0 %1802
    %v1805 = vadd.f32 %v1795, %v1803
    %v1806 = vtanh.pop %v1805
    %1808 = vrot.lane.b32.xlu0 %v1806, 32
    %v1809 = vpop.permute.xlu0 %1808
    %v1811 = vmul.f32 %v1794, %v1809
    %v1812 = vld [vmem:[#allocation2 + $0x20] sm:$0xff]
    %1813 = vmatprep.subr.bf16.mxu0 0
    %1814 = vmatpush1.bf16.msra.mxu0 0
    %1815 = vmatprep.subr.bf16.mxu0 0
    %1816 = vmatpush1.bf16.msra.mxu0 0
    %1817 = vmatprep.subr.bf16.mxu0 0
    %1818 = vmatpush1.bf16.msra.mxu0 0
    %1819 = vmatprep.subr.bf16.mxu0 0
    %1820 = vmatpush1.bf16.msra.mxu0 0
    %1821 = vmatprep.subr.bf16.mxu0 0
    %1822 = vmatpush1.bf16.msra.mxu0 0
    %1823 = vmatprep.subr.bf16.mxu0 0
    %1824 = vmatpush1.bf16.msra.mxu0 0
    %1825 = vmatprep.subr.bf16.mxu0 0
    %1826 = vmatpush1.bf16.msra.mxu0 %v557
    %1827 = vmatprep.subr.bf16.mxu0 0
    %1828 = vmatpush1.bf16.msra.mxu0 %v556
    %1829 = vmatprep.subr.bf16.mxu0 0
    %1830 = vmatpush2.bf16.msra.mxu0 0
    %1831 = vmatprep.subr.bf16.mxu0 0
    %1832 = vmatpush2.bf16.msra.mxu0 0
    %1833 = vmatprep.subr.bf16.mxu0 0
    %1834 = vmatpush2.bf16.msra.mxu0 0
    %1835 = vmatprep.subr.bf16.mxu0 0
    %1836 = vmatpush2.bf16.msra.mxu0 0
    %1837 = vmatprep.subr.bf16.mxu0 0
    %1838 = vmatpush2.bf16.msra.mxu0 0
    %1839 = vmatprep.subr.bf16.mxu0 0
    %1840 = vmatpush2.bf16.msra.mxu0 0
    %1841 = vmatprep.subr.bf16.mxu0 0
    %1842 = vmatpush2.bf16.msra.mxu0 0
    %1843 = vmatprep.subr.bf16.mxu0 0
    %1844 = vmatpush2.bf16.msra.mxu0 0
    %1845 = vmatprep.mubr.bf16.mxu0 0
    %1846 = vmatmul.mubr.bf16.gmra.mxu0 %v1626
    %v1847 = vpop.f32.mrf.mxu0
    %v1848 = vadd.f32 0.0, %v1847
    %v1849 = vpop.f32.mrf.mxu0
    %v1850 = vpop.f32.mrf.mxu0
    %v1851 = vpop.f32.mrf.mxu0
    %1852 = vdwg.mxu0
    %v1853 = vadd.f32 %v1812, %v1848
    %v1854 = vsub.f32 0.0, %v1853
    %v1855 = vmul.f32 %v1854, 1.442695
    %v1856 = vpow.pop %v1855
    %v1857 = vadd.f32 %v1856, 1.0
    %v1858 = vrcp.pop %v1857
    %v1859 = vtanh.pop %v1853
    %v1860 = vsel %vm501, %v1858, %v1859
    %v1861 = vmul.f32 %v1860, %v1574
    %1863 = vrot.lane.b32.xlu0 %v1860, 32
    %v1864 = vpop.permute.xlu0 %1863
    %v1866 = vmul.f32 %v1860, %v1864
    %1868 = vrot.lane.b32.xlu0 %v1866, 32
    %v1869 = vpop.permute.xlu0 %1868
    %v1871 = vadd.f32 %v1861, %v1869
    %v1872 = vtanh.pop %v1871
    %1874 = vrot.lane.b32.xlu0 %v1872, 32
    %v1875 = vpop.permute.xlu0 %1874
    %v1877 = vmul.f32 %v1860, %v1875
    %v1878 = vpack.c.bf16 %v1877, %v1877
    %1879 = vmatprep.subr.bf16.mxu0 0
    %1880 = vmatpush1.bf16.msra.mxu0 0
    %1881 = vmatprep.subr.bf16.mxu0 0
    %1882 = vmatpush1.bf16.msra.mxu0 0
    %1883 = vmatprep.subr.bf16.mxu0 0
    %1884 = vmatpush1.bf16.msra.mxu0 0
    %1885 = vmatprep.subr.bf16.mxu0 0
    %1886 = vmatpush1.bf16.msra.mxu0 0
    %1887 = vmatprep.subr.bf16.mxu0 0
    %1888 = vmatpush1.bf16.msra.mxu0 0
    %1889 = vmatprep.subr.bf16.mxu0 0
    %1890 = vmatpush1.bf16.msra.mxu0 0
    %1891 = vmatprep.subr.bf16.mxu0 0
    %1892 = vmatpush1.bf16.msra.mxu0 %v644
    %1893 = vmatprep.subr.bf16.mxu0 0
    %1894 = vmatpush1.bf16.msra.mxu0 %v643
    %1895 = vmatprep.subr.bf16.mxu0 0
    %1896 = vmatpush2.bf16.msra.mxu0 0
    %1897 = vmatprep.subr.bf16.mxu0 0
    %1898 = vmatpush2.bf16.msra.mxu0 0
    %1899 = vmatprep.subr.bf16.mxu0 0
    %1900 = vmatpush2.bf16.msra.mxu0 0
    %1901 = vmatprep.subr.bf16.mxu0 0
    %1902 = vmatpush2.bf16.msra.mxu0 0
    %1903 = vmatprep.subr.bf16.mxu0 0
    %1904 = vmatpush2.bf16.msra.mxu0 0
    %1905 = vmatprep.subr.bf16.mxu0 0
    %1906 = vmatpush2.bf16.msra.mxu0 0
    %1907 = vmatprep.subr.bf16.mxu0 0
    %1908 = vmatpush2.bf16.msra.mxu0 0
    %1909 = vmatprep.subr.bf16.mxu0 0
    %1910 = vmatpush2.bf16.msra.mxu0 0
    %1911 = vmatprep.mubr.bf16.mxu0 0
    %1912 = vmatmul.mubr.bf16.gmra.mxu0 %v1745
    %v1913 = vpop.f32.mrf.mxu0
    %v1914 = vadd.f32 0.0, %v1913
    %v1915 = vpop.f32.mrf.mxu0
    %v1916 = vpop.f32.mrf.mxu0
    %v1917 = vpop.f32.mrf.mxu0
    %1918 = vdwg.mxu0
    %1920 = vrot.lane.b32.xlu0 %v1878, 64
    %v1921 = vpop.permute.xlu0 %1920
    %v1923 = vsel %vm560, %v1921, 0
    %1925 = vmatprep.subr.bf16.mxu0 0
    %1926 = vmatpush1.bf16.msra.mxu0 0
    %1927 = vmatprep.subr.bf16.mxu0 0
    %1928 = vmatpush1.bf16.msra.mxu0 0
    %1929 = vmatprep.subr.bf16.mxu0 0
    %1930 = vmatpush1.bf16.msra.mxu0 0
    %1931 = vmatprep.subr.bf16.mxu0 0
    %1932 = vmatpush1.bf16.msra.mxu0 0
    %1933 = vmatprep.subr.bf16.mxu0 0
    %1934 = vmatpush1.bf16.msra.mxu0 0
    %1935 = vmatprep.subr.bf16.mxu0 0
    %1936 = vmatpush1.bf16.msra.mxu0 0
    %1937 = vmatprep.subr.bf16.mxu0 0
    %1938 = vmatpush1.bf16.msra.mxu0 %v702
    %1939 = vmatprep.subr.bf16.mxu0 0
    %1940 = vmatpush1.bf16.msra.mxu0 %v701
    %1941 = vmatprep.subr.bf16.mxu0 0
    %1942 = vmatpush2.bf16.msra.mxu0 0
    %1943 = vmatprep.subr.bf16.mxu0 0
    %1944 = vmatpush2.bf16.msra.mxu0 0
    %1945 = vmatprep.subr.bf16.mxu0 0
    %1946 = vmatpush2.bf16.msra.mxu0 0
    %1947 = vmatprep.subr.bf16.mxu0 0
    %1948 = vmatpush2.bf16.msra.mxu0 0
    %1949 = vmatprep.subr.bf16.mxu0 0
    %1950 = vmatpush2.bf16.msra.mxu0 0
    %1951 = vmatprep.subr.bf16.mxu0 0
    %1952 = vmatpush2.bf16.msra.mxu0 0
    %1953 = vmatprep.subr.bf16.mxu0 0
    %1954 = vmatpush2.bf16.msra.mxu0 0
    %1955 = vmatprep.subr.bf16.mxu0 0
    %1956 = vmatpush2.bf16.msra.mxu0 0
    %1957 = vmatprep.mubr.bf16.mxu0 0
    %1958 = vmatmul.mubr.bf16.gmra.mxu0 %v1923
    %v1959 = vpop.f32.mrf.mxu0
    %v1960 = vadd.f32 %v1914, %v1959
    %v1961 = vpop.f32.mrf.mxu0
    %v1962 = vpop.f32.mrf.mxu0
    %v1963 = vpop.f32.mrf.mxu0
    %1964 = vdwg.mxu0
    %v1965 = vadd.f32 %v1960, %v507
    %v1966 = vsub.f32 0.0, %v1965
    %v1967 = vmul.f32 %v1966, 1.442695
    %v1968 = vpow.pop %v1967
    %v1969 = vadd.f32 %v1968, 1.0
    %v1970 = vrcp.pop %v1969
    %v1971 = vtanh.pop %v1965
    %v1972 = vsel %vm501, %v1970, %v1971
    %v1973 = vmul.f32 %v1972, %v1686
    %1975 = vrot.lane.b32.xlu0 %v1972, 32
    %v1976 = vpop.permute.xlu0 %1975
    %v1978 = vmul.f32 %v1972, %v1976
    %1980 = vrot.lane.b32.xlu0 %v1978, 32
    %v1981 = vpop.permute.xlu0 %1980
    %v1983 = vadd.f32 %v1973, %v1981
    %v1984 = vtanh.pop %v1983
    %1986 = vrot.lane.b32.xlu0 %v1984, 32
    %v1987 = vpop.permute.xlu0 %1986
    %v1989 = vmul.f32 %v1972, %v1987
    %v1990 = vpack.c.bf16 %v1989, %v1989
    %v1991 = vpack.c.bf16 %v1811, %v1811
    %1993 = vrot.lane.b32.xlu0 %v1991, 64
    %v1994 = vpop.permute.xlu0 %1993
    %v1996 = vsel %vm560, %v1994, 0
    %1998 = vmatprep.subr.bf16.mxu0 0
    %1999 = vmatpush1.bf16.msra.mxu0 0
    %2000 = vmatprep.subr.bf16.mxu0 0
    %2001 = vmatpush1.bf16.msra.mxu0 0
    %2002 = vmatprep.subr.bf16.mxu0 0
    %2003 = vmatpush1.bf16.msra.mxu0 0
    %2004 = vmatprep.subr.bf16.mxu0 0
    %2005 = vmatpush1.bf16.msra.mxu0 0
    %2006 = vmatprep.subr.bf16.mxu0 0
    %2007 = vmatpush1.bf16.msra.mxu0 0
    %2008 = vmatprep.subr.bf16.mxu0 0
    %2009 = vmatpush1.bf16.msra.mxu0 0
    %2010 = vmatprep.subr.bf16.mxu0 0
    %2011 = vmatpush1.bf16.msra.mxu0 %v788
    %2012 = vmatprep.subr.bf16.mxu0 0
    %2013 = vmatpush1.bf16.msra.mxu0 %v787
    %2014 = vmatprep.subr.bf16.mxu0 0
    %2015 = vmatpush2.bf16.msra.mxu0 0
    %2016 = vmatprep.subr.bf16.mxu0 0
    %2017 = vmatpush2.bf16.msra.mxu0 0
    %2018 = vmatprep.subr.bf16.mxu0 0
    %2019 = vmatpush2.bf16.msra.mxu0 0
    %2020 = vmatprep.subr.bf16.mxu0 0
    %2021 = vmatpush2.bf16.msra.mxu0 0
    %2022 = vmatprep.subr.bf16.mxu0 0
    %2023 = vmatpush2.bf16.msra.mxu0 0
    %2024 = vmatprep.subr.bf16.mxu0 0
    %2025 = vmatpush2.bf16.msra.mxu0 0
    %2026 = vmatprep.subr.bf16.mxu0 0
    %2027 = vmatpush2.bf16.msra.mxu0 0
    %2028 = vmatprep.subr.bf16.mxu0 0
    %2029 = vmatpush2.bf16.msra.mxu0 0
    %2030 = vmatprep.mubr.bf16.mxu0 0
    %2031 = vmatmul.mubr.bf16.gmra.mxu0 %v1996
    %v2032 = vpop.f32.mrf.mxu0
    %v2033 = vadd.f32 0.0, %v2032
    %v2034 = vpop.f32.mrf.mxu0
    %v2035 = vpop.f32.mrf.mxu0
    %v2036 = vpop.f32.mrf.mxu0
    %2037 = vdwg.mxu0
    %2039 = vrot.lane.b32.xlu0 %v1990, 64
    %v2040 = vpop.permute.xlu0 %2039
    %v2042 = vsel %vm560, %v2040, 0
    %2044 = vmatprep.subr.bf16.mxu0 0
    %2045 = vmatpush1.bf16.msra.mxu0 0
    %2046 = vmatprep.subr.bf16.mxu0 0
    %2047 = vmatpush1.bf16.msra.mxu0 0
    %2048 = vmatprep.subr.bf16.mxu0 0
    %2049 = vmatpush1.bf16.msra.mxu0 0
    %2050 = vmatprep.subr.bf16.mxu0 0
    %2051 = vmatpush1.bf16.msra.mxu0 0
    %2052 = vmatprep.subr.bf16.mxu0 0
    %2053 = vmatpush1.bf16.msra.mxu0 0
    %2054 = vmatprep.subr.bf16.mxu0 0
    %2055 = vmatpush1.bf16.msra.mxu0 0
    %2056 = vmatprep.subr.bf16.mxu0 0
    %2057 = vmatpush1.bf16.msra.mxu0 %v846
    %2058 = vmatprep.subr.bf16.mxu0 0
    %2059 = vmatpush1.bf16.msra.mxu0 %v845
    %2060 = vmatprep.subr.bf16.mxu0 0
    %2061 = vmatpush2.bf16.msra.mxu0 0
    %2062 = vmatprep.subr.bf16.mxu0 0
    %2063 = vmatpush2.bf16.msra.mxu0 0
    %2064 = vmatprep.subr.bf16.mxu0 0
    %2065 = vmatpush2.bf16.msra.mxu0 0
    %2066 = vmatprep.subr.bf16.mxu0 0
    %2067 = vmatpush2.bf16.msra.mxu0 0
    %2068 = vmatprep.subr.bf16.mxu0 0
    %2069 = vmatpush2.bf16.msra.mxu0 0
    %2070 = vmatprep.subr.bf16.mxu0 0
    %2071 = vmatpush2.bf16.msra.mxu0 0
    %2072 = vmatprep.subr.bf16.mxu0 0
    %2073 = vmatpush2.bf16.msra.mxu0 0
    %2074 = vmatprep.subr.bf16.mxu0 0
    %2075 = vmatpush2.bf16.msra.mxu0 0
    %2076 = vmatprep.mubr.bf16.mxu0 0
    %2077 = vmatmul.mubr.bf16.gmra.mxu0 %v2042
    %v2078 = vpop.f32.mrf.mxu0
    %v2079 = vadd.f32 %v2033, %v2078
    %v2080 = vpop.f32.mrf.mxu0
    %v2081 = vpop.f32.mrf.mxu0
    %v2082 = vpop.f32.mrf.mxu0
    %2083 = vdwg.mxu0
    %v2084 = vadd.f32 %v2079, %v514
    %v2085 = vsub.f32 0.0, %v2084
    %v2086 = vmul.f32 %v2085, 1.442695
    %v2087 = vpow.pop %v2086
    %v2088 = vadd.f32 %v2087, 1.0
    %v2089 = vrcp.pop %v2088
    %v2090 = vtanh.pop %v2084
    %v2091 = vsel %vm501, %v2089, %v2090
    %v2092 = vmul.f32 %v2091, %v1805
    %2094 = vrot.lane.b32.xlu0 %v2091, 32
    %v2095 = vpop.permute.xlu0 %2094
    %v2097 = vmul.f32 %v2091, %v2095
    %2099 = vrot.lane.b32.xlu0 %v2097, 32
    %v2100 = vpop.permute.xlu0 %2099
    %v2102 = vadd.f32 %v2092, %v2100
    %v2103 = vtanh.pop %v2102
    %2105 = vrot.lane.b32.xlu0 %v2103, 32
    %v2106 = vpop.permute.xlu0 %2105
    %v2108 = vmul.f32 %v2091, %v2106
    %v2109 = vld [vmem:[#allocation2 + $0x28] sm:$0xff]
    %2110 = vmatprep.subr.bf16.mxu0 0
    %2111 = vmatpush1.bf16.msra.mxu0 0
    %2112 = vmatprep.subr.bf16.mxu0 0
    %2113 = vmatpush1.bf16.msra.mxu0 0
    %2114 = vmatprep.subr.bf16.mxu0 0
    %2115 = vmatpush1.bf16.msra.mxu0 0
    %2116 = vmatprep.subr.bf16.mxu0 0
    %2117 = vmatpush1.bf16.msra.mxu0 0
    %2118 = vmatprep.subr.bf16.mxu0 0
    %2119 = vmatpush1.bf16.msra.mxu0 0
    %2120 = vmatprep.subr.bf16.mxu0 0
    %2121 = vmatpush1.bf16.msra.mxu0 0
    %2122 = vmatprep.subr.bf16.mxu0 0
    %2123 = vmatpush1.bf16.msra.mxu0 %v557
    %2124 = vmatprep.subr.bf16.mxu0 0
    %2125 = vmatpush1.bf16.msra.mxu0 %v556
    %2126 = vmatprep.subr.bf16.mxu0 0
    %2127 = vmatpush2.bf16.msra.mxu0 0
    %2128 = vmatprep.subr.bf16.mxu0 0
    %2129 = vmatpush2.bf16.msra.mxu0 0
    %2130 = vmatprep.subr.bf16.mxu0 0
    %2131 = vmatpush2.bf16.msra.mxu0 0
    %2132 = vmatprep.subr.bf16.mxu0 0
    %2133 = vmatpush2.bf16.msra.mxu0 0
    %2134 = vmatprep.subr.bf16.mxu0 0
    %2135 = vmatpush2.bf16.msra.mxu0 0
    %2136 = vmatprep.subr.bf16.mxu0 0
    %2137 = vmatpush2.bf16.msra.mxu0 0
    %2138 = vmatprep.subr.bf16.mxu0 0
    %2139 = vmatpush2.bf16.msra.mxu0 0
    %2140 = vmatprep.subr.bf16.mxu0 0
    %2141 = vmatpush2.bf16.msra.mxu0 0
    %2142 = vmatprep.mubr.bf16.mxu0 0
    %2143 = vmatmul.mubr.bf16.gmra.mxu0 %v1923
    %v2144 = vpop.f32.mrf.mxu0
    %v2145 = vadd.f32 0.0, %v2144
    %v2146 = vpop.f32.mrf.mxu0
    %v2147 = vpop.f32.mrf.mxu0
    %v2148 = vpop.f32.mrf.mxu0
    %2149 = vdwg.mxu0
    %v2150 = vadd.f32 %v2109, %v2145
    %v2151 = vsub.f32 0.0, %v2150
    %v2152 = vmul.f32 %v2151, 1.442695
    %v2153 = vpow.pop %v2152
    %v2154 = vadd.f32 %v2153, 1.0
    %v2155 = vrcp.pop %v2154
    %v2156 = vtanh.pop %v2150
    %v2157 = vsel %vm501, %v2155, %v2156
    %v2158 = vmul.f32 %v2157, %v1871
    %2160 = vrot.lane.b32.xlu0 %v2157, 32
    %v2161 = vpop.permute.xlu0 %2160
    %v2163 = vmul.f32 %v2157, %v2161
    %2165 = vrot.lane.b32.xlu0 %v2163, 32
    %v2166 = vpop.permute.xlu0 %2165
    %v2168 = vadd.f32 %v2158, %v2166
    %v2169 = vtanh.pop %v2168
    %2171 = vrot.lane.b32.xlu0 %v2169, 32
    %v2172 = vpop.permute.xlu0 %2171
    %v2174 = vmul.f32 %v2157, %v2172
    %v2175 = vpack.c.bf16 %v2174, %v2174
    %2176 = vmatprep.subr.bf16.mxu0 0
    %2177 = vmatpush1.bf16.msra.mxu0 0
    %2178 = vmatprep.subr.bf16.mxu0 0
    %2179 = vmatpush1.bf16.msra.mxu0 0
    %2180 = vmatprep.subr.bf16.mxu0 0
    %2181 = vmatpush1.bf16.msra.mxu0 0
    %2182 = vmatprep.subr.bf16.mxu0 0
    %2183 = vmatpush1.bf16.msra.mxu0 0
    %2184 = vmatprep.subr.bf16.mxu0 0
    %2185 = vmatpush1.bf16.msra.mxu0 0
    %2186 = vmatprep.subr.bf16.mxu0 0
    %2187 = vmatpush1.bf16.msra.mxu0 0
    %2188 = vmatprep.subr.bf16.mxu0 0
    %2189 = vmatpush1.bf16.msra.mxu0 %v644
    %2190 = vmatprep.subr.bf16.mxu0 0
    %2191 = vmatpush1.bf16.msra.mxu0 %v643
    %2192 = vmatprep.subr.bf16.mxu0 0
    %2193 = vmatpush2.bf16.msra.mxu0 0
    %2194 = vmatprep.subr.bf16.mxu0 0
    %2195 = vmatpush2.bf16.msra.mxu0 0
    %2196 = vmatprep.subr.bf16.mxu0 0
    %2197 = vmatpush2.bf16.msra.mxu0 0
    %2198 = vmatprep.subr.bf16.mxu0 0
    %2199 = vmatpush2.bf16.msra.mxu0 0
    %2200 = vmatprep.subr.bf16.mxu0 0
    %2201 = vmatpush2.bf16.msra.mxu0 0
    %2202 = vmatprep.subr.bf16.mxu0 0
    %2203 = vmatpush2.bf16.msra.mxu0 0
    %2204 = vmatprep.subr.bf16.mxu0 0
    %2205 = vmatpush2.bf16.msra.mxu0 0
    %2206 = vmatprep.subr.bf16.mxu0 0
    %2207 = vmatpush2.bf16.msra.mxu0 0
    %2208 = vmatprep.mubr.bf16.mxu0 0
    %2209 = vmatmul.mubr.bf16.gmra.mxu0 %v2042
    %v2210 = vpop.f32.mrf.mxu0
    %v2211 = vadd.f32 0.0, %v2210
    %v2212 = vpop.f32.mrf.mxu0
    %v2213 = vpop.f32.mrf.mxu0
    %v2214 = vpop.f32.mrf.mxu0
    %2215 = vdwg.mxu0
    %2217 = vrot.lane.b32.xlu0 %v2175, 64
    %v2218 = vpop.permute.xlu0 %2217
    %v2220 = vsel %vm560, %v2218, 0
    %2222 = vmatprep.subr.bf16.mxu0 0
    %2223 = vmatpush1.bf16.msra.mxu0 0
    %2224 = vmatprep.subr.bf16.mxu0 0
    %2225 = vmatpush1.bf16.msra.mxu0 0
    %2226 = vmatprep.subr.bf16.mxu0 0
    %2227 = vmatpush1.bf16.msra.mxu0 0
    %2228 = vmatprep.subr.bf16.mxu0 0
    %2229 = vmatpush1.bf16.msra.mxu0 0
    %2230 = vmatprep.subr.bf16.mxu0 0
    %2231 = vmatpush1.bf16.msra.mxu0 0
    %2232 = vmatprep.subr.bf16.mxu0 0
    %2233 = vmatpush1.bf16.msra.mxu0 0
    %2234 = vmatprep.subr.bf16.mxu0 0
    %2235 = vmatpush1.bf16.msra.mxu0 %v702
    %2236 = vmatprep.subr.bf16.mxu0 0
    %2237 = vmatpush1.bf16.msra.mxu0 %v701
    %2238 = vmatprep.subr.bf16.mxu0 0
    %2239 = vmatpush2.bf16.msra.mxu0 0
    %2240 = vmatprep.subr.bf16.mxu0 0
    %2241 = vmatpush2.bf16.msra.mxu0 0
    %2242 = vmatprep.subr.bf16.mxu0 0
    %2243 = vmatpush2.bf16.msra.mxu0 0
    %2244 = vmatprep.subr.bf16.mxu0 0
    %2245 = vmatpush2.bf16.msra.mxu0 0
    %2246 = vmatprep.subr.bf16.mxu0 0
    %2247 = vmatpush2.bf16.msra.mxu0 0
    %2248 = vmatprep.subr.bf16.mxu0 0
    %2249 = vmatpush2.bf16.msra.mxu0 0
    %2250 = vmatprep.subr.bf16.mxu0 0
    %2251 = vmatpush2.bf16.msra.mxu0 0
    %2252 = vmatprep.subr.bf16.mxu0 0
    %2253 = vmatpush2.bf16.msra.mxu0 0
    %2254 = vmatprep.mubr.bf16.mxu0 0
    %2255 = vmatmul.mubr.bf16.gmra.mxu0 %v2220
    %v2256 = vpop.f32.mrf.mxu0
    %v2257 = vadd.f32 %v2211, %v2256
    %v2258 = vpop.f32.mrf.mxu0
    %v2259 = vpop.f32.mrf.mxu0
    %v2260 = vpop.f32.mrf.mxu0
    %2261 = vdwg.mxu0
    %v2262 = vadd.f32 %v2257, %v507
    %v2263 = vsub.f32 0.0, %v2262
    %v2264 = vmul.f32 %v2263, 1.442695
    %v2265 = vpow.pop %v2264
    %v2266 = vadd.f32 %v2265, 1.0
    %v2267 = vrcp.pop %v2266
    %v2268 = vtanh.pop %v2262
    %v2269 = vsel %vm501, %v2267, %v2268
    %v2270 = vmul.f32 %v2269, %v1983
    %2272 = vrot.lane.b32.xlu0 %v2269, 32
    %v2273 = vpop.permute.xlu0 %2272
    %v2275 = vmul.f32 %v2269, %v2273
    %2277 = vrot.lane.b32.xlu0 %v2275, 32
    %v2278 = vpop.permute.xlu0 %2277
    %v2280 = vadd.f32 %v2270, %v2278
    %v2281 = vtanh.pop %v2280
    %2283 = vrot.lane.b32.xlu0 %v2281, 32
    %v2284 = vpop.permute.xlu0 %2283
    %v2286 = vmul.f32 %v2269, %v2284
    %v2287 = vpack.c.bf16 %v2286, %v2286
    %v2288 = vpack.c.bf16 %v2108, %v2108
    %2290 = vrot.lane.b32.xlu0 %v2288, 64
    %v2291 = vpop.permute.xlu0 %2290
    %v2293 = vsel %vm560, %v2291, 0
    %2295 = vmatprep.subr.bf16.mxu0 0
    %2296 = vmatpush1.bf16.msra.mxu0 0
    %2297 = vmatprep.subr.bf16.mxu0 0
    %2298 = vmatpush1.bf16.msra.mxu0 0
    %2299 = vmatprep.subr.bf16.mxu0 0
    %2300 = vmatpush1.bf16.msra.mxu0 0
    %2301 = vmatprep.subr.bf16.mxu0 0
    %2302 = vmatpush1.bf16.msra.mxu0 0
    %2303 = vmatprep.subr.bf16.mxu0 0
    %2304 = vmatpush1.bf16.msra.mxu0 0
    %2305 = vmatprep.subr.bf16.mxu0 0
    %2306 = vmatpush1.bf16.msra.mxu0 0
    %2307 = vmatprep.subr.bf16.mxu0 0
    %2308 = vmatpush1.bf16.msra.mxu0 %v788
    %2309 = vmatprep.subr.bf16.mxu0 0
    %2310 = vmatpush1.bf16.msra.mxu0 %v787
    %2311 = vmatprep.subr.bf16.mxu0 0
    %2312 = vmatpush2.bf16.msra.mxu0 0
    %2313 = vmatprep.subr.bf16.mxu0 0
    %2314 = vmatpush2.bf16.msra.mxu0 0
    %2315 = vmatprep.subr.bf16.mxu0 0
    %2316 = vmatpush2.bf16.msra.mxu0 0
    %2317 = vmatprep.subr.bf16.mxu0 0
    %2318 = vmatpush2.bf16.msra.mxu0 0
    %2319 = vmatprep.subr.bf16.mxu0 0
    %2320 = vmatpush2.bf16.msra.mxu0 0
    %2321 = vmatprep.subr.bf16.mxu0 0
    %2322 = vmatpush2.bf16.msra.mxu0 0
    %2323 = vmatprep.subr.bf16.mxu0 0
    %2324 = vmatpush2.bf16.msra.mxu0 0
    %2325 = vmatprep.subr.bf16.mxu0 0
    %2326 = vmatpush2.bf16.msra.mxu0 0
    %2327 = vmatprep.mubr.bf16.mxu0 0
    %2328 = vmatmul.mubr.bf16.gmra.mxu0 %v2293
    %v2329 = vpop.f32.mrf.mxu0
    %v2330 = vadd.f32 0.0, %v2329
    %v2331 = vpop.f32.mrf.mxu0
    %v2332 = vpop.f32.mrf.mxu0
    %v2333 = vpop.f32.mrf.mxu0
    %2334 = vdwg.mxu0
    %2336 = vrot.lane.b32.xlu0 %v2287, 64
    %v2337 = vpop.permute.xlu0 %2336
    %v2339 = vsel %vm560, %v2337, 0
    %2341 = vmatprep.subr.bf16.mxu0 0
    %2342 = vmatpush1.bf16.msra.mxu0 0
    %2343 = vmatprep.subr.bf16.mxu0 0
    %2344 = vmatpush1.bf16.msra.mxu0 0
    %2345 = vmatprep.subr.bf16.mxu0 0
    %2346 = vmatpush1.bf16.msra.mxu0 0
    %2347 = vmatprep.subr.bf16.mxu0 0
    %2348 = vmatpush1.bf16.msra.mxu0 0
    %2349 = vmatprep.subr.bf16.mxu0 0
    %2350 = vmatpush1.bf16.msra.mxu0 0
    %2351 = vmatprep.subr.bf16.mxu0 0
    %2352 = vmatpush1.bf16.msra.mxu0 0
    %2353 = vmatprep.subr.bf16.mxu0 0
    %2354 = vmatpush1.bf16.msra.mxu0 %v846
    %2355 = vmatprep.subr.bf16.mxu0 0
    %2356 = vmatpush1.bf16.msra.mxu0 %v845
    %2357 = vmatprep.subr.bf16.mxu0 0
    %2358 = vmatpush2.bf16.msra.mxu0 0
    %2359 = vmatprep.subr.bf16.mxu0 0
    %2360 = vmatpush2.bf16.msra.mxu0 0
    %2361 = vmatprep.subr.bf16.mxu0 0
    %2362 = vmatpush2.bf16.msra.mxu0 0
    %2363 = vmatprep.subr.bf16.mxu0 0
    %2364 = vmatpush2.bf16.msra.mxu0 0
    %2365 = vmatprep.subr.bf16.mxu0 0
    %2366 = vmatpush2.bf16.msra.mxu0 0
    %2367 = vmatprep.subr.bf16.mxu0 0
    %2368 = vmatpush2.bf16.msra.mxu0 0
    %2369 = vmatprep.subr.bf16.mxu0 0
    %2370 = vmatpush2.bf16.msra.mxu0 0
    %2371 = vmatprep.subr.bf16.mxu0 0
    %2372 = vmatpush2.bf16.msra.mxu0 0
    %2373 = vmatprep.mubr.bf16.mxu0 0
    %2374 = vmatmul.mubr.bf16.gmra.mxu0 %v2339
    %v2375 = vpop.f32.mrf.mxu0
    %v2376 = vadd.f32 %v2330, %v2375
    %v2377 = vpop.f32.mrf.mxu0
    %v2378 = vpop.f32.mrf.mxu0
    %v2379 = vpop.f32.mrf.mxu0
    %2380 = vdwg.mxu0
    %v2381 = vadd.f32 %v2376, %v514
    %v2382 = vsub.f32 0.0, %v2381
    %v2383 = vmul.f32 %v2382, 1.442695
    %v2384 = vpow.pop %v2383
    %v2385 = vadd.f32 %v2384, 1.0
    %v2386 = vrcp.pop %v2385
    %v2387 = vtanh.pop %v2381
    %v2388 = vsel %vm501, %v2386, %v2387
    %v2389 = vmul.f32 %v2388, %v2102
    %2391 = vrot.lane.b32.xlu0 %v2388, 32
    %v2392 = vpop.permute.xlu0 %2391
    %v2394 = vmul.f32 %v2388, %v2392
    %2396 = vrot.lane.b32.xlu0 %v2394, 32
    %v2397 = vpop.permute.xlu0 %2396
    %v2399 = vadd.f32 %v2389, %v2397
    %v2400 = vtanh.pop %v2399
    %2402 = vrot.lane.b32.xlu0 %v2400, 32
    %v2403 = vpop.permute.xlu0 %2402
    %v2405 = vmul.f32 %v2388, %v2403
    %v2406 = vld [vmem:[#allocation2 + $0x30] sm:$0xff]
    %2407 = vmatprep.subr.bf16.mxu0 0
    %2408 = vmatpush1.bf16.msra.mxu0 0
    %2409 = vmatprep.subr.bf16.mxu0 0
    %2410 = vmatpush1.bf16.msra.mxu0 0
    %2411 = vmatprep.subr.bf16.mxu0 0
    %2412 = vmatpush1.bf16.msra.mxu0 0
    %2413 = vmatprep.subr.bf16.mxu0 0
    %2414 = vmatpush1.bf16.msra.mxu0 0
    %2415 = vmatprep.subr.bf16.mxu0 0
    %2416 = vmatpush1.bf16.msra.mxu0 0
    %2417 = vmatprep.subr.bf16.mxu0 0
    %2418 = vmatpush1.bf16.msra.mxu0 0
    %2419 = vmatprep.subr.bf16.mxu0 0
    %2420 = vmatpush1.bf16.msra.mxu0 %v557
    %2421 = vmatprep.subr.bf16.mxu0 0
    %2422 = vmatpush1.bf16.msra.mxu0 %v556
    %2423 = vmatprep.subr.bf16.mxu0 0
    %2424 = vmatpush2.bf16.msra.mxu0 0
    %2425 = vmatprep.subr.bf16.mxu0 0
    %2426 = vmatpush2.bf16.msra.mxu0 0
    %2427 = vmatprep.subr.bf16.mxu0 0
    %2428 = vmatpush2.bf16.msra.mxu0 0
    %2429 = vmatprep.subr.bf16.mxu0 0
    %2430 = vmatpush2.bf16.msra.mxu0 0
    %2431 = vmatprep.subr.bf16.mxu0 0
    %2432 = vmatpush2.bf16.msra.mxu0 0
    %2433 = vmatprep.subr.bf16.mxu0 0
    %2434 = vmatpush2.bf16.msra.mxu0 0
    %2435 = vmatprep.subr.bf16.mxu0 0
    %2436 = vmatpush2.bf16.msra.mxu0 0
    %2437 = vmatprep.subr.bf16.mxu0 0
    %2438 = vmatpush2.bf16.msra.mxu0 0
    %2439 = vmatprep.mubr.bf16.mxu0 0
    %2440 = vmatmul.mubr.bf16.gmra.mxu0 %v2220
    %v2441 = vpop.f32.mrf.mxu0
    %v2442 = vadd.f32 0.0, %v2441
    %v2443 = vpop.f32.mrf.mxu0
    %v2444 = vpop.f32.mrf.mxu0
    %v2445 = vpop.f32.mrf.mxu0
    %2446 = vdwg.mxu0
    %v2447 = vadd.f32 %v2406, %v2442
    %v2448 = vsub.f32 0.0, %v2447
    %v2449 = vmul.f32 %v2448, 1.442695
    %v2450 = vpow.pop %v2449
    %v2451 = vadd.f32 %v2450, 1.0
    %v2452 = vrcp.pop %v2451
    %v2453 = vtanh.pop %v2447
    %v2454 = vsel %vm501, %v2452, %v2453
    %v2455 = vmul.f32 %v2454, %v2168
    %2457 = vrot.lane.b32.xlu0 %v2454, 32
    %v2458 = vpop.permute.xlu0 %2457
    %v2460 = vmul.f32 %v2454, %v2458
    %2462 = vrot.lane.b32.xlu0 %v2460, 32
    %v2463 = vpop.permute.xlu0 %2462
    %v2465 = vadd.f32 %v2455, %v2463
    %v2466 = vtanh.pop %v2465
    %2468 = vrot.lane.b32.xlu0 %v2466, 32
    %v2469 = vpop.permute.xlu0 %2468
    %v2471 = vmul.f32 %v2454, %v2469
    %v2472 = vpack.c.bf16 %v2471, %v2471
    %2473 = vmatprep.subr.bf16.mxu0 0
    %2474 = vmatpush1.bf16.msra.mxu0 0
    %2475 = vmatprep.subr.bf16.mxu0 0
    %2476 = vmatpush1.bf16.msra.mxu0 0
    %2477 = vmatprep.subr.bf16.mxu0 0
    %2478 = vmatpush1.bf16.msra.mxu0 0
    %2479 = vmatprep.subr.bf16.mxu0 0
    %2480 = vmatpush1.bf16.msra.mxu0 0
    %2481 = vmatprep.subr.bf16.mxu0 0
    %2482 = vmatpush1.bf16.msra.mxu0 0
    %2483 = vmatprep.subr.bf16.mxu0 0
    %2484 = vmatpush1.bf16.msra.mxu0 0
    %2485 = vmatprep.subr.bf16.mxu0 0
    %2486 = vmatpush1.bf16.msra.mxu0 %v644
    %2487 = vmatprep.subr.bf16.mxu0 0
    %2488 = vmatpush1.bf16.msra.mxu0 %v643
    %2489 = vmatprep.subr.bf16.mxu0 0
    %2490 = vmatpush2.bf16.msra.mxu0 0
    %2491 = vmatprep.subr.bf16.mxu0 0
    %2492 = vmatpush2.bf16.msra.mxu0 0
    %2493 = vmatprep.subr.bf16.mxu0 0
    %2494 = vmatpush2.bf16.msra.mxu0 0
    %2495 = vmatprep.subr.bf16.mxu0 0
    %2496 = vmatpush2.bf16.msra.mxu0 0
    %2497 = vmatprep.subr.bf16.mxu0 0
    %2498 = vmatpush2.bf16.msra.mxu0 0
    %2499 = vmatprep.subr.bf16.mxu0 0
    %2500 = vmatpush2.bf16.msra.mxu0 0
    %2501 = vmatprep.subr.bf16.mxu0 0
    %2502 = vmatpush2.bf16.msra.mxu0 0
    %2503 = vmatprep.subr.bf16.mxu0 0
    %2504 = vmatpush2.bf16.msra.mxu0 0
    %2505 = vmatprep.mubr.bf16.mxu0 0
    %2506 = vmatmul.mubr.bf16.gmra.mxu0 %v2339
    %v2507 = vpop.f32.mrf.mxu0
    %v2508 = vadd.f32 0.0, %v2507
    %v2509 = vpop.f32.mrf.mxu0
    %v2510 = vpop.f32.mrf.mxu0
    %v2511 = vpop.f32.mrf.mxu0
    %2512 = vdwg.mxu0
    %2514 = vrot.lane.b32.xlu0 %v2472, 64
    %v2515 = vpop.permute.xlu0 %2514
    %v2517 = vsel %vm560, %v2515, 0
    %2519 = vmatprep.subr.bf16.mxu0 0
    %2520 = vmatpush1.bf16.msra.mxu0 0
    %2521 = vmatprep.subr.bf16.mxu0 0
    %2522 = vmatpush1.bf16.msra.mxu0 0
    %2523 = vmatprep.subr.bf16.mxu0 0
    %2524 = vmatpush1.bf16.msra.mxu0 0
    %2525 = vmatprep.subr.bf16.mxu0 0
    %2526 = vmatpush1.bf16.msra.mxu0 0
    %2527 = vmatprep.subr.bf16.mxu0 0
    %2528 = vmatpush1.bf16.msra.mxu0 0
    %2529 = vmatprep.subr.bf16.mxu0 0
    %2530 = vmatpush1.bf16.msra.mxu0 0
    %2531 = vmatprep.subr.bf16.mxu0 0
    %2532 = vmatpush1.bf16.msra.mxu0 %v702
    %2533 = vmatprep.subr.bf16.mxu0 0
    %2534 = vmatpush1.bf16.msra.mxu0 %v701
    %2535 = vmatprep.subr.bf16.mxu0 0
    %2536 = vmatpush2.bf16.msra.mxu0 0
    %2537 = vmatprep.subr.bf16.mxu0 0
    %2538 = vmatpush2.bf16.msra.mxu0 0
    %2539 = vmatprep.subr.bf16.mxu0 0
    %2540 = vmatpush2.bf16.msra.mxu0 0
    %2541 = vmatprep.subr.bf16.mxu0 0
    %2542 = vmatpush2.bf16.msra.mxu0 0
    %2543 = vmatprep.subr.bf16.mxu0 0
    %2544 = vmatpush2.bf16.msra.mxu0 0
    %2545 = vmatprep.subr.bf16.mxu0 0
    %2546 = vmatpush2.bf16.msra.mxu0 0
    %2547 = vmatprep.subr.bf16.mxu0 0
    %2548 = vmatpush2.bf16.msra.mxu0 0
    %2549 = vmatprep.subr.bf16.mxu0 0
    %2550 = vmatpush2.bf16.msra.mxu0 0
    %2551 = vmatprep.mubr.bf16.mxu0 0
    %2552 = vmatmul.mubr.bf16.gmra.mxu0 %v2517
    %v2553 = vpop.f32.mrf.mxu0
    %v2554 = vadd.f32 %v2508, %v2553
    %v2555 = vpop.f32.mrf.mxu0
    %v2556 = vpop.f32.mrf.mxu0
    %v2557 = vpop.f32.mrf.mxu0
    %2558 = vdwg.mxu0
    %v2559 = vadd.f32 %v2554, %v507
    %v2560 = vsub.f32 0.0, %v2559
    %v2561 = vmul.f32 %v2560, 1.442695
    %v2562 = vpow.pop %v2561
    %v2563 = vadd.f32 %v2562, 1.0
    %v2564 = vrcp.pop %v2563
    %v2565 = vtanh.pop %v2559
    %v2566 = vsel %vm501, %v2564, %v2565
    %v2567 = vmul.f32 %v2566, %v2280
    %2569 = vrot.lane.b32.xlu0 %v2566, 32
    %v2570 = vpop.permute.xlu0 %2569
    %v2572 = vmul.f32 %v2566, %v2570
    %2574 = vrot.lane.b32.xlu0 %v2572, 32
    %v2575 = vpop.permute.xlu0 %2574
    %v2577 = vadd.f32 %v2567, %v2575
    %v2578 = vtanh.pop %v2577
    %2580 = vrot.lane.b32.xlu0 %v2578, 32
    %v2581 = vpop.permute.xlu0 %2580
    %v2583 = vmul.f32 %v2566, %v2581
    %v2584 = vpack.c.bf16 %v2583, %v2583
    %v2585 = vpack.c.bf16 %v2405, %v2405
    %2587 = vrot.lane.b32.xlu0 %v2585, 64
    %v2588 = vpop.permute.xlu0 %2587
    %v2590 = vsel %vm560, %v2588, 0
    %2592 = vmatprep.subr.bf16.mxu0 0
    %2593 = vmatpush1.bf16.msra.mxu0 0
    %2594 = vmatprep.subr.bf16.mxu0 0
    %2595 = vmatpush1.bf16.msra.mxu0 0
    %2596 = vmatprep.subr.bf16.mxu0 0
    %2597 = vmatpush1.bf16.msra.mxu0 0
    %2598 = vmatprep.subr.bf16.mxu0 0
    %2599 = vmatpush1.bf16.msra.mxu0 0
    %2600 = vmatprep.subr.bf16.mxu0 0
    %2601 = vmatpush1.bf16.msra.mxu0 0
    %2602 = vmatprep.subr.bf16.mxu0 0
    %2603 = vmatpush1.bf16.msra.mxu0 0
    %2604 = vmatprep.subr.bf16.mxu0 0
    %2605 = vmatpush1.bf16.msra.mxu0 %v788
    %2606 = vmatprep.subr.bf16.mxu0 0
    %2607 = vmatpush1.bf16.msra.mxu0 %v787
    %2608 = vmatprep.subr.bf16.mxu0 0
    %2609 = vmatpush2.bf16.msra.mxu0 0
    %2610 = vmatprep.subr.bf16.mxu0 0
    %2611 = vmatpush2.bf16.msra.mxu0 0
    %2612 = vmatprep.subr.bf16.mxu0 0
    %2613 = vmatpush2.bf16.msra.mxu0 0
    %2614 = vmatprep.subr.bf16.mxu0 0
    %2615 = vmatpush2.bf16.msra.mxu0 0
    %2616 = vmatprep.subr.bf16.mxu0 0
    %2617 = vmatpush2.bf16.msra.mxu0 0
    %2618 = vmatprep.subr.bf16.mxu0 0
    %2619 = vmatpush2.bf16.msra.mxu0 0
    %2620 = vmatprep.subr.bf16.mxu0 0
    %2621 = vmatpush2.bf16.msra.mxu0 0
    %2622 = vmatprep.subr.bf16.mxu0 0
    %2623 = vmatpush2.bf16.msra.mxu0 0
    %2624 = vmatprep.mubr.bf16.mxu0 0
    %2625 = vmatmul.mubr.bf16.gmra.mxu0 %v2590
    %v2626 = vpop.f32.mrf.mxu0
    %v2627 = vadd.f32 0.0, %v2626
    %v2628 = vpop.f32.mrf.mxu0
    %v2629 = vpop.f32.mrf.mxu0
    %v2630 = vpop.f32.mrf.mxu0
    %2631 = vdwg.mxu0
    %2633 = vrot.lane.b32.xlu0 %v2584, 64
    %v2634 = vpop.permute.xlu0 %2633
    %v2636 = vsel %vm560, %v2634, 0
    %2638 = vmatprep.subr.bf16.mxu0 0
    %2639 = vmatpush1.bf16.msra.mxu0 0
    %2640 = vmatprep.subr.bf16.mxu0 0
    %2641 = vmatpush1.bf16.msra.mxu0 0
    %2642 = vmatprep.subr.bf16.mxu0 0
    %2643 = vmatpush1.bf16.msra.mxu0 0
    %2644 = vmatprep.subr.bf16.mxu0 0
    %2645 = vmatpush1.bf16.msra.mxu0 0
    %2646 = vmatprep.subr.bf16.mxu0 0
    %2647 = vmatpush1.bf16.msra.mxu0 0
    %2648 = vmatprep.subr.bf16.mxu0 0
    %2649 = vmatpush1.bf16.msra.mxu0 0
    %2650 = vmatprep.subr.bf16.mxu0 0
    %2651 = vmatpush1.bf16.msra.mxu0 %v846
    %2652 = vmatprep.subr.bf16.mxu0 0
    %2653 = vmatpush1.bf16.msra.mxu0 %v845
    %2654 = vmatprep.subr.bf16.mxu0 0
    %2655 = vmatpush2.bf16.msra.mxu0 0
    %2656 = vmatprep.subr.bf16.mxu0 0
    %2657 = vmatpush2.bf16.msra.mxu0 0
    %2658 = vmatprep.subr.bf16.mxu0 0
    %2659 = vmatpush2.bf16.msra.mxu0 0
    %2660 = vmatprep.subr.bf16.mxu0 0
    %2661 = vmatpush2.bf16.msra.mxu0 0
    %2662 = vmatprep.subr.bf16.mxu0 0
    %2663 = vmatpush2.bf16.msra.mxu0 0
    %2664 = vmatprep.subr.bf16.mxu0 0
    %2665 = vmatpush2.bf16.msra.mxu0 0
    %2666 = vmatprep.subr.bf16.mxu0 0
    %2667 = vmatpush2.bf16.msra.mxu0 0
    %2668 = vmatprep.subr.bf16.mxu0 0
    %2669 = vmatpush2.bf16.msra.mxu0 0
    %2670 = vmatprep.mubr.bf16.mxu0 0
    %2671 = vmatmul.mubr.bf16.gmra.mxu0 %v2636
    %v2672 = vpop.f32.mrf.mxu0
    %v2673 = vadd.f32 %v2627, %v2672
    %v2674 = vpop.f32.mrf.mxu0
    %v2675 = vpop.f32.mrf.mxu0
    %v2676 = vpop.f32.mrf.mxu0
    %2677 = vdwg.mxu0
    %v2678 = vadd.f32 %v2673, %v514
    %v2679 = vsub.f32 0.0, %v2678
    %v2680 = vmul.f32 %v2679, 1.442695
    %v2681 = vpow.pop %v2680
    %v2682 = vadd.f32 %v2681, 1.0
    %v2683 = vrcp.pop %v2682
    %v2684 = vtanh.pop %v2678
    %v2685 = vsel %vm501, %v2683, %v2684
    %v2686 = vmul.f32 %v2685, %v2399
    %2688 = vrot.lane.b32.xlu0 %v2685, 32
    %v2689 = vpop.permute.xlu0 %2688
    %v2691 = vmul.f32 %v2685, %v2689
    %2693 = vrot.lane.b32.xlu0 %v2691, 32
    %v2694 = vpop.permute.xlu0 %2693
    %v2696 = vadd.f32 %v2686, %v2694
    %v2697 = vtanh.pop %v2696
    %2699 = vrot.lane.b32.xlu0 %v2697, 32
    %v2700 = vpop.permute.xlu0 %2699
    %v2702 = vmul.f32 %v2685, %v2700
    %v2703 = vld [vmem:[#allocation2 + $0x38] sm:$0xff]
    %2704 = vmatprep.subr.bf16.mxu0 0
    %2705 = vmatpush1.bf16.msra.mxu0 0
    %2706 = vmatprep.subr.bf16.mxu0 0
    %2707 = vmatpush1.bf16.msra.mxu0 0
    %2708 = vmatprep.subr.bf16.mxu0 0
    %2709 = vmatpush1.bf16.msra.mxu0 0
    %2710 = vmatprep.subr.bf16.mxu0 0
    %2711 = vmatpush1.bf16.msra.mxu0 0
    %2712 = vmatprep.subr.bf16.mxu0 0
    %2713 = vmatpush1.bf16.msra.mxu0 0
    %2714 = vmatprep.subr.bf16.mxu0 0
    %2715 = vmatpush1.bf16.msra.mxu0 0
    %2716 = vmatprep.subr.bf16.mxu0 0
    %2717 = vmatpush1.bf16.msra.mxu0 %v557
    %2718 = vmatprep.subr.bf16.mxu0 0
    %2719 = vmatpush1.bf16.msra.mxu0 %v556
    %2720 = vmatprep.subr.bf16.mxu0 0
    %2721 = vmatpush2.bf16.msra.mxu0 0
    %2722 = vmatprep.subr.bf16.mxu0 0
    %2723 = vmatpush2.bf16.msra.mxu0 0
    %2724 = vmatprep.subr.bf16.mxu0 0
    %2725 = vmatpush2.bf16.msra.mxu0 0
    %2726 = vmatprep.subr.bf16.mxu0 0
    %2727 = vmatpush2.bf16.msra.mxu0 0
    %2728 = vmatprep.subr.bf16.mxu0 0
    %2729 = vmatpush2.bf16.msra.mxu0 0
    %2730 = vmatprep.subr.bf16.mxu0 0
    %2731 = vmatpush2.bf16.msra.mxu0 0
    %2732 = vmatprep.subr.bf16.mxu0 0
    %2733 = vmatpush2.bf16.msra.mxu0 0
    %2734 = vmatprep.subr.bf16.mxu0 0
    %2735 = vmatpush2.bf16.msra.mxu0 0
    %2736 = vmatprep.mubr.bf16.mxu0 0
    %2737 = vmatmul.mubr.bf16.gmra.mxu0 %v2517
    %v2738 = vpop.f32.mrf.mxu0
    %v2739 = vadd.f32 0.0, %v2738
    %v2740 = vpop.f32.mrf.mxu0
    %v2741 = vpop.f32.mrf.mxu0
    %v2742 = vpop.f32.mrf.mxu0
    %2743 = vdwg.mxu0
    %v2744 = vadd.f32 %v2703, %v2739
    %v2745 = vsub.f32 0.0, %v2744
    %v2746 = vmul.f32 %v2745, 1.442695
    %v2747 = vpow.pop %v2746
    %v2748 = vadd.f32 %v2747, 1.0
    %v2749 = vrcp.pop %v2748
    %v2750 = vtanh.pop %v2744
    %v2751 = vsel %vm501, %v2749, %v2750
    %v2752 = vmul.f32 %v2751, %v2465
    %2754 = vrot.lane.b32.xlu0 %v2751, 32
    %v2755 = vpop.permute.xlu0 %2754
    %v2757 = vmul.f32 %v2751, %v2755
    %2759 = vrot.lane.b32.xlu0 %v2757, 32
    %v2760 = vpop.permute.xlu0 %2759
    %v2762 = vadd.f32 %v2752, %v2760
    %v2763 = vtanh.pop %v2762
    %2765 = vrot.lane.b32.xlu0 %v2763, 32
    %v2766 = vpop.permute.xlu0 %2765
    %v2768 = vmul.f32 %v2751, %v2766
    %v2769 = vpack.c.bf16 %v2768, %v2768
    %2770 = vmatprep.subr.bf16.mxu0 0
    %2771 = vmatpush1.bf16.msra.mxu0 0
    %2772 = vmatprep.subr.bf16.mxu0 0
    %2773 = vmatpush1.bf16.msra.mxu0 0
    %2774 = vmatprep.subr.bf16.mxu0 0
    %2775 = vmatpush1.bf16.msra.mxu0 0
    %2776 = vmatprep.subr.bf16.mxu0 0
    %2777 = vmatpush1.bf16.msra.mxu0 0
    %2778 = vmatprep.subr.bf16.mxu0 0
    %2779 = vmatpush1.bf16.msra.mxu0 0
    %2780 = vmatprep.subr.bf16.mxu0 0
    %2781 = vmatpush1.bf16.msra.mxu0 0
    %2782 = vmatprep.subr.bf16.mxu0 0
    %2783 = vmatpush1.bf16.msra.mxu0 %v644
    %2784 = vmatprep.subr.bf16.mxu0 0
    %2785 = vmatpush1.bf16.msra.mxu0 %v643
    %2786 = vmatprep.subr.bf16.mxu0 0
    %2787 = vmatpush2.bf16.msra.mxu0 0
    %2788 = vmatprep.subr.bf16.mxu0 0
    %2789 = vmatpush2.bf16.msra.mxu0 0
    %2790 = vmatprep.subr.bf16.mxu0 0
    %2791 = vmatpush2.bf16.msra.mxu0 0
    %2792 = vmatprep.subr.bf16.mxu0 0
    %2793 = vmatpush2.bf16.msra.mxu0 0
    %2794 = vmatprep.subr.bf16.mxu0 0
    %2795 = vmatpush2.bf16.msra.mxu0 0
    %2796 = vmatprep.subr.bf16.mxu0 0
    %2797 = vmatpush2.bf16.msra.mxu0 0
    %2798 = vmatprep.subr.bf16.mxu0 0
    %2799 = vmatpush2.bf16.msra.mxu0 0
    %2800 = vmatprep.subr.bf16.mxu0 0
    %2801 = vmatpush2.bf16.msra.mxu0 0
    %2802 = vmatprep.mubr.bf16.mxu0 0
    %2803 = vmatmul.mubr.bf16.gmra.mxu0 %v2636
    %v2804 = vpop.f32.mrf.mxu0
    %v2805 = vadd.f32 0.0, %v2804
    %v2806 = vpop.f32.mrf.mxu0
    %v2807 = vpop.f32.mrf.mxu0
    %v2808 = vpop.f32.mrf.mxu0
    %2809 = vdwg.mxu0
    %2811 = vrot.lane.b32.xlu0 %v2769, 64
    %v2812 = vpop.permute.xlu0 %2811
    %v2814 = vsel %vm560, %v2812, 0
    %2816 = vmatprep.subr.bf16.mxu0 0
    %2817 = vmatpush1.bf16.msra.mxu0 0
    %2818 = vmatprep.subr.bf16.mxu0 0
    %2819 = vmatpush1.bf16.msra.mxu0 0
    %2820 = vmatprep.subr.bf16.mxu0 0
    %2821 = vmatpush1.bf16.msra.mxu0 0
    %2822 = vmatprep.subr.bf16.mxu0 0
    %2823 = vmatpush1.bf16.msra.mxu0 0
    %2824 = vmatprep.subr.bf16.mxu0 0
    %2825 = vmatpush1.bf16.msra.mxu0 0
    %2826 = vmatprep.subr.bf16.mxu0 0
    %2827 = vmatpush1.bf16.msra.mxu0 0
    %2828 = vmatprep.subr.bf16.mxu0 0
    %2829 = vmatpush1.bf16.msra.mxu0 %v702
    %2830 = vmatprep.subr.bf16.mxu0 0
    %2831 = vmatpush1.bf16.msra.mxu0 %v701
    %2832 = vmatprep.subr.bf16.mxu0 0
    %2833 = vmatpush2.bf16.msra.mxu0 0
    %2834 = vmatprep.subr.bf16.mxu0 0
    %2835 = vmatpush2.bf16.msra.mxu0 0
    %2836 = vmatprep.subr.bf16.mxu0 0
    %2837 = vmatpush2.bf16.msra.mxu0 0
    %2838 = vmatprep.subr.bf16.mxu0 0
    %2839 = vmatpush2.bf16.msra.mxu0 0
    %2840 = vmatprep.subr.bf16.mxu0 0
    %2841 = vmatpush2.bf16.msra.mxu0 0
    %2842 = vmatprep.subr.bf16.mxu0 0
    %2843 = vmatpush2.bf16.msra.mxu0 0
    %2844 = vmatprep.subr.bf16.mxu0 0
    %2845 = vmatpush2.bf16.msra.mxu0 0
    %2846 = vmatprep.subr.bf16.mxu0 0
    %2847 = vmatpush2.bf16.msra.mxu0 0
    %2848 = vmatprep.mubr.bf16.mxu0 0
    %2849 = vmatmul.mubr.bf16.gmra.mxu0 %v2814
    %v2850 = vpop.f32.mrf.mxu0
    %v2851 = vadd.f32 %v2805, %v2850
    %v2852 = vpop.f32.mrf.mxu0
    %v2853 = vpop.f32.mrf.mxu0
    %v2854 = vpop.f32.mrf.mxu0
    %2855 = vdwg.mxu0
    %v2856 = vadd.f32 %v2851, %v507
    %v2857 = vsub.f32 0.0, %v2856
    %v2858 = vmul.f32 %v2857, 1.442695
    %v2859 = vpow.pop %v2858
    %v2860 = vadd.f32 %v2859, 1.0
    %v2861 = vrcp.pop %v2860
    %v2862 = vtanh.pop %v2856
    %v2863 = vsel %vm501, %v2861, %v2862
    %v2864 = vmul.f32 %v2863, %v2577
    %2866 = vrot.lane.b32.xlu0 %v2863, 32
    %v2867 = vpop.permute.xlu0 %2866
    %v2869 = vmul.f32 %v2863, %v2867
    %2871 = vrot.lane.b32.xlu0 %v2869, 32
    %v2872 = vpop.permute.xlu0 %2871
    %v2874 = vadd.f32 %v2864, %v2872
    %v2875 = vtanh.pop %v2874
    %2877 = vrot.lane.b32.xlu0 %v2875, 32
    %v2878 = vpop.permute.xlu0 %2877
    %v2880 = vmul.f32 %v2863, %v2878
    %v2881 = vpack.c.bf16 %v2880, %v2880
    %v2882 = vpack.c.bf16 %v2702, %v2702
    %2884 = vrot.lane.b32.xlu0 %v2882, 64
    %v2885 = vpop.permute.xlu0 %2884
    %v2887 = vsel %vm560, %v2885, 0
    %2889 = vmatprep.subr.bf16.mxu0 0
    %2890 = vmatpush1.bf16.msra.mxu0 0
    %2891 = vmatprep.subr.bf16.mxu0 0
    %2892 = vmatpush1.bf16.msra.mxu0 0
    %2893 = vmatprep.subr.bf16.mxu0 0
    %2894 = vmatpush1.bf16.msra.mxu0 0
    %2895 = vmatprep.subr.bf16.mxu0 0
    %2896 = vmatpush1.bf16.msra.mxu0 0
    %2897 = vmatprep.subr.bf16.mxu0 0
    %2898 = vmatpush1.bf16.msra.mxu0 0
    %2899 = vmatprep.subr.bf16.mxu0 0
    %2900 = vmatpush1.bf16.msra.mxu0 0
    %2901 = vmatprep.subr.bf16.mxu0 0
    %2902 = vmatpush1.bf16.msra.mxu0 %v788
    %2903 = vmatprep.subr.bf16.mxu0 0
    %2904 = vmatpush1.bf16.msra.mxu0 %v787
    %2905 = vmatprep.subr.bf16.mxu0 0
    %2906 = vmatpush2.bf16.msra.mxu0 0
    %2907 = vmatprep.subr.bf16.mxu0 0
    %2908 = vmatpush2.bf16.msra.mxu0 0
    %2909 = vmatprep.subr.bf16.mxu0 0
    %2910 = vmatpush2.bf16.msra.mxu0 0
    %2911 = vmatprep.subr.bf16.mxu0 0
    %2912 = vmatpush2.bf16.msra.mxu0 0
    %2913 = vmatprep.subr.bf16.mxu0 0
    %2914 = vmatpush2.bf16.msra.mxu0 0
    %2915 = vmatprep.subr.bf16.mxu0 0
    %2916 = vmatpush2.bf16.msra.mxu0 0
    %2917 = vmatprep.subr.bf16.mxu0 0
    %2918 = vmatpush2.bf16.msra.mxu0 0
    %2919 = vmatprep.subr.bf16.mxu0 0
    %2920 = vmatpush2.bf16.msra.mxu0 0
    %2921 = vmatprep.mubr.bf16.mxu0 0
    %2922 = vmatmul.mubr.bf16.gmra.mxu0 %v2887
    %v2923 = vpop.f32.mrf.mxu0
    %v2924 = vadd.f32 0.0, %v2923
    %v2925 = vpop.f32.mrf.mxu0
    %v2926 = vpop.f32.mrf.mxu0
    %v2927 = vpop.f32.mrf.mxu0
    %2928 = vdwg.mxu0
    %2930 = vrot.lane.b32.xlu0 %v2881, 64
    %v2931 = vpop.permute.xlu0 %2930
    %v2933 = vsel %vm560, %v2931, 0
    %2935 = vmatprep.subr.bf16.mxu0 0
    %2936 = vmatpush1.bf16.msra.mxu0 0
    %2937 = vmatprep.subr.bf16.mxu0 0
    %2938 = vmatpush1.bf16.msra.mxu0 0
    %2939 = vmatprep.subr.bf16.mxu0 0
    %2940 = vmatpush1.bf16.msra.mxu0 0
    %2941 = vmatprep.subr.bf16.mxu0 0
    %2942 = vmatpush1.bf16.msra.mxu0 0
    %2943 = vmatprep.subr.bf16.mxu0 0
    %2944 = vmatpush1.bf16.msra.mxu0 0
    %2945 = vmatprep.subr.bf16.mxu0 0
    %2946 = vmatpush1.bf16.msra.mxu0 0
    %2947 = vmatprep.subr.bf16.mxu0 0
    %2948 = vmatpush1.bf16.msra.mxu0 %v846
    %2949 = vmatprep.subr.bf16.mxu0 0
    %2950 = vmatpush1.bf16.msra.mxu0 %v845
    %2951 = vmatprep.subr.bf16.mxu0 0
    %2952 = vmatpush2.bf16.msra.mxu0 0
    %2953 = vmatprep.subr.bf16.mxu0 0
    %2954 = vmatpush2.bf16.msra.mxu0 0
    %2955 = vmatprep.subr.bf16.mxu0 0
    %2956 = vmatpush2.bf16.msra.mxu0 0
    %2957 = vmatprep.subr.bf16.mxu0 0
    %2958 = vmatpush2.bf16.msra.mxu0 0
    %2959 = vmatprep.subr.bf16.mxu0 0
    %2960 = vmatpush2.bf16.msra.mxu0 0
    %2961 = vmatprep.subr.bf16.mxu0 0
    %2962 = vmatpush2.bf16.msra.mxu0 0
    %2963 = vmatprep.subr.bf16.mxu0 0
    %2964 = vmatpush2.bf16.msra.mxu0 0
    %2965 = vmatprep.subr.bf16.mxu0 0
    %2966 = vmatpush2.bf16.msra.mxu0 0
    %2967 = vmatprep.mubr.bf16.mxu0 0
    %2968 = vmatmul.mubr.bf16.gmra.mxu0 %v2933
    %v2969 = vpop.f32.mrf.mxu0
    %v2970 = vadd.f32 %v2924, %v2969
    %v2971 = vpop.f32.mrf.mxu0
    %v2972 = vpop.f32.mrf.mxu0
    %v2973 = vpop.f32.mrf.mxu0
    %2974 = vdwg.mxu0
    %v2975 = vadd.f32 %v2970, %v514
    %v2976 = vsub.f32 0.0, %v2975
    %v2977 = vmul.f32 %v2976, 1.442695
    %v2978 = vpow.pop %v2977
    %v2979 = vadd.f32 %v2978, 1.0
    %v2980 = vrcp.pop %v2979
    %v2981 = vtanh.pop %v2975
    %v2982 = vsel %vm501, %v2980, %v2981
    %v2983 = vmul.f32 %v2982, %v2696
    %2985 = vrot.lane.b32.xlu0 %v2982, 32
    %v2986 = vpop.permute.xlu0 %2985
    %v2988 = vmul.f32 %v2982, %v2986
    %2990 = vrot.lane.b32.xlu0 %v2988, 32
    %v2991 = vpop.permute.xlu0 %2990
    %v2993 = vadd.f32 %v2983, %v2991
    %v2994 = vtanh.pop %v2993
    %2996 = vrot.lane.b32.xlu0 %v2994, 32
    %v2997 = vpop.permute.xlu0 %2996
    %v2999 = vmul.f32 %v2982, %v2997
    %3001 = vrot.lane.b32.xlu0 %v2768, 64
    %v3002 = vpop.permute.xlu0 %3001
    %3004 = vst.msk [vmem:[#allocation21] sm:$0xff] %vm560, %v3002
    %3006 = vrot.lane.b32.xlu0 %v2880, 64
    %v3007 = vpop.permute.xlu0 %3006
    %s3009 = scalar_lea.vmem [#allocation21], 8
    %3010 = vst.msk [vmem:[%s3009] sm:$0xff] %vm560, %v3007
    %3012 = vrot.lane.b32.xlu0 %v2999, 64
    %v3013 = vpop.permute.xlu0 %3012
    %s3015 = scalar_lea.vmem [#allocation21], 16
    %3016 = vst.msk [vmem:[%s3015] sm:$0xff] %vm560, %v3013
    %3018 = vrot.lane.b32.xlu0 %v2762, 96
    %v3019 = vpop.permute.xlu0 %3018
    %3021 = vst.msk [vmem:[#allocation22] sm:$0xff] %vm560, %v3019
    %3023 = vrot.lane.b32.xlu0 %v2874, 96
    %v3024 = vpop.permute.xlu0 %3023
    %s3026 = scalar_lea.vmem [#allocation22], 8
    %3027 = vst.msk [vmem:[%s3026] sm:$0xff] %vm560, %v3024
    %3029 = vrot.lane.b32.xlu0 %v2993, 96
    %v3030 = vpop.permute.xlu0 %3029
    %s3032 = scalar_lea.vmem [#allocation22], 16
    %3033 = vst.msk [vmem:[%s3032] sm:$0xff] %vm560, %v3030
    %v3034 = vpack.c.bf16 %v2999, %v2999
    %v3035 = vld [vmem:[%s13] sm:$0xf]
    %v3036 = vld [vmem:[%s13 + $0x4] sm:$0xf]
    %v3037 = vld [vmem:[%s13 + $0x8] sm:$0xf]
    %v3038 = vld [vmem:[%s13 + $0xc] sm:$0xf]
    %v3039 = vld [vmem:[#allocation20] sm:$0x1]
    %v3041 = vlaneseq
    %v3042 = vshrl.u32 %v3041, 7
    %v3043 = vsub.s32 0, %v3042
    %v3044 = vrot.slane %v3039, %v3043
    %3047 = vrot.lane.b32.xlu0 %v3034, 64
    %v3048 = vpop.permute.xlu0 %3047
    %v3053 = vunpack.c.l.b16 %v3035
    %v3054 = vunpack.c.l.b16 %v3036
    %v3055 = vunpack.c.l.b16 %v3037
    %v3056 = vunpack.c.l.b16 %v3038
    %v3057 = vpack.c.b16 %v3054, %v3053
    %v3058 = vpack.c.b16 %v3056, %v3055
    %v3062 = vsel %vm560, %v3048, 0
    %3064 = vmatprep.subr.bf16.mxu0 0
    %3065 = vmatpush1.bf16.msra.mxu0 0
    %3066 = vmatprep.subr.bf16.mxu0 0
    %3067 = vmatpush1.bf16.msra.mxu0 0
    %3068 = vmatprep.subr.bf16.mxu0 0
    %3069 = vmatpush1.bf16.msra.mxu0 0
    %3070 = vmatprep.subr.bf16.mxu0 0
    %3071 = vmatpush1.bf16.msra.mxu0 0
    %3072 = vmatprep.subr.bf16.mxu0 0
    %3073 = vmatpush1.bf16.msra.mxu0 0
    %3074 = vmatprep.subr.bf16.mxu0 0
    %3075 = vmatpush1.bf16.msra.mxu0 0
    %3076 = vmatprep.subr.bf16.mxu0 0
    %3077 = vmatpush1.bf16.msra.mxu0 %v3058
    %3078 = vmatprep.subr.bf16.mxu0 0
    %3079 = vmatpush1.bf16.msra.mxu0 %v3057
    %3080 = vmatprep.subr.bf16.mxu0 0
    %3081 = vmatpush2.bf16.msra.mxu0 0
    %3082 = vmatprep.subr.bf16.mxu0 0
    %3083 = vmatpush2.bf16.msra.mxu0 0
    %3084 = vmatprep.subr.bf16.mxu0 0
    %3085 = vmatpush2.bf16.msra.mxu0 0
    %3086 = vmatprep.subr.bf16.mxu0 0
    %3087 = vmatpush2.bf16.msra.mxu0 0
    %3088 = vmatprep.subr.bf16.mxu0 0
    %3089 = vmatpush2.bf16.msra.mxu0 0
    %3090 = vmatprep.subr.bf16.mxu0 0
    %3091 = vmatpush2.bf16.msra.mxu0 0
    %3092 = vmatprep.subr.bf16.mxu0 0
    %3093 = vmatpush2.bf16.msra.mxu0 0
    %3094 = vmatprep.subr.bf16.mxu0 0
    %3095 = vmatpush2.bf16.msra.mxu0 0
    %3096 = vmatprep.mubr.bf16.mxu0 0
    %3097 = vmatmul.mubr.bf16.gmra.mxu0 %v3062
    %v3098 = vpop.f32.mrf.mxu0
    %v3099 = vadd.f32 %v3044, %v3098
    %v3100 = vpop.f32.mrf.mxu0
    %v3101 = vpop.f32.mrf.mxu0
    %v3102 = vpop.f32.mrf.mxu0
    %3103 = vdwg.mxu0
    %vm3104 = vcmask 31744
    %v3105 = vsel %vm3104, %v3099, -inf
    %3106 = vmax.xlane.f32.xlu0 %v3105
    %v3107 = vpop.xlane.xlu0 %3106
    %v3108 = vsub.f32 %v3099, %v3107
    %v3109 = vmul.f32 %v3108, 1.442695
    %v3110 = vpow.pop %v3109
    %v3111 = vsel %vm3104, %v3110, 0.0
    %3112 = vadd.xlane.f32.xlu0 %v3111
    %v3113 = vpop.xlane.xlu0 %3112
    %v3114 = vrcp.pop %v3113
    %v3115 = vmul.f32 %v3110, %v3114
    %3116 = vst.msk [vmem:[%s15] sm:$0xff] %vm3104, %v3115
    // Predicated region
    $region106: #{bert_plus_rnn_forward.1} parent=1 // pred_check
      _
    $region107: #{bert_plus_rnn_forward.1} parent=1 // pred_check_branch
      %3118 = sbr.rel (0) target = $region109
    $region108: #{bert_plus_rnn_forward.1} parent=1 // pred_region
      _
    $region109: #{bert_plus_rnn_forward.1} parent=1 // pred_fallthru
      _
    // Predicated region
    $region110: #{bert_plus_rnn_forward.1} parent=1 // pred_check
      _
    $region111: #{bert_plus_rnn_forward.1} parent=1 // pred_check_branch
      %3120 = sbr.rel (0) target = $region113
    $region112: #{bert_plus_rnn_forward.1} parent=1 // pred_region
      %s3122 = ssub.s32 384, 384
      %3123 = vsyncadd [#allocation5], %s3122
      %s3124 = sshll.u32 [#allocation21], 4
      %s3125 = int_to_ptr.vmem [resolvable:$true] %s3124
      %3130 = dma.vmem_to_hbm [thread:$0]  %s3125, 384, %s16, [#allocation5], 128, 128, 8
    $region113: #{bert_plus_rnn_forward.1} parent=1 // pred_fallthru
      _
    // Predicated region
    $region114: #{bert_plus_rnn_forward.1} parent=1 // pred_check
      _
    $region115: #{bert_plus_rnn_forward.1} parent=1 // pred_check_branch
      %3132 = sbr.rel (0) target = $region117
    $region116: #{bert_plus_rnn_forward.1} parent=1 // pred_region
      %s3134 = ssub.s32 384, 384
      %3135 = vsyncadd [#allocation23], %s3134
      %s3136 = sshll.u32 [#allocation22], 4
      %s3137 = int_to_ptr.vmem [resolvable:$true] %s3136
      %3142 = dma.vmem_to_hbm [thread:$0]  %s3137, 384, %s17, [#allocation23], 128, 128, 8
    $region117: #{bert_plus_rnn_forward.1} parent=1 // pred_fallthru
      _
    // Predicated region
    $region118: #{bert_plus_rnn_forward.1} parent=1 // pred_check
      _
    $region119: #{bert_plus_rnn_forward.1} parent=1 // pred_check_branch
      %3144 = sbr.rel (0) target = $region121
    $region120: #{bert_plus_rnn_forward.1} parent=1 // pred_region
      _
    $region121: #{bert_plus_rnn_forward.1} parent=1 // pred_fallthru
      _
    // Predicated region
    $region122: #{bert_plus_rnn_forward.1} parent=1 // pred_check
      _
    $region123: #{bert_plus_rnn_forward.1} parent=1 // pred_check_branch
      %3146 = sbr.rel (0) target = $region125
    $region124: #{bert_plus_rnn_forward.1} parent=1 // pred_region
      %3147 = dma.done [#allocation5], 384
    $region125: #{bert_plus_rnn_forward.1} parent=1 // pred_fallthru
      _
    // Predicated region
    $region126: #{bert_plus_rnn_forward.1} parent=1 // pred_check
      _
    $region127: #{bert_plus_rnn_forward.1} parent=1 // pred_check_branch
      %3149 = sbr.rel (0) target = $region129
    $region128: #{bert_plus_rnn_forward.1} parent=1 // pred_region
      %3150 = dma.done [#allocation23], 384
    $region129: #{bert_plus_rnn_forward.1} parent=1 // pred_fallthru
      _
    %3151 = vsyncpa [#allocation4], 1
    %3152 = vsyncpa [#allocation7], 1
    %3153 = vsyncpa [#allocation10], 1
    %3154 = vsyncpa [#allocation13], 1
    %3155 = vsyncpa [#allocation16], 1
    %3156 = vsyncpa [#allocation19], 1
    %3157 = vsyncpa [#allocation5], 1
    %3158 = vsyncpa [#allocation23], 1

</llo_original>
